<compile_context>
chip_gen: v7x
topology: tpu7x:2x2x1
jax: 0.10.0
libtpu: 0.0.40
codegen_flags: <defaults>
</compile_context>

<pallas_src>
import math

import jax
import jax.numpy as jnp
from jax import lax
from jax.experimental import pallas as pl
from jax.experimental.pallas import tpu as pltpu

d_Q = 64
d_V = 64
d_model = 256
n_head = 8

_BF16 = jnp.bfloat16


# ----------------------------------------------------------------------------
# Fused kernel: one batch-block per grid step, all heads processed inside.
# ----------------------------------------------------------------------------
def _mha_kernel(mask_ref, xq_ref, xk_ref, xv_ref,
                wq_ref, wk_ref, wv_ref, wfc_ref, o_ref):
    Bb, S, _ = xq_ref.shape
    M = Bb * S

    # Residual kept in f32; bf16 copies feed the MXU.
    xq_f32 = xq_ref[...].reshape(M, d_model)                  # (M, 256) f32
    xq16 = xq_f32.astype(_BF16)
    xk16 = xk_ref[...].reshape(M, d_model).astype(_BF16)
    xv16 = xv_ref[...].reshape(M, d_model).astype(_BF16)

    # Wide projections: one (M,256)@(256,512) bf16 matmul each, f32 accumulate.
    # 1/sqrt(d_Q) is already folded into wq_ref.
    q = jnp.dot(xq16, wq_ref[...], preferred_element_type=jnp.float32)  # (M, 512)
    k = jnp.dot(xk16, wk_ref[...], preferred_element_type=jnp.float32)  # (M, 512)
    v = jnp.dot(xv16, wv_ref[...], preferred_element_type=jnp.float32)  # (M, 512)

    q16 = q.astype(_BF16)
    k16 = k.astype(_BF16)
    v16 = v.astype(_BF16)

    # Per-(batch, head) attention on static 64-wide / S-tall slices (zero-cost
    # static views at these sizes); softmax kept in f32.
    ctx_rows = []
    for b in range(Bb):
        mask_b = mask_ref[b] != 0                             # (S, S) bool, True = masked
        r0 = b * S
        head_ctx = []
        for h in range(n_head):
            c0 = h * d_Q
            q_bh = q16[r0:r0 + S, c0:c0 + d_Q]                # (S, d_Q) bf16
            k_bh = k16[r0:r0 + S, c0:c0 + d_Q]
            v_bh = v16[r0:r0 + S, h * d_V:(h + 1) * d_V]      # (S, d_V) bf16

            # scores = (q/sqrt(d)) @ k^T — NT contraction, no K transpose.
            s = lax.dot_general(q_bh, k_bh, (((1,), (1,)), ((), ())),
                                preferred_element_type=jnp.float32)     # (S, S) f32
            s = jnp.where(mask_b, jnp.float32(-1e9), s)

            # softmax (max-subtracted), divide via EUP reciprocal.
            s_max = jnp.max(s, axis=-1, keepdims=True)
            p = jnp.exp(s - s_max)
            denom = jnp.sum(p, axis=-1, keepdims=True)
            attn = p * pl.reciprocal(denom, approx=True)
            attn = jnp.where(mask_b, jnp.float32(0.0), attn)  # attn.masked_fill_(mask, 0)

            ctx_h = jnp.dot(attn.astype(_BF16), v_bh,
                            preferred_element_type=jnp.float32)         # (S, d_V) f32
            head_ctx.append(ctx_h)
        ctx_rows.append(jnp.concatenate(head_ctx, axis=-1))             # (S, H*d_V)
    ctx = jnp.concatenate(ctx_rows, axis=0)                             # (M, 512) f32

    # Single fused output projection (K = 512) + residual (f32).
    y = jnp.dot(ctx.astype(_BF16), wfc_ref[...],
                preferred_element_type=jnp.float32) + xq_f32            # (M, 256)

    # LayerNorm(d_model): fresh nn.LayerNorm => weight=1, bias=0, eps=1e-5.
    mean = jnp.mean(y, axis=-1, keepdims=True)
    var = jnp.mean((y - mean) ** 2, axis=-1, keepdims=True)
    out = (y - mean) * lax.rsqrt(var + jnp.float32(1e-5))
    o_ref[...] = out.reshape(Bb, S, d_model)


# ----------------------------------------------------------------------------
# Wrapper
# ----------------------------------------------------------------------------
def _pick_batch_block(B, S, target_rows=256):
    """Largest divisor Bb of B with Bb*S <= target_rows, keeping >=2 grid steps
    when B allows (so both v7x TensorCores get work)."""
    best = 1
    for bb in range(1, B + 1):
        if B % bb == 0 and bb * S <= target_rows and (B // bb >= 2 or B == 1 or bb == 1):
            best = bb
    return best


@jax.jit
def multi_head_attention(input_Q, input_K, input_V, attn_mask,
                         wq_slab, wk_slab, wv_slab, wfc_slab):
    """
    input_Q/K/V : (B, S, d_model) float32
    attn_mask   : (B, S, S) bool (True = masked)
    wq/wk_slab  : (d_model, n_head*d_Q) bf16 (W^T, heads concatenated; scale folded into W_Q)
    wv_slab     : (d_model, n_head*d_V) bf16
    wfc_slab    : (n_head*d_V, d_model) bf16 (W_fc^T)
    """
    B, S, _ = input_Q.shape
    Bb = _pick_batch_block(B, S)
    num_blocks = B // Bb
    mask_i32 = attn_mask.astype(jnp.int32)

    return pl.pallas_call(
        _mha_kernel,
        out_shape=jax.ShapeDtypeStruct((B, S, d_model), jnp.float32),
        grid=(num_blocks,),
        in_specs=[
            pl.BlockSpec((Bb, S, S), lambda i: (i, 0, 0)),                 # mask
            pl.BlockSpec((Bb, S, d_model), lambda i: (i, 0, 0)),           # input_Q
            pl.BlockSpec((Bb, S, d_model), lambda i: (i, 0, 0)),           # input_K
            pl.BlockSpec((Bb, S, d_model), lambda i: (i, 0, 0)),           # input_V
            pl.BlockSpec((d_model, n_head * d_Q), lambda i: (0, 0)),       # W_Q slab
            pl.BlockSpec((d_model, n_head * d_Q), lambda i: (0, 0)),       # W_K slab
            pl.BlockSpec((d_model, n_head * d_V), lambda i: (0, 0)),       # W_V slab
            pl.BlockSpec((n_head * d_V, d_model), lambda i: (0, 0)),       # W_fc slab
        ],
        out_specs=pl.BlockSpec((Bb, S, d_model), lambda i: (i, 0, 0)),
        compiler_params=pltpu.CompilerParams(
            dimension_semantics=("parallel",)),
    )(mask_i32, input_Q, input_K, input_V, wq_slab, wk_slab, wv_slab, wfc_slab)


def prepare_weights(w_q, w_k, w_v, w_fc):
    """PyTorch nn.Linear weights -> concatenated-head bf16 slabs (done once,
    outside jit). Head h lives in columns [h*d : (h+1)*d] of W^T, matching the
    PyTorch .view(B, S, n_head, d) split. 1/sqrt(d_Q)=1/8 (power of two,
    bit-exact) is folded into W_Q."""
    scale = 1.0 / math.sqrt(d_Q)
    wq_slab = (w_q.T * jnp.float32(scale)).astype(_BF16)   # (256, 512)
    wk_slab = w_k.T.astype(_BF16)                          # (256, 512)
    wv_slab = w_v.T.astype(_BF16)                          # (256, 512)
    wfc_slab = w_fc.T.astype(_BF16)                        # (512, 256)
    return wq_slab, wk_slab, wv_slab, wfc_slab


# ----------------------------------------------------------------------------
# Pure-JAX f32 reference (mirrors the PyTorch module) for a self-check.
# ----------------------------------------------------------------------------
def _reference(input_Q, input_K, input_V, attn_mask, w_q, w_k, w_v, w_fc):
    B, S, _ = input_Q.shape
    q = (input_Q @ w_q.T).reshape(B, S, n_head, d_Q).transpose(0, 2, 1, 3)
    k = (input_K @ w_k.T).reshape(B, S, n_head, d_Q).transpose(0, 2, 1, 3)
    v = (input_V @ w_v.T).reshape(B, S, n_head, d_V).transpose(0, 2, 1, 3)
    mask = attn_mask[:, None, :, :]
    score = jnp.einsum('bhqd,bhkd->bhqk', q, k) / jnp.sqrt(jnp.float32(d_Q))
    score = jnp.where(mask, jnp.float32(-1e9), score)
    attn = jax.nn.softmax(score, axis=-1)
    attn = jnp.where(mask, jnp.float32(0.0), attn)
    ctx = jnp.einsum('bhqk,bhkd->bhqd', attn, v)
    ctx = ctx.transpose(0, 2, 1, 3).reshape(B, S, n_head * d_V)
    y = ctx @ w_fc.T + input_Q
    mean = y.mean(-1, keepdims=True)
    var = ((y - mean) ** 2).mean(-1, keepdims=True)
    return (y - mean) / jnp.sqrt(var + 1e-5)


if __name__ == "__main__":
    B, S = 4, 8   # small; exercises both batch-blocking (Bb=2) and 2 grid steps

    key = jax.random.PRNGKey(0)
    k1, k2, k3, k4, k5, k6, k7 = jax.random.split(key, 7)

    # Deterministic synthetic parameters (PyTorch nn.Linear weight shapes).
    w_q = jax.random.normal(k1, (n_head * d_Q, d_model), jnp.float32) * 0.05
    w_k = jax.random.normal(k2, (n_head * d_Q, d_model), jnp.float32) * 0.05
    w_v = jax.random.normal(k3, (n_head * d_V, d_model), jnp.float32) * 0.05
    w_fc = jax.random.normal(k4, (d_model, n_head * d_V), jnp.float32) * 0.05

    # Inputs.
    input_Q = jax.random.normal(k5, (B, S, d_model), jnp.float32)
    input_K = jax.random.normal(k6, (B, S, d_model), jnp.float32)
    input_V = jax.random.normal(k7, (B, S, d_model), jnp.float32)

    # Causal-style boolean mask (True = masked), shape (B, S, S).
    causal = jnp.triu(jnp.ones((S, S), dtype=bool), k=1)
    attn_mask = jnp.broadcast_to(causal, (B, S, S))

    # One-time weight layout prep (outside jit): wide bf16 slabs.
    wq_slab, wk_slab, wv_slab, wfc_slab = prepare_weights(w_q, w_k, w_v, w_fc)

    out = multi_head_attention(input_Q, input_K, input_V, attn_mask,
                               wq_slab, wk_slab, wv_slab, wfc_slab)
    out = jax.block_until_ready(out)

    assert out.shape == (B, S, d_model)
    assert bool(jnp.all(jnp.isfinite(out)))

    ref = _reference(input_Q, input_K, input_V, attn_mask, w_q, w_k, w_v, w_fc)
    max_err = float(jnp.max(jnp.abs(out - ref)))
    rms_err = float(jnp.sqrt(jnp.mean((out - ref) ** 2)))
    # bf16 MXU matmuls (f32 accumulate) vs a pure-f32 reference: loosened tolerance.
    assert max_err < 1e-1 and rms_err < 2.5e-2, (max_err, rms_err)

    print("KERNEL_OK")
</pallas_src>

<mosaic_0001>
module attributes {stable_mosaic.version = 11 : i64} {
  func.func @_mha_kernel(%arg0: i32, %arg1: memref<2x8x8xi32, #tpu.memory_space<vmem>>, %arg2: memref<2x8x256xf32, #tpu.memory_space<vmem>>, %arg3: memref<2x8x256xf32, #tpu.memory_space<vmem>>, %arg4: memref<2x8x256xf32, #tpu.memory_space<vmem>>, %arg5: memref<256x512xbf16, #tpu.memory_space<vmem>>, %arg6: memref<256x512xbf16, #tpu.memory_space<vmem>>, %arg7: memref<256x512xbf16, #tpu.memory_space<vmem>>, %arg8: memref<512x256xbf16, #tpu.memory_space<vmem>>, %arg9: memref<2x8x256xf32, #tpu.memory_space<vmem>>) attributes {dimension_semantics = [#tpu.dimension_semantics<parallel>], iteration_bounds = array<i64: 2>, scalar_prefetch = 0 : i64, scratch_operands = 0 : i64, tpu.core_type = #tpu.core_type<tc>, window_params = [{transform_indices = @transform_0, window_bounds = array<i64: 2, 8, 8>}, {transform_indices = @transform_1, window_bounds = array<i64: 2, 8, 256>}, {transform_indices = @transform_2, window_bounds = array<i64: 2, 8, 256>}, {transform_indices = @transform_3, window_bounds = array<i64: 2, 8, 256>}, {pipeline_mode = #tpu.pipeline_mode<synchronous>, transform_indices = @transform_4, window_bounds = array<i64: 256, 512>}, {pipeline_mode = #tpu.pipeline_mode<synchronous>, transform_indices = @transform_5, window_bounds = array<i64: 256, 512>}, {pipeline_mode = #tpu.pipeline_mode<synchronous>, transform_indices = @transform_6, window_bounds = array<i64: 256, 512>}, {pipeline_mode = #tpu.pipeline_mode<synchronous>, transform_indices = @transform_7, window_bounds = array<i64: 512, 256>}, {transform_indices = @transform_8, window_bounds = array<i64: 2, 8, 256>}]} {
    %c0 = arith.constant 0 : index
    %c0_0 = arith.constant 0 : index
    %c0_1 = arith.constant 0 : index
    %0 = vector.load %arg2[%c0, %c0_0, %c0_1] : memref<2x8x256xf32, #tpu.memory_space<vmem>>, vector<2x8x256xf32>
    %1 = vector.shape_cast %0 : vector<2x8x256xf32> to vector<16x256xf32>
    %2 = arith.truncf %1 : vector<16x256xf32> to vector<16x256xbf16>
    %c0_2 = arith.constant 0 : index
    %c0_3 = arith.constant 0 : index
    %c0_4 = arith.constant 0 : index
    %3 = vector.load %arg3[%c0_2, %c0_3, %c0_4] : memref<2x8x256xf32, #tpu.memory_space<vmem>>, vector<2x8x256xf32>
    %4 = vector.shape_cast %3 : vector<2x8x256xf32> to vector<16x256xf32>
    %5 = arith.truncf %4 : vector<16x256xf32> to vector<16x256xbf16>
    %c0_5 = arith.constant 0 : index
    %c0_6 = arith.constant 0 : index
    %c0_7 = arith.constant 0 : index
    %6 = vector.load %arg4[%c0_5, %c0_6, %c0_7] : memref<2x8x256xf32, #tpu.memory_space<vmem>>, vector<2x8x256xf32>
    %7 = vector.shape_cast %6 : vector<2x8x256xf32> to vector<16x256xf32>
    %8 = arith.truncf %7 : vector<16x256xf32> to vector<16x256xbf16>
    %c0_8 = arith.constant 0 : index
    %c0_9 = arith.constant 0 : index
    %9 = vector.load %arg5[%c0_8, %c0_9] : memref<256x512xbf16, #tpu.memory_space<vmem>>, vector<256x512xbf16>
    %cst = arith.constant dense<0.000000e+00> : vector<16x512xf32>
    %10 = tpu.matmul %2, %9, %cst {dimension_numbers = #tpu.dot_dimension_numbers<[1], [0], [0], [1], [0, 0, 1, 1], [], []>} : vector<16x256xbf16>, vector<256x512xbf16>, vector<16x512xf32> -> vector<16x512xf32>
    %c0_10 = arith.constant 0 : index
    %c0_11 = arith.constant 0 : index
    %11 = vector.load %arg6[%c0_10, %c0_11] : memref<256x512xbf16, #tpu.memory_space<vmem>>, vector<256x512xbf16>
    %cst_12 = arith.constant dense<0.000000e+00> : vector<16x512xf32>
    %12 = tpu.matmul %5, %11, %cst_12 {dimension_numbers = #tpu.dot_dimension_numbers<[1], [0], [0], [1], [0, 0, 1, 1], [], []>} : vector<16x256xbf16>, vector<256x512xbf16>, vector<16x512xf32> -> vector<16x512xf32>
    %c0_13 = arith.constant 0 : index
    %c0_14 = arith.constant 0 : index
    %13 = vector.load %arg7[%c0_13, %c0_14] : memref<256x512xbf16, #tpu.memory_space<vmem>>, vector<256x512xbf16>
    %cst_15 = arith.constant dense<0.000000e+00> : vector<16x512xf32>
    %14 = tpu.matmul %8, %13, %cst_15 {dimension_numbers = #tpu.dot_dimension_numbers<[1], [0], [0], [1], [0, 0, 1, 1], [], []>} : vector<16x256xbf16>, vector<256x512xbf16>, vector<16x512xf32> -> vector<16x512xf32>
    %15 = arith.truncf %10 : vector<16x512xf32> to vector<16x512xbf16>
    %16 = arith.truncf %12 : vector<16x512xf32> to vector<16x512xbf16>
    %17 = arith.truncf %14 : vector<16x512xf32> to vector<16x512xbf16>
    %c0_16 = arith.constant 0 : index
    %c0_17 = arith.constant 0 : index
    %c0_18 = arith.constant 0 : index
    %18 = vector.load %arg1[%c0_16, %c0_17, %c0_18] : memref<2x8x8xi32, #tpu.memory_space<vmem>>, vector<1x8x8xi32>
    %19 = vector.shape_cast %18 : vector<1x8x8xi32> to vector<8x8xi32>
    %c0_i32 = arith.constant 0 : i32
    %20 = vector.broadcast %c0_i32 : i32 to vector<8x8xi32>
    %21 = arith.cmpi ne, %19, %20 : vector<8x8xi32>
    %22 = vector.extract_strided_slice %15 {offsets = [0, 0], sizes = [8, 64], strides = [1, 1]} : vector<16x512xbf16> to vector<8x64xbf16>
    %23 = vector.extract_strided_slice %16 {offsets = [0, 0], sizes = [8, 64], strides = [1, 1]} : vector<16x512xbf16> to vector<8x64xbf16>
    %24 = vector.extract_strided_slice %17 {offsets = [0, 0], sizes = [8, 64], strides = [1, 1]} : vector<16x512xbf16> to vector<8x64xbf16>
    %cst_19 = arith.constant dense<0.000000e+00> : vector<8x8xf32>
    %25 = tpu.matmul %22, %23, %cst_19 {dimension_numbers = #tpu.dot_dimension_numbers<[1], [1], [0], [0], [0, 0, 1, 0], [], []>} : vector<8x64xbf16>, vector<8x64xbf16>, vector<8x8xf32> -> vector<8x8xf32>
    %cst_20 = arith.constant -1.000000e+09 : f32
    %26 = vector.broadcast %cst_20 : f32 to vector<8x8xf32>
    %27 = arith.select %21, %26, %25 : vector<8x8xi1>, vector<8x8xf32>
    %cst_21 = arith.constant dense<0xFF800000> : vector<8xf32>
    %28 = vector.multi_reduction <maximumf>, %27, %cst_21 [1] : vector<8x8xf32> to vector<8xf32>
    %29 = vector.shape_cast %28 : vector<8xf32> to vector<8x1xf32>
    %30 = vector.broadcast %29 : vector<8x1xf32> to vector<8x8xf32>
    %31 = arith.subf %27, %30 : vector<8x8xf32>
    %32 = math.exp %31 : vector<8x8xf32>
    %cst_22 = arith.constant dense<0.000000e+00> : vector<8xf32>
    %33 = vector.multi_reduction <add>, %32, %cst_22 [1] : vector<8x8xf32> to vector<8xf32>
    %34 = vector.shape_cast %33 : vector<8xf32> to vector<8x1xf32>
    %35 = tpu.reciprocal %34 {approx = true} : vector<8x1xf32> -> vector<8x1xf32>
    %36 = vector.broadcast %35 : vector<8x1xf32> to vector<8x8xf32>
    %37 = arith.mulf %32, %36 : vector<8x8xf32>
    %cst_23 = arith.constant 0.000000e+00 : f32
    %38 = vector.broadcast %cst_23 : f32 to vector<8x8xf32>
    %39 = arith.select %21, %38, %37 : vector<8x8xi1>, vector<8x8xf32>
    %40 = arith.truncf %39 : vector<8x8xf32> to vector<8x8xbf16>
    %cst_24 = arith.constant dense<0.000000e+00> : vector<8x64xf32>
    %41 = tpu.matmul %40, %24, %cst_24 {dimension_numbers = #tpu.dot_dimension_numbers<[1], [0], [0], [1], [0, 0, 1, 1], [], []>} : vector<8x8xbf16>, vector<8x64xbf16>, vector<8x64xf32> -> vector<8x64xf32>
    %42 = vector.extract_strided_slice %15 {offsets = [0, 64], sizes = [8, 64], strides = [1, 1]} : vector<16x512xbf16> to vector<8x64xbf16>
    %43 = vector.extract_strided_slice %16 {offsets = [0, 64], sizes = [8, 64], strides = [1, 1]} : vector<16x512xbf16> to vector<8x64xbf16>
    %44 = vector.extract_strided_slice %17 {offsets = [0, 64], sizes = [8, 64], strides = [1, 1]} : vector<16x512xbf16> to vector<8x64xbf16>
    %cst_25 = arith.constant dense<0.000000e+00> : vector<8x8xf32>
    %45 = tpu.matmul %42, %43, %cst_25 {dimension_numbers = #tpu.dot_dimension_numbers<[1], [1], [0], [0], [0, 0, 1, 0], [], []>} : vector<8x64xbf16>, vector<8x64xbf16>, vector<8x8xf32> -> vector<8x8xf32>
    %cst_26 = arith.constant -1.000000e+09 : f32
    %46 = vector.broadcast %cst_26 : f32 to vector<8x8xf32>
    %47 = arith.select %21, %46, %45 : vector<8x8xi1>, vector<8x8xf32>
    %cst_27 = arith.constant dense<0xFF800000> : vector<8xf32>
    %48 = vector.multi_reduction <maximumf>, %47, %cst_27 [1] : vector<8x8xf32> to vector<8xf32>
    %49 = vector.shape_cast %48 : vector<8xf32> to vector<8x1xf32>
    %50 = vector.broadcast %49 : vector<8x1xf32> to vector<8x8xf32>
    %51 = arith.subf %47, %50 : vector<8x8xf32>
    %52 = math.exp %51 : vector<8x8xf32>
    %cst_28 = arith.constant dense<0.000000e+00> : vector<8xf32>
    %53 = vector.multi_reduction <add>, %52, %cst_28 [1] : vector<8x8xf32> to vector<8xf32>
    %54 = vector.shape_cast %53 : vector<8xf32> to vector<8x1xf32>
    %55 = tpu.reciprocal %54 {approx = true} : vector<8x1xf32> -> vector<8x1xf32>
    %56 = vector.broadcast %55 : vector<8x1xf32> to vector<8x8xf32>
    %57 = arith.mulf %52, %56 : vector<8x8xf32>
    %cst_29 = arith.constant 0.000000e+00 : f32
    %58 = vector.broadcast %cst_29 : f32 to vector<8x8xf32>
    %59 = arith.select %21, %58, %57 : vector<8x8xi1>, vector<8x8xf32>
    %60 = arith.truncf %59 : vector<8x8xf32> to vector<8x8xbf16>
    %cst_30 = arith.constant dense<0.000000e+00> : vector<8x64xf32>
    %61 = tpu.matmul %60, %44, %cst_30 {dimension_numbers = #tpu.dot_dimension_numbers<[1], [0], [0], [1], [0, 0, 1, 1], [], []>} : vector<8x8xbf16>, vector<8x64xbf16>, vector<8x64xf32> -> vector<8x64xf32>
    %62 = vector.extract_strided_slice %15 {offsets = [0, 128], sizes = [8, 64], strides = [1, 1]} : vector<16x512xbf16> to vector<8x64xbf16>
    %63 = vector.extract_strided_slice %16 {offsets = [0, 128], sizes = [8, 64], strides = [1, 1]} : vector<16x512xbf16> to vector<8x64xbf16>
    %64 = vector.extract_strided_slice %17 {offsets = [0, 128], sizes = [8, 64], strides = [1, 1]} : vector<16x512xbf16> to vector<8x64xbf16>
    %cst_31 = arith.constant dense<0.000000e+00> : vector<8x8xf32>
    %65 = tpu.matmul %62, %63, %cst_31 {dimension_numbers = #tpu.dot_dimension_numbers<[1], [1], [0], [0], [0, 0, 1, 0], [], []>} : vector<8x64xbf16>, vector<8x64xbf16>, vector<8x8xf32> -> vector<8x8xf32>
    %cst_32 = arith.constant -1.000000e+09 : f32
    %66 = vector.broadcast %cst_32 : f32 to vector<8x8xf32>
    %67 = arith.select %21, %66, %65 : vector<8x8xi1>, vector<8x8xf32>
    %cst_33 = arith.constant dense<0xFF800000> : vector<8xf32>
    %68 = vector.multi_reduction <maximumf>, %67, %cst_33 [1] : vector<8x8xf32> to vector<8xf32>
    %69 = vector.shape_cast %68 : vector<8xf32> to vector<8x1xf32>
    %70 = vector.broadcast %69 : vector<8x1xf32> to vector<8x8xf32>
    %71 = arith.subf %67, %70 : vector<8x8xf32>
    %72 = math.exp %71 : vector<8x8xf32>
    %cst_34 = arith.constant dense<0.000000e+00> : vector<8xf32>
    %73 = vector.multi_reduction <add>, %72, %cst_34 [1] : vector<8x8xf32> to vector<8xf32>
    %74 = vector.shape_cast %73 : vector<8xf32> to vector<8x1xf32>
    %75 = tpu.reciprocal %74 {approx = true} : vector<8x1xf32> -> vector<8x1xf32>
    %76 = vector.broadcast %75 : vector<8x1xf32> to vector<8x8xf32>
    %77 = arith.mulf %72, %76 : vector<8x8xf32>
    %cst_35 = arith.constant 0.000000e+00 : f32
    %78 = vector.broadcast %cst_35 : f32 to vector<8x8xf32>
    %79 = arith.select %21, %78, %77 : vector<8x8xi1>, vector<8x8xf32>
    %80 = arith.truncf %79 : vector<8x8xf32> to vector<8x8xbf16>
    %cst_36 = arith.constant dense<0.000000e+00> : vector<8x64xf32>
    %81 = tpu.matmul %80, %64, %cst_36 {dimension_numbers = #tpu.dot_dimension_numbers<[1], [0], [0], [1], [0, 0, 1, 1], [], []>} : vector<8x8xbf16>, vector<8x64xbf16>, vector<8x64xf32> -> vector<8x64xf32>
    %82 = vector.extract_strided_slice %15 {offsets = [0, 192], sizes = [8, 64], strides = [1, 1]} : vector<16x512xbf16> to vector<8x64xbf16>
    %83 = vector.extract_strided_slice %16 {offsets = [0, 192], sizes = [8, 64], strides = [1, 1]} : vector<16x512xbf16> to vector<8x64xbf16>
    %84 = vector.extract_strided_slice %17 {offsets = [0, 192], sizes = [8, 64], strides = [1, 1]} : vector<16x512xbf16> to vector<8x64xbf16>
    %cst_37 = arith.constant dense<0.000000e+00> : vector<8x8xf32>
    %85 = tpu.matmul %82, %83, %cst_37 {dimension_numbers = #tpu.dot_dimension_numbers<[1], [1], [0], [0], [0, 0, 1, 0], [], []>} : vector<8x64xbf16>, vector<8x64xbf16>, vector<8x8xf32> -> vector<8x8xf32>
    %cst_38 = arith.constant -1.000000e+09 : f32
    %86 = vector.broadcast %cst_38 : f32 to vector<8x8xf32>
    %87 = arith.select %21, %86, %85 : vector<8x8xi1>, vector<8x8xf32>
    %cst_39 = arith.constant dense<0xFF800000> : vector<8xf32>
    %88 = vector.multi_reduction <maximumf>, %87, %cst_39 [1] : vector<8x8xf32> to vector<8xf32>
    %89 = vector.shape_cast %88 : vector<8xf32> to vector<8x1xf32>
    %90 = vector.broadcast %89 : vector<8x1xf32> to vector<8x8xf32>
    %91 = arith.subf %87, %90 : vector<8x8xf32>
    %92 = math.exp %91 : vector<8x8xf32>
    %cst_40 = arith.constant dense<0.000000e+00> : vector<8xf32>
    %93 = vector.multi_reduction <add>, %92, %cst_40 [1] : vector<8x8xf32> to vector<8xf32>
    %94 = vector.shape_cast %93 : vector<8xf32> to vector<8x1xf32>
    %95 = tpu.reciprocal %94 {approx = true} : vector<8x1xf32> -> vector<8x1xf32>
    %96 = vector.broadcast %95 : vector<8x1xf32> to vector<8x8xf32>
    %97 = arith.mulf %92, %96 : vector<8x8xf32>
    %cst_41 = arith.constant 0.000000e+00 : f32
    %98 = vector.broadcast %cst_41 : f32 to vector<8x8xf32>
    %99 = arith.select %21, %98, %97 : vector<8x8xi1>, vector<8x8xf32>
    %100 = arith.truncf %99 : vector<8x8xf32> to vector<8x8xbf16>
    %cst_42 = arith.constant dense<0.000000e+00> : vector<8x64xf32>
    %101 = tpu.matmul %100, %84, %cst_42 {dimension_numbers = #tpu.dot_dimension_numbers<[1], [0], [0], [1], [0, 0, 1, 1], [], []>} : vector<8x8xbf16>, vector<8x64xbf16>, vector<8x64xf32> -> vector<8x64xf32>
    %102 = vector.extract_strided_slice %15 {offsets = [0, 256], sizes = [8, 64], strides = [1, 1]} : vector<16x512xbf16> to vector<8x64xbf16>
    %103 = vector.extract_strided_slice %16 {offsets = [0, 256], sizes = [8, 64], strides = [1, 1]} : vector<16x512xbf16> to vector<8x64xbf16>
    %104 = vector.extract_strided_slice %17 {offsets = [0, 256], sizes = [8, 64], strides = [1, 1]} : vector<16x512xbf16> to vector<8x64xbf16>
    %cst_43 = arith.constant dense<0.000000e+00> : vector<8x8xf32>
    %105 = tpu.matmul %102, %103, %cst_43 {dimension_numbers = #tpu.dot_dimension_numbers<[1], [1], [0], [0], [0, 0, 1, 0], [], []>} : vector<8x64xbf16>, vector<8x64xbf16>, vector<8x8xf32> -> vector<8x8xf32>
    %cst_44 = arith.constant -1.000000e+09 : f32
    %106 = vector.broadcast %cst_44 : f32 to vector<8x8xf32>
    %107 = arith.select %21, %106, %105 : vector<8x8xi1>, vector<8x8xf32>
    %cst_45 = arith.constant dense<0xFF800000> : vector<8xf32>
    %108 = vector.multi_reduction <maximumf>, %107, %cst_45 [1] : vector<8x8xf32> to vector<8xf32>
    %109 = vector.shape_cast %108 : vector<8xf32> to vector<8x1xf32>
    %110 = vector.broadcast %109 : vector<8x1xf32> to vector<8x8xf32>
    %111 = arith.subf %107, %110 : vector<8x8xf32>
    %112 = math.exp %111 : vector<8x8xf32>
    %cst_46 = arith.constant dense<0.000000e+00> : vector<8xf32>
    %113 = vector.multi_reduction <add>, %112, %cst_46 [1] : vector<8x8xf32> to vector<8xf32>
    %114 = vector.shape_cast %113 : vector<8xf32> to vector<8x1xf32>
    %115 = tpu.reciprocal %114 {approx = true} : vector<8x1xf32> -> vector<8x1xf32>
    %116 = vector.broadcast %115 : vector<8x1xf32> to vector<8x8xf32>
    %117 = arith.mulf %112, %116 : vector<8x8xf32>
    %cst_47 = arith.constant 0.000000e+00 : f32
    %118 = vector.broadcast %cst_47 : f32 to vector<8x8xf32>
    %119 = arith.select %21, %118, %117 : vector<8x8xi1>, vector<8x8xf32>
    %120 = arith.truncf %119 : vector<8x8xf32> to vector<8x8xbf16>
    %cst_48 = arith.constant dense<0.000000e+00> : vector<8x64xf32>
    %121 = tpu.matmul %120, %104, %cst_48 {dimension_numbers = #tpu.dot_dimension_numbers<[1], [0], [0], [1], [0, 0, 1, 1], [], []>} : vector<8x8xbf16>, vector<8x64xbf16>, vector<8x64xf32> -> vector<8x64xf32>
    %122 = vector.extract_strided_slice %15 {offsets = [0, 320], sizes = [8, 64], strides = [1, 1]} : vector<16x512xbf16> to vector<8x64xbf16>
    %123 = vector.extract_strided_slice %16 {offsets = [0, 320], sizes = [8, 64], strides = [1, 1]} : vector<16x512xbf16> to vector<8x64xbf16>
    %124 = vector.extract_strided_slice %17 {offsets = [0, 320], sizes = [8, 64], strides = [1, 1]} : vector<16x512xbf16> to vector<8x64xbf16>
    %cst_49 = arith.constant dense<0.000000e+00> : vector<8x8xf32>
    %125 = tpu.matmul %122, %123, %cst_49 {dimension_numbers = #tpu.dot_dimension_numbers<[1], [1], [0], [0], [0, 0, 1, 0], [], []>} : vector<8x64xbf16>, vector<8x64xbf16>, vector<8x8xf32> -> vector<8x8xf32>
    %cst_50 = arith.constant -1.000000e+09 : f32
    %126 = vector.broadcast %cst_50 : f32 to vector<8x8xf32>
    %127 = arith.select %21, %126, %125 : vector<8x8xi1>, vector<8x8xf32>
    %cst_51 = arith.constant dense<0xFF800000> : vector<8xf32>
    %128 = vector.multi_reduction <maximumf>, %127, %cst_51 [1] : vector<8x8xf32> to vector<8xf32>
    %129 = vector.shape_cast %128 : vector<8xf32> to vector<8x1xf32>
    %130 = vector.broadcast %129 : vector<8x1xf32> to vector<8x8xf32>
    %131 = arith.subf %127, %130 : vector<8x8xf32>
    %132 = math.exp %131 : vector<8x8xf32>
    %cst_52 = arith.constant dense<0.000000e+00> : vector<8xf32>
    %133 = vector.multi_reduction <add>, %132, %cst_52 [1] : vector<8x8xf32> to vector<8xf32>
    %134 = vector.shape_cast %133 : vector<8xf32> to vector<8x1xf32>
    %135 = tpu.reciprocal %134 {approx = true} : vector<8x1xf32> -> vector<8x1xf32>
    %136 = vector.broadcast %135 : vector<8x1xf32> to vector<8x8xf32>
    %137 = arith.mulf %132, %136 : vector<8x8xf32>
    %cst_53 = arith.constant 0.000000e+00 : f32
    %138 = vector.broadcast %cst_53 : f32 to vector<8x8xf32>
    %139 = arith.select %21, %138, %137 : vector<8x8xi1>, vector<8x8xf32>
    %140 = arith.truncf %139 : vector<8x8xf32> to vector<8x8xbf16>
    %cst_54 = arith.constant dense<0.000000e+00> : vector<8x64xf32>
    %141 = tpu.matmul %140, %124, %cst_54 {dimension_numbers = #tpu.dot_dimension_numbers<[1], [0], [0], [1], [0, 0, 1, 1], [], []>} : vector<8x8xbf16>, vector<8x64xbf16>, vector<8x64xf32> -> vector<8x64xf32>
    %142 = vector.extract_strided_slice %15 {offsets = [0, 384], sizes = [8, 64], strides = [1, 1]} : vector<16x512xbf16> to vector<8x64xbf16>
    %143 = vector.extract_strided_slice %16 {offsets = [0, 384], sizes = [8, 64], strides = [1, 1]} : vector<16x512xbf16> to vector<8x64xbf16>
    %144 = vector.extract_strided_slice %17 {offsets = [0, 384], sizes = [8, 64], strides = [1, 1]} : vector<16x512xbf16> to vector<8x64xbf16>
    %cst_55 = arith.constant dense<0.000000e+00> : vector<8x8xf32>
    %145 = tpu.matmul %142, %143, %cst_55 {dimension_numbers = #tpu.dot_dimension_numbers<[1], [1], [0], [0], [0, 0, 1, 0], [], []>} : vector<8x64xbf16>, vector<8x64xbf16>, vector<8x8xf32> -> vector<8x8xf32>
    %cst_56 = arith.constant -1.000000e+09 : f32
    %146 = vector.broadcast %cst_56 : f32 to vector<8x8xf32>
    %147 = arith.select %21, %146, %145 : vector<8x8xi1>, vector<8x8xf32>
    %cst_57 = arith.constant dense<0xFF800000> : vector<8xf32>
    %148 = vector.multi_reduction <maximumf>, %147, %cst_57 [1] : vector<8x8xf32> to vector<8xf32>
    %149 = vector.shape_cast %148 : vector<8xf32> to vector<8x1xf32>
    %150 = vector.broadcast %149 : vector<8x1xf32> to vector<8x8xf32>
    %151 = arith.subf %147, %150 : vector<8x8xf32>
    %152 = math.exp %151 : vector<8x8xf32>
    %cst_58 = arith.constant dense<0.000000e+00> : vector<8xf32>
    %153 = vector.multi_reduction <add>, %152, %cst_58 [1] : vector<8x8xf32> to vector<8xf32>
    %154 = vector.shape_cast %153 : vector<8xf32> to vector<8x1xf32>
    %155 = tpu.reciprocal %154 {approx = true} : vector<8x1xf32> -> vector<8x1xf32>
    %156 = vector.broadcast %155 : vector<8x1xf32> to vector<8x8xf32>
    %157 = arith.mulf %152, %156 : vector<8x8xf32>
    %cst_59 = arith.constant 0.000000e+00 : f32
    %158 = vector.broadcast %cst_59 : f32 to vector<8x8xf32>
    %159 = arith.select %21, %158, %157 : vector<8x8xi1>, vector<8x8xf32>
    %160 = arith.truncf %159 : vector<8x8xf32> to vector<8x8xbf16>
    %cst_60 = arith.constant dense<0.000000e+00> : vector<8x64xf32>
    %161 = tpu.matmul %160, %144, %cst_60 {dimension_numbers = #tpu.dot_dimension_numbers<[1], [0], [0], [1], [0, 0, 1, 1], [], []>} : vector<8x8xbf16>, vector<8x64xbf16>, vector<8x64xf32> -> vector<8x64xf32>
    %162 = vector.extract_strided_slice %15 {offsets = [0, 448], sizes = [8, 64], strides = [1, 1]} : vector<16x512xbf16> to vector<8x64xbf16>
    %163 = vector.extract_strided_slice %16 {offsets = [0, 448], sizes = [8, 64], strides = [1, 1]} : vector<16x512xbf16> to vector<8x64xbf16>
    %164 = vector.extract_strided_slice %17 {offsets = [0, 448], sizes = [8, 64], strides = [1, 1]} : vector<16x512xbf16> to vector<8x64xbf16>
    %cst_61 = arith.constant dense<0.000000e+00> : vector<8x8xf32>
    %165 = tpu.matmul %162, %163, %cst_61 {dimension_numbers = #tpu.dot_dimension_numbers<[1], [1], [0], [0], [0, 0, 1, 0], [], []>} : vector<8x64xbf16>, vector<8x64xbf16>, vector<8x8xf32> -> vector<8x8xf32>
    %cst_62 = arith.constant -1.000000e+09 : f32
    %166 = vector.broadcast %cst_62 : f32 to vector<8x8xf32>
    %167 = arith.select %21, %166, %165 : vector<8x8xi1>, vector<8x8xf32>
    %cst_63 = arith.constant dense<0xFF800000> : vector<8xf32>
    %168 = vector.multi_reduction <maximumf>, %167, %cst_63 [1] : vector<8x8xf32> to vector<8xf32>
    %169 = vector.shape_cast %168 : vector<8xf32> to vector<8x1xf32>
    %170 = vector.broadcast %169 : vector<8x1xf32> to vector<8x8xf32>
    %171 = arith.subf %167, %170 : vector<8x8xf32>
    %172 = math.exp %171 : vector<8x8xf32>
    %cst_64 = arith.constant dense<0.000000e+00> : vector<8xf32>
    %173 = vector.multi_reduction <add>, %172, %cst_64 [1] : vector<8x8xf32> to vector<8xf32>
    %174 = vector.shape_cast %173 : vector<8xf32> to vector<8x1xf32>
    %175 = tpu.reciprocal %174 {approx = true} : vector<8x1xf32> -> vector<8x1xf32>
    %176 = vector.broadcast %175 : vector<8x1xf32> to vector<8x8xf32>
    %177 = arith.mulf %172, %176 : vector<8x8xf32>
    %cst_65 = arith.constant 0.000000e+00 : f32
    %178 = vector.broadcast %cst_65 : f32 to vector<8x8xf32>
    %179 = arith.select %21, %178, %177 : vector<8x8xi1>, vector<8x8xf32>
    %180 = arith.truncf %179 : vector<8x8xf32> to vector<8x8xbf16>
    %cst_66 = arith.constant dense<0.000000e+00> : vector<8x64xf32>
    %181 = tpu.matmul %180, %164, %cst_66 {dimension_numbers = #tpu.dot_dimension_numbers<[1], [0], [0], [1], [0, 0, 1, 1], [], []>} : vector<8x8xbf16>, vector<8x64xbf16>, vector<8x64xf32> -> vector<8x64xf32>
    %182 = tpu.concatenate %41, %61, %81, %101, %121, %141, %161, %181 in 1 : vector<8x64xf32>, vector<8x64xf32>, vector<8x64xf32>, vector<8x64xf32>, vector<8x64xf32>, vector<8x64xf32>, vector<8x64xf32>, vector<8x64xf32> -> vector<8x512xf32>
    %c1 = arith.constant 1 : index
    %c0_67 = arith.constant 0 : index
    %c0_68 = arith.constant 0 : index
    %183 = vector.load %arg1[%c1, %c0_67, %c0_68] : memref<2x8x8xi32, #tpu.memory_space<vmem>>, vector<1x8x8xi32>
    %184 = vector.shape_cast %183 : vector<1x8x8xi32> to vector<8x8xi32>
    %c0_i32_69 = arith.constant 0 : i32
    %185 = vector.broadcast %c0_i32_69 : i32 to vector<8x8xi32>
    %186 = arith.cmpi ne, %184, %185 : vector<8x8xi32>
    %187 = vector.extract_strided_slice %15 {offsets = [8, 0], sizes = [8, 64], strides = [1, 1]} : vector<16x512xbf16> to vector<8x64xbf16>
    %188 = vector.extract_strided_slice %16 {offsets = [8, 0], sizes = [8, 64], strides = [1, 1]} : vector<16x512xbf16> to vector<8x64xbf16>
    %189 = vector.extract_strided_slice %17 {offsets = [8, 0], sizes = [8, 64], strides = [1, 1]} : vector<16x512xbf16> to vector<8x64xbf16>
    %cst_70 = arith.constant dense<0.000000e+00> : vector<8x8xf32>
    %190 = tpu.matmul %187, %188, %cst_70 {dimension_numbers = #tpu.dot_dimension_numbers<[1], [1], [0], [0], [0, 0, 1, 0], [], []>} : vector<8x64xbf16>, vector<8x64xbf16>, vector<8x8xf32> -> vector<8x8xf32>
    %cst_71 = arith.constant -1.000000e+09 : f32
    %191 = vector.broadcast %cst_71 : f32 to vector<8x8xf32>
    %192 = arith.select %186, %191, %190 : vector<8x8xi1>, vector<8x8xf32>
    %cst_72 = arith.constant dense<0xFF800000> : vector<8xf32>
    %193 = vector.multi_reduction <maximumf>, %192, %cst_72 [1] : vector<8x8xf32> to vector<8xf32>
    %194 = vector.shape_cast %193 : vector<8xf32> to vector<8x1xf32>
    %195 = vector.broadcast %194 : vector<8x1xf32> to vector<8x8xf32>
    %196 = arith.subf %192, %195 : vector<8x8xf32>
    %197 = math.exp %196 : vector<8x8xf32>
    %cst_73 = arith.constant dense<0.000000e+00> : vector<8xf32>
    %198 = vector.multi_reduction <add>, %197, %cst_73 [1] : vector<8x8xf32> to vector<8xf32>
    %199 = vector.shape_cast %198 : vector<8xf32> to vector<8x1xf32>
    %200 = tpu.reciprocal %199 {approx = true} : vector<8x1xf32> -> vector<8x1xf32>
    %201 = vector.broadcast %200 : vector<8x1xf32> to vector<8x8xf32>
    %202 = arith.mulf %197, %201 : vector<8x8xf32>
    %cst_74 = arith.constant 0.000000e+00 : f32
    %203 = vector.broadcast %cst_74 : f32 to vector<8x8xf32>
    %204 = arith.select %186, %203, %202 : vector<8x8xi1>, vector<8x8xf32>
    %205 = arith.truncf %204 : vector<8x8xf32> to vector<8x8xbf16>
    %cst_75 = arith.constant dense<0.000000e+00> : vector<8x64xf32>
    %206 = tpu.matmul %205, %189, %cst_75 {dimension_numbers = #tpu.dot_dimension_numbers<[1], [0], [0], [1], [0, 0, 1, 1], [], []>} : vector<8x8xbf16>, vector<8x64xbf16>, vector<8x64xf32> -> vector<8x64xf32>
    %207 = vector.extract_strided_slice %15 {offsets = [8, 64], sizes = [8, 64], strides = [1, 1]} : vector<16x512xbf16> to vector<8x64xbf16>
    %208 = vector.extract_strided_slice %16 {offsets = [8, 64], sizes = [8, 64], strides = [1, 1]} : vector<16x512xbf16> to vector<8x64xbf16>
    %209 = vector.extract_strided_slice %17 {offsets = [8, 64], sizes = [8, 64], strides = [1, 1]} : vector<16x512xbf16> to vector<8x64xbf16>
    %cst_76 = arith.constant dense<0.000000e+00> : vector<8x8xf32>
    %210 = tpu.matmul %207, %208, %cst_76 {dimension_numbers = #tpu.dot_dimension_numbers<[1], [1], [0], [0], [0, 0, 1, 0], [], []>} : vector<8x64xbf16>, vector<8x64xbf16>, vector<8x8xf32> -> vector<8x8xf32>
    %cst_77 = arith.constant -1.000000e+09 : f32
    %211 = vector.broadcast %cst_77 : f32 to vector<8x8xf32>
    %212 = arith.select %186, %211, %210 : vector<8x8xi1>, vector<8x8xf32>
    %cst_78 = arith.constant dense<0xFF800000> : vector<8xf32>
    %213 = vector.multi_reduction <maximumf>, %212, %cst_78 [1] : vector<8x8xf32> to vector<8xf32>
    %214 = vector.shape_cast %213 : vector<8xf32> to vector<8x1xf32>
    %215 = vector.broadcast %214 : vector<8x1xf32> to vector<8x8xf32>
    %216 = arith.subf %212, %215 : vector<8x8xf32>
    %217 = math.exp %216 : vector<8x8xf32>
    %cst_79 = arith.constant dense<0.000000e+00> : vector<8xf32>
    %218 = vector.multi_reduction <add>, %217, %cst_79 [1] : vector<8x8xf32> to vector<8xf32>
    %219 = vector.shape_cast %218 : vector<8xf32> to vector<8x1xf32>
    %220 = tpu.reciprocal %219 {approx = true} : vector<8x1xf32> -> vector<8x1xf32>
    %221 = vector.broadcast %220 : vector<8x1xf32> to vector<8x8xf32>
    %222 = arith.mulf %217, %221 : vector<8x8xf32>
    %cst_80 = arith.constant 0.000000e+00 : f32
    %223 = vector.broadcast %cst_80 : f32 to vector<8x8xf32>
    %224 = arith.select %186, %223, %222 : vector<8x8xi1>, vector<8x8xf32>
    %225 = arith.truncf %224 : vector<8x8xf32> to vector<8x8xbf16>
    %cst_81 = arith.constant dense<0.000000e+00> : vector<8x64xf32>
    %226 = tpu.matmul %225, %209, %cst_81 {dimension_numbers = #tpu.dot_dimension_numbers<[1], [0], [0], [1], [0, 0, 1, 1], [], []>} : vector<8x8xbf16>, vector<8x64xbf16>, vector<8x64xf32> -> vector<8x64xf32>
    %227 = vector.extract_strided_slice %15 {offsets = [8, 128], sizes = [8, 64], strides = [1, 1]} : vector<16x512xbf16> to vector<8x64xbf16>
    %228 = vector.extract_strided_slice %16 {offsets = [8, 128], sizes = [8, 64], strides = [1, 1]} : vector<16x512xbf16> to vector<8x64xbf16>
    %229 = vector.extract_strided_slice %17 {offsets = [8, 128], sizes = [8, 64], strides = [1, 1]} : vector<16x512xbf16> to vector<8x64xbf16>
    %cst_82 = arith.constant dense<0.000000e+00> : vector<8x8xf32>
    %230 = tpu.matmul %227, %228, %cst_82 {dimension_numbers = #tpu.dot_dimension_numbers<[1], [1], [0], [0], [0, 0, 1, 0], [], []>} : vector<8x64xbf16>, vector<8x64xbf16>, vector<8x8xf32> -> vector<8x8xf32>
    %cst_83 = arith.constant -1.000000e+09 : f32
    %231 = vector.broadcast %cst_83 : f32 to vector<8x8xf32>
    %232 = arith.select %186, %231, %230 : vector<8x8xi1>, vector<8x8xf32>
    %cst_84 = arith.constant dense<0xFF800000> : vector<8xf32>
    %233 = vector.multi_reduction <maximumf>, %232, %cst_84 [1] : vector<8x8xf32> to vector<8xf32>
    %234 = vector.shape_cast %233 : vector<8xf32> to vector<8x1xf32>
    %235 = vector.broadcast %234 : vector<8x1xf32> to vector<8x8xf32>
    %236 = arith.subf %232, %235 : vector<8x8xf32>
    %237 = math.exp %236 : vector<8x8xf32>
    %cst_85 = arith.constant dense<0.000000e+00> : vector<8xf32>
    %238 = vector.multi_reduction <add>, %237, %cst_85 [1] : vector<8x8xf32> to vector<8xf32>
    %239 = vector.shape_cast %238 : vector<8xf32> to vector<8x1xf32>
    %240 = tpu.reciprocal %239 {approx = true} : vector<8x1xf32> -> vector<8x1xf32>
    %241 = vector.broadcast %240 : vector<8x1xf32> to vector<8x8xf32>
    %242 = arith.mulf %237, %241 : vector<8x8xf32>
    %cst_86 = arith.constant 0.000000e+00 : f32
    %243 = vector.broadcast %cst_86 : f32 to vector<8x8xf32>
    %244 = arith.select %186, %243, %242 : vector<8x8xi1>, vector<8x8xf32>
    %245 = arith.truncf %244 : vector<8x8xf32> to vector<8x8xbf16>
    %cst_87 = arith.constant dense<0.000000e+00> : vector<8x64xf32>
    %246 = tpu.matmul %245, %229, %cst_87 {dimension_numbers = #tpu.dot_dimension_numbers<[1], [0], [0], [1], [0, 0, 1, 1], [], []>} : vector<8x8xbf16>, vector<8x64xbf16>, vector<8x64xf32> -> vector<8x64xf32>
    %247 = vector.extract_strided_slice %15 {offsets = [8, 192], sizes = [8, 64], strides = [1, 1]} : vector<16x512xbf16> to vector<8x64xbf16>
    %248 = vector.extract_strided_slice %16 {offsets = [8, 192], sizes = [8, 64], strides = [1, 1]} : vector<16x512xbf16> to vector<8x64xbf16>
    %249 = vector.extract_strided_slice %17 {offsets = [8, 192], sizes = [8, 64], strides = [1, 1]} : vector<16x512xbf16> to vector<8x64xbf16>
    %cst_88 = arith.constant dense<0.000000e+00> : vector<8x8xf32>
    %250 = tpu.matmul %247, %248, %cst_88 {dimension_numbers = #tpu.dot_dimension_numbers<[1], [1], [0], [0], [0, 0, 1, 0], [], []>} : vector<8x64xbf16>, vector<8x64xbf16>, vector<8x8xf32> -> vector<8x8xf32>
    %cst_89 = arith.constant -1.000000e+09 : f32
    %251 = vector.broadcast %cst_89 : f32 to vector<8x8xf32>
    %252 = arith.select %186, %251, %250 : vector<8x8xi1>, vector<8x8xf32>
    %cst_90 = arith.constant dense<0xFF800000> : vector<8xf32>
    %253 = vector.multi_reduction <maximumf>, %252, %cst_90 [1] : vector<8x8xf32> to vector<8xf32>
    %254 = vector.shape_cast %253 : vector<8xf32> to vector<8x1xf32>
    %255 = vector.broadcast %254 : vector<8x1xf32> to vector<8x8xf32>
    %256 = arith.subf %252, %255 : vector<8x8xf32>
    %257 = math.exp %256 : vector<8x8xf32>
    %cst_91 = arith.constant dense<0.000000e+00> : vector<8xf32>
    %258 = vector.multi_reduction <add>, %257, %cst_91 [1] : vector<8x8xf32> to vector<8xf32>
    %259 = vector.shape_cast %258 : vector<8xf32> to vector<8x1xf32>
    %260 = tpu.reciprocal %259 {approx = true} : vector<8x1xf32> -> vector<8x1xf32>
    %261 = vector.broadcast %260 : vector<8x1xf32> to vector<8x8xf32>
    %262 = arith.mulf %257, %261 : vector<8x8xf32>
    %cst_92 = arith.constant 0.000000e+00 : f32
    %263 = vector.broadcast %cst_92 : f32 to vector<8x8xf32>
    %264 = arith.select %186, %263, %262 : vector<8x8xi1>, vector<8x8xf32>
    %265 = arith.truncf %264 : vector<8x8xf32> to vector<8x8xbf16>
    %cst_93 = arith.constant dense<0.000000e+00> : vector<8x64xf32>
    %266 = tpu.matmul %265, %249, %cst_93 {dimension_numbers = #tpu.dot_dimension_numbers<[1], [0], [0], [1], [0, 0, 1, 1], [], []>} : vector<8x8xbf16>, vector<8x64xbf16>, vector<8x64xf32> -> vector<8x64xf32>
    %267 = vector.extract_strided_slice %15 {offsets = [8, 256], sizes = [8, 64], strides = [1, 1]} : vector<16x512xbf16> to vector<8x64xbf16>
    %268 = vector.extract_strided_slice %16 {offsets = [8, 256], sizes = [8, 64], strides = [1, 1]} : vector<16x512xbf16> to vector<8x64xbf16>
    %269 = vector.extract_strided_slice %17 {offsets = [8, 256], sizes = [8, 64], strides = [1, 1]} : vector<16x512xbf16> to vector<8x64xbf16>
    %cst_94 = arith.constant dense<0.000000e+00> : vector<8x8xf32>
    %270 = tpu.matmul %267, %268, %cst_94 {dimension_numbers = #tpu.dot_dimension_numbers<[1], [1], [0], [0], [0, 0, 1, 0], [], []>} : vector<8x64xbf16>, vector<8x64xbf16>, vector<8x8xf32> -> vector<8x8xf32>
    %cst_95 = arith.constant -1.000000e+09 : f32
    %271 = vector.broadcast %cst_95 : f32 to vector<8x8xf32>
    %272 = arith.select %186, %271, %270 : vector<8x8xi1>, vector<8x8xf32>
    %cst_96 = arith.constant dense<0xFF800000> : vector<8xf32>
    %273 = vector.multi_reduction <maximumf>, %272, %cst_96 [1] : vector<8x8xf32> to vector<8xf32>
    %274 = vector.shape_cast %273 : vector<8xf32> to vector<8x1xf32>
    %275 = vector.broadcast %274 : vector<8x1xf32> to vector<8x8xf32>
    %276 = arith.subf %272, %275 : vector<8x8xf32>
    %277 = math.exp %276 : vector<8x8xf32>
    %cst_97 = arith.constant dense<0.000000e+00> : vector<8xf32>
    %278 = vector.multi_reduction <add>, %277, %cst_97 [1] : vector<8x8xf32> to vector<8xf32>
    %279 = vector.shape_cast %278 : vector<8xf32> to vector<8x1xf32>
    %280 = tpu.reciprocal %279 {approx = true} : vector<8x1xf32> -> vector<8x1xf32>
    %281 = vector.broadcast %280 : vector<8x1xf32> to vector<8x8xf32>
    %282 = arith.mulf %277, %281 : vector<8x8xf32>
    %cst_98 = arith.constant 0.000000e+00 : f32
    %283 = vector.broadcast %cst_98 : f32 to vector<8x8xf32>
    %284 = arith.select %186, %283, %282 : vector<8x8xi1>, vector<8x8xf32>
    %285 = arith.truncf %284 : vector<8x8xf32> to vector<8x8xbf16>
    %cst_99 = arith.constant dense<0.000000e+00> : vector<8x64xf32>
    %286 = tpu.matmul %285, %269, %cst_99 {dimension_numbers = #tpu.dot_dimension_numbers<[1], [0], [0], [1], [0, 0, 1, 1], [], []>} : vector<8x8xbf16>, vector<8x64xbf16>, vector<8x64xf32> -> vector<8x64xf32>
    %287 = vector.extract_strided_slice %15 {offsets = [8, 320], sizes = [8, 64], strides = [1, 1]} : vector<16x512xbf16> to vector<8x64xbf16>
    %288 = vector.extract_strided_slice %16 {offsets = [8, 320], sizes = [8, 64], strides = [1, 1]} : vector<16x512xbf16> to vector<8x64xbf16>
    %289 = vector.extract_strided_slice %17 {offsets = [8, 320], sizes = [8, 64], strides = [1, 1]} : vector<16x512xbf16> to vector<8x64xbf16>
    %cst_100 = arith.constant dense<0.000000e+00> : vector<8x8xf32>
    %290 = tpu.matmul %287, %288, %cst_100 {dimension_numbers = #tpu.dot_dimension_numbers<[1], [1], [0], [0], [0, 0, 1, 0], [], []>} : vector<8x64xbf16>, vector<8x64xbf16>, vector<8x8xf32> -> vector<8x8xf32>
    %cst_101 = arith.constant -1.000000e+09 : f32
    %291 = vector.broadcast %cst_101 : f32 to vector<8x8xf32>
    %292 = arith.select %186, %291, %290 : vector<8x8xi1>, vector<8x8xf32>
    %cst_102 = arith.constant dense<0xFF800000> : vector<8xf32>
    %293 = vector.multi_reduction <maximumf>, %292, %cst_102 [1] : vector<8x8xf32> to vector<8xf32>
    %294 = vector.shape_cast %293 : vector<8xf32> to vector<8x1xf32>
    %295 = vector.broadcast %294 : vector<8x1xf32> to vector<8x8xf32>
    %296 = arith.subf %292, %295 : vector<8x8xf32>
    %297 = math.exp %296 : vector<8x8xf32>
    %cst_103 = arith.constant dense<0.000000e+00> : vector<8xf32>
    %298 = vector.multi_reduction <add>, %297, %cst_103 [1] : vector<8x8xf32> to vector<8xf32>
    %299 = vector.shape_cast %298 : vector<8xf32> to vector<8x1xf32>
    %300 = tpu.reciprocal %299 {approx = true} : vector<8x1xf32> -> vector<8x1xf32>
    %301 = vector.broadcast %300 : vector<8x1xf32> to vector<8x8xf32>
    %302 = arith.mulf %297, %301 : vector<8x8xf32>
    %cst_104 = arith.constant 0.000000e+00 : f32
    %303 = vector.broadcast %cst_104 : f32 to vector<8x8xf32>
    %304 = arith.select %186, %303, %302 : vector<8x8xi1>, vector<8x8xf32>
    %305 = arith.truncf %304 : vector<8x8xf32> to vector<8x8xbf16>
    %cst_105 = arith.constant dense<0.000000e+00> : vector<8x64xf32>
    %306 = tpu.matmul %305, %289, %cst_105 {dimension_numbers = #tpu.dot_dimension_numbers<[1], [0], [0], [1], [0, 0, 1, 1], [], []>} : vector<8x8xbf16>, vector<8x64xbf16>, vector<8x64xf32> -> vector<8x64xf32>
    %307 = vector.extract_strided_slice %15 {offsets = [8, 384], sizes = [8, 64], strides = [1, 1]} : vector<16x512xbf16> to vector<8x64xbf16>
    %308 = vector.extract_strided_slice %16 {offsets = [8, 384], sizes = [8, 64], strides = [1, 1]} : vector<16x512xbf16> to vector<8x64xbf16>
    %309 = vector.extract_strided_slice %17 {offsets = [8, 384], sizes = [8, 64], strides = [1, 1]} : vector<16x512xbf16> to vector<8x64xbf16>
    %cst_106 = arith.constant dense<0.000000e+00> : vector<8x8xf32>
    %310 = tpu.matmul %307, %308, %cst_106 {dimension_numbers = #tpu.dot_dimension_numbers<[1], [1], [0], [0], [0, 0, 1, 0], [], []>} : vector<8x64xbf16>, vector<8x64xbf16>, vector<8x8xf32> -> vector<8x8xf32>
    %cst_107 = arith.constant -1.000000e+09 : f32
    %311 = vector.broadcast %cst_107 : f32 to vector<8x8xf32>
    %312 = arith.select %186, %311, %310 : vector<8x8xi1>, vector<8x8xf32>
    %cst_108 = arith.constant dense<0xFF800000> : vector<8xf32>
    %313 = vector.multi_reduction <maximumf>, %312, %cst_108 [1] : vector<8x8xf32> to vector<8xf32>
    %314 = vector.shape_cast %313 : vector<8xf32> to vector<8x1xf32>
    %315 = vector.broadcast %314 : vector<8x1xf32> to vector<8x8xf32>
    %316 = arith.subf %312, %315 : vector<8x8xf32>
    %317 = math.exp %316 : vector<8x8xf32>
    %cst_109 = arith.constant dense<0.000000e+00> : vector<8xf32>
    %318 = vector.multi_reduction <add>, %317, %cst_109 [1] : vector<8x8xf32> to vector<8xf32>
    %319 = vector.shape_cast %318 : vector<8xf32> to vector<8x1xf32>
    %320 = tpu.reciprocal %319 {approx = true} : vector<8x1xf32> -> vector<8x1xf32>
    %321 = vector.broadcast %320 : vector<8x1xf32> to vector<8x8xf32>
    %322 = arith.mulf %317, %321 : vector<8x8xf32>
    %cst_110 = arith.constant 0.000000e+00 : f32
    %323 = vector.broadcast %cst_110 : f32 to vector<8x8xf32>
    %324 = arith.select %186, %323, %322 : vector<8x8xi1>, vector<8x8xf32>
    %325 = arith.truncf %324 : vector<8x8xf32> to vector<8x8xbf16>
    %cst_111 = arith.constant dense<0.000000e+00> : vector<8x64xf32>
    %326 = tpu.matmul %325, %309, %cst_111 {dimension_numbers = #tpu.dot_dimension_numbers<[1], [0], [0], [1], [0, 0, 1, 1], [], []>} : vector<8x8xbf16>, vector<8x64xbf16>, vector<8x64xf32> -> vector<8x64xf32>
    %327 = vector.extract_strided_slice %15 {offsets = [8, 448], sizes = [8, 64], strides = [1, 1]} : vector<16x512xbf16> to vector<8x64xbf16>
    %328 = vector.extract_strided_slice %16 {offsets = [8, 448], sizes = [8, 64], strides = [1, 1]} : vector<16x512xbf16> to vector<8x64xbf16>
    %329 = vector.extract_strided_slice %17 {offsets = [8, 448], sizes = [8, 64], strides = [1, 1]} : vector<16x512xbf16> to vector<8x64xbf16>
    %cst_112 = arith.constant dense<0.000000e+00> : vector<8x8xf32>
    %330 = tpu.matmul %327, %328, %cst_112 {dimension_numbers = #tpu.dot_dimension_numbers<[1], [1], [0], [0], [0, 0, 1, 0], [], []>} : vector<8x64xbf16>, vector<8x64xbf16>, vector<8x8xf32> -> vector<8x8xf32>
    %cst_113 = arith.constant -1.000000e+09 : f32
    %331 = vector.broadcast %cst_113 : f32 to vector<8x8xf32>
    %332 = arith.select %186, %331, %330 : vector<8x8xi1>, vector<8x8xf32>
    %cst_114 = arith.constant dense<0xFF800000> : vector<8xf32>
    %333 = vector.multi_reduction <maximumf>, %332, %cst_114 [1] : vector<8x8xf32> to vector<8xf32>
    %334 = vector.shape_cast %333 : vector<8xf32> to vector<8x1xf32>
    %335 = vector.broadcast %334 : vector<8x1xf32> to vector<8x8xf32>
    %336 = arith.subf %332, %335 : vector<8x8xf32>
    %337 = math.exp %336 : vector<8x8xf32>
    %cst_115 = arith.constant dense<0.000000e+00> : vector<8xf32>
    %338 = vector.multi_reduction <add>, %337, %cst_115 [1] : vector<8x8xf32> to vector<8xf32>
    %339 = vector.shape_cast %338 : vector<8xf32> to vector<8x1xf32>
    %340 = tpu.reciprocal %339 {approx = true} : vector<8x1xf32> -> vector<8x1xf32>
    %341 = vector.broadcast %340 : vector<8x1xf32> to vector<8x8xf32>
    %342 = arith.mulf %337, %341 : vector<8x8xf32>
    %cst_116 = arith.constant 0.000000e+00 : f32
    %343 = vector.broadcast %cst_116 : f32 to vector<8x8xf32>
    %344 = arith.select %186, %343, %342 : vector<8x8xi1>, vector<8x8xf32>
    %345 = arith.truncf %344 : vector<8x8xf32> to vector<8x8xbf16>
    %cst_117 = arith.constant dense<0.000000e+00> : vector<8x64xf32>
    %346 = tpu.matmul %345, %329, %cst_117 {dimension_numbers = #tpu.dot_dimension_numbers<[1], [0], [0], [1], [0, 0, 1, 1], [], []>} : vector<8x8xbf16>, vector<8x64xbf16>, vector<8x64xf32> -> vector<8x64xf32>
    %347 = tpu.concatenate %206, %226, %246, %266, %286, %306, %326, %346 in 1 : vector<8x64xf32>, vector<8x64xf32>, vector<8x64xf32>, vector<8x64xf32>, vector<8x64xf32>, vector<8x64xf32>, vector<8x64xf32>, vector<8x64xf32> -> vector<8x512xf32>
    %348 = tpu.concatenate %182, %347 in 0 : vector<8x512xf32>, vector<8x512xf32> -> vector<16x512xf32>
    %349 = arith.truncf %348 : vector<16x512xf32> to vector<16x512xbf16>
    %c0_118 = arith.constant 0 : index
    %c0_119 = arith.constant 0 : index
    %350 = vector.load %arg8[%c0_118, %c0_119] : memref<512x256xbf16, #tpu.memory_space<vmem>>, vector<512x256xbf16>
    %cst_120 = arith.constant dense<0.000000e+00> : vector<16x256xf32>
    %351 = tpu.matmul %349, %350, %cst_120 {dimension_numbers = #tpu.dot_dimension_numbers<[1], [0], [0], [1], [0, 0, 1, 1], [], []>} : vector<16x512xbf16>, vector<512x256xbf16>, vector<16x256xf32> -> vector<16x256xf32>
    %352 = arith.addf %351, %1 : vector<16x256xf32>
    %cst_121 = arith.constant dense<0.000000e+00> : vector<16xf32>
    %353 = vector.multi_reduction <add>, %352, %cst_121 [1] : vector<16x256xf32> to vector<16xf32>
    %354 = vector.shape_cast %353 : vector<16xf32> to vector<16x1xf32>
    %cst_122 = arith.constant 2.560000e+02 : f32
    %355 = vector.broadcast %cst_122 : f32 to vector<16x1xf32>
    %356 = arith.divf %354, %355 : vector<16x1xf32>
    %357 = vector.broadcast %356 : vector<16x1xf32> to vector<16x256xf32>
    %358 = arith.subf %352, %357 : vector<16x256xf32>
    %359 = arith.mulf %358, %358 : vector<16x256xf32>
    %cst_123 = arith.constant dense<0.000000e+00> : vector<16xf32>
    %360 = vector.multi_reduction <add>, %359, %cst_123 [1] : vector<16x256xf32> to vector<16xf32>
    %361 = vector.shape_cast %360 : vector<16xf32> to vector<16x1xf32>
    %cst_124 = arith.constant 2.560000e+02 : f32
    %362 = vector.broadcast %cst_124 : f32 to vector<16x1xf32>
    %363 = arith.divf %361, %362 : vector<16x1xf32>
    %364 = vector.broadcast %356 : vector<16x1xf32> to vector<16x256xf32>
    %365 = arith.subf %352, %364 : vector<16x256xf32>
    %cst_125 = arith.constant 9.99999974E-6 : f32
    %366 = vector.broadcast %cst_125 : f32 to vector<16x1xf32>
    %367 = arith.addf %363, %366 : vector<16x1xf32>
    %368 = math.rsqrt %367 : vector<16x1xf32>
    %369 = vector.broadcast %368 : vector<16x1xf32> to vector<16x256xf32>
    %370 = arith.mulf %365, %369 : vector<16x256xf32>
    %371 = vector.shape_cast %370 : vector<16x256xf32> to vector<2x8x256xf32>
    %c0_126 = arith.constant 0 : index
    %c0_127 = arith.constant 0 : index
    %c0_128 = arith.constant 0 : index
    %372 = vector.load %arg9[%c0_126, %c0_127, %c0_128] : memref<2x8x256xf32, #tpu.memory_space<vmem>>, vector<2x8x256xf32>
    tpu.vector_store %arg9[%c0_126, %c0_127, %c0_128], %371 {strides = array<i32>} : memref<2x8x256xf32, #tpu.memory_space<vmem>>, vector<2x8x256xf32>,
    return
  }
  func.func @transform_0(%arg0: i32) -> (i32, i32, i32) {
    %c0_i32 = arith.constant 0 : i32
    %c0_i32_0 = arith.constant 0 : i32
    %c0_i32_1 = arith.constant 0 : i32
    return %arg0, %c0_i32, %c0_i32_0 : i32, i32, i32
  }
  func.func @transform_1(%arg0: i32) -> (i32, i32, i32) {
    %c0_i32 = arith.constant 0 : i32
    %c0_i32_0 = arith.constant 0 : i32
    %c0_i32_1 = arith.constant 0 : i32
    return %arg0, %c0_i32, %c0_i32_0 : i32, i32, i32
  }
  func.func @transform_2(%arg0: i32) -> (i32, i32, i32) {
    %c0_i32 = arith.constant 0 : i32
    %c0_i32_0 = arith.constant 0 : i32
    %c0_i32_1 = arith.constant 0 : i32
    return %arg0, %c0_i32, %c0_i32_0 : i32, i32, i32
  }
  func.func @transform_3(%arg0: i32) -> (i32, i32, i32) {
    %c0_i32 = arith.constant 0 : i32
    %c0_i32_0 = arith.constant 0 : i32
    %c0_i32_1 = arith.constant 0 : i32
    return %arg0, %c0_i32, %c0_i32_0 : i32, i32, i32
  }
  func.func @transform_4(%arg0: i32) -> (i32, i32) {
    %c0_i32 = arith.constant 0 : i32
    %c0_i32_0 = arith.constant 0 : i32
    %c0_i32_1 = arith.constant 0 : i32
    return %c0_i32, %c0_i32_0 : i32, i32
  }
  func.func @transform_5(%arg0: i32) -> (i32, i32) {
    %c0_i32 = arith.constant 0 : i32
    %c0_i32_0 = arith.constant 0 : i32
    %c0_i32_1 = arith.constant 0 : i32
    return %c0_i32, %c0_i32_0 : i32, i32
  }
  func.func @transform_6(%arg0: i32) -> (i32, i32) {
    %c0_i32 = arith.constant 0 : i32
    %c0_i32_0 = arith.constant 0 : i32
    %c0_i32_1 = arith.constant 0 : i32
    return %c0_i32, %c0_i32_0 : i32, i32
  }
  func.func @transform_7(%arg0: i32) -> (i32, i32) {
    %c0_i32 = arith.constant 0 : i32
    %c0_i32_0 = arith.constant 0 : i32
    %c0_i32_1 = arith.constant 0 : i32
    return %c0_i32, %c0_i32_0 : i32, i32
  }
  func.func @transform_8(%arg0: i32) -> (i32, i32, i32) {
    %c0_i32 = arith.constant 0 : i32
    %c0_i32_0 = arith.constant 0 : i32
    %c0_i32_1 = arith.constant 0 : i32
    return %arg0, %c0_i32, %c0_i32_0 : i32, i32, i32
  }
}

</mosaic_0001>

<llo_original>
// kernel: multi_head_attention.1
$region0: #{multi_head_attention.1}
  #allocation0 [shape = 'u32[]', space=smem, size = 0x4, offset = 0x4, fixed_abs, tag = 'smem constant byte address 0x4 - core index']
  #allocation1 [shape = 'u32[144,128]{1,0:T(1,128)}', space=vmem, size = 0x12000, scoped, tag = 'internal scratch']
  %s0 = inlined_call_operand.vmem [shape: s32[4,8,8], index: 0, kind: input, shape index: {}]
  %s1 = inlined_call_operand.hbm [shape: f32[4,8,256], index: 1, kind: input, shape index: {}]
  %s2 = inlined_call_operand.hbm [shape: f32[4,8,256], index: 2, kind: input, shape index: {}]
  %s3 = inlined_call_operand.hbm [shape: f32[4,8,256], index: 3, kind: input, shape index: {}]
  %s4 = inlined_call_operand.hbm [shape: bf16[256,512], index: 4, kind: input, shape index: {}]
  %s5 = inlined_call_operand.hbm [shape: bf16[256,512], index: 5, kind: input, shape index: {}]
  %s6 = inlined_call_operand.hbm [shape: bf16[256,512], index: 6, kind: input, shape index: {}]
  %s7 = inlined_call_operand.hbm [shape: bf16[512,256], index: 7, kind: input, shape index: {}]
  %s8 = inlined_call_operand.hbm [shape: f32[4,8,256], index: 8, kind: output, shape index: {}]
  %s9 = sld [smem:[#allocation0]]
  $region93: #{multi_head_attention.1} parent=0
    _
  %s11 = ssub.s32 1, %s9
  %s12 = scalar_select 0, %s11, %s9
  $region1: #{multi_head_attention.1} parent=0
    #allocation2 [shape = 'u8[32768]{0}', space=vmem, size = 0x8000, scoped, tag = 'input window, operand 1']
    #allocation3 [shape = 's32[2]{0}', space=sflag, size = 0x8, scoped, tag = 'scoped memory for multi_head_attention.1']
    #allocation4 [shape = 's32[2]{0}', space=sflag, size = 0x8, scoped, tag = 'scoped memory for multi_head_attention.1']
    #allocation5 [shape = 'u8[32768]{0}', space=vmem, size = 0x8000, scoped, tag = 'input window, operand 2']
    #allocation6 [shape = 's32[2]{0}', space=sflag, size = 0x8, scoped, tag = 'scoped memory for multi_head_attention.1']
    #allocation7 [shape = 'u8[32768]{0}', space=vmem, size = 0x8000, scoped, tag = 'input window, operand 3']
    #allocation8 [shape = 'u8[262144]{0}', space=vmem, size = 0x40000, scoped, tag = 'input window, operand 4, single buffered']
    #allocation9 [shape = 's32[1]{0}', space=sflag, size = 0x4, scoped, tag = 'scoped memory for multi_head_attention.1']
    #allocation10 [shape = 'u8[262144]{0}', space=vmem, size = 0x40000, scoped, tag = 'input window, operand 5, single buffered']
    #allocation11 [shape = 'u8[262144]{0}', space=vmem, size = 0x40000, scoped, tag = 'input window, operand 6, single buffered']
    #allocation12 [shape = 's32[1]{0}', space=sflag, size = 0x4, scoped, tag = 'scoped memory for multi_head_attention.1']
    #allocation13 [shape = 'u8[262144]{0}', space=vmem, size = 0x40000, scoped, tag = 'input window, operand 7, single buffered']
    #allocation14 [shape = 'u8[32768]{0}', space=vmem, size = 0x8000, scoped, tag = 'output window, operand 0']
    %13 = vsyncpa [#allocation3], 0
    %s14 = scalar_lea.sflag [#allocation3], 1
    %15 = vsyncpa %s14, 0
    %16 = vsyncpa [#allocation6], 0
    %s17 = scalar_lea.sflag [#allocation6], 1
    %18 = vsyncpa %s17, 0
    %19 = vsyncpa [#allocation9], 0
    %20 = vsyncpa [#allocation12], 0
    %21 = vsyncpa [#allocation4], 0
    %s22 = scalar_lea.sflag [#allocation4], 1
    %23 = vsyncpa %s22, 0
    loop: start=0, step=1, limit=4
    $region2: #{multi_head_attention.1} parent=1 // loop_pre_header
      _
    $region3: #{multi_head_attention.1} parent=1 // loop_header
      %s25 = sphi 0, %s29
      %p26 = scmp.ge.s32.totalorder %s25, 4
      %s35 = sphi 0, %s37
      %s38 = sphi 0, %s35
      %s39 = sphi 0, %s38
      %s55 = sphi 0, %s39
      %s61 = sphi 0, %s63
      %s64 = sphi 0, %s61
      %s65 = sphi 0, %s64
      %s81 = sphi 0, %s65
      %s87 = sphi 0, %s89
      %s90 = sphi 0, %s87
      %s91 = sphi 0, %s90
      %s107 = sphi 0, %s91
      %s113 = sphi 0, %s115
      %s116 = sphi 0, %s113
      %s117 = sphi 0, %s116
      %s133 = sphi 0, %s117
      %s137 = sphi 0, %s137
      %s139 = sphi 0, %s137
      %s140 = sphi 0, %s139
      %s154 = sphi 0, %s140
      %s158 = sphi 0, %s158
      %s160 = sphi 0, %s158
      %s161 = sphi 0, %s160
      %s175 = sphi 0, %s161
      %s179 = sphi 0, %s179
      %s181 = sphi 0, %s179
      %s182 = sphi 0, %s181
      %s196 = sphi 0, %s182
      %s200 = sphi 0, %s200
      %s202 = sphi 0, %s200
      %s203 = sphi 0, %s202
      %s217 = sphi 0, %s203
      %s223 = sphi 0, %s225
      %s226 = sphi 0, %s223
      %s227 = sphi 0, %s226
      %s243 = sphi 0, %s227
    $region4: #{multi_head_attention.1} parent=1 // loop_header_branch
      %28 = sbr.rel (%p26) target = $region8
    $region5: #{multi_head_attention.1} parent=1 // loop_body
      %s30 = ssub.s32 %s25, 1
      %s31 = ssub.s32 %s25, 2
      %s32 = sadd.s32 %s25, 1
      %s33 = ssub.s32 %s25, %s32
      %p34 = scmp.eq.s32.totalorder %s33, 0
      %s36 = sadd.s32 %s35, 1
      %s37 = scalar_select %p34, %s35, %s36
      %p40 = pneg %p34
      %p41 = scmp.eq.s32.totalorder %s25, 1
      %p42 = por %p40, %p41
      %p43 = scmp.ne.s32.totalorder %s35, %s38
      %p44 = scmp.eq.s32.totalorder %s25, 0
      %p45 = por %p43, %p44
      %p46 = scmp.ne.s32.totalorder %s35, %s38
      %p47 = scmp.eq.s32.totalorder %s30, 1
      %p48 = por %p46, %p47
      %p49 = scmp.ne.s32.totalorder %s38, %s39
      %p50 = scmp.eq.s32.totalorder %s30, 0
      %p51 = por %p49, %p50
      %p52 = scmp.ne.s32.totalorder %s38, %s39
      %p53 = scmp.eq.s32.totalorder %s31, 1
      %p54 = por %p52, %p53
      %p56 = scmp.ne.s32.totalorder %s39, %s55
      %p57 = scmp.eq.s32.totalorder %s31, 0
      %p58 = por %p56, %p57
      %s59 = ssub.s32 %s25, %s32
      %p60 = scmp.eq.s32.totalorder %s59, 0
      %s62 = sadd.s32 %s61, 1
      %s63 = scalar_select %p60, %s61, %s62
      %p66 = pneg %p60
      %p67 = scmp.eq.s32.totalorder %s25, 1
      %p68 = por %p66, %p67
      %p69 = scmp.ne.s32.totalorder %s61, %s64
      %p70 = scmp.eq.s32.totalorder %s25, 0
      %p71 = por %p69, %p70
      %p72 = scmp.ne.s32.totalorder %s61, %s64
      %p73 = scmp.eq.s32.totalorder %s30, 1
      %p74 = por %p72, %p73
      %p75 = scmp.ne.s32.totalorder %s64, %s65
      %p76 = scmp.eq.s32.totalorder %s30, 0
      %p77 = por %p75, %p76
      %p78 = scmp.ne.s32.totalorder %s64, %s65
      %p79 = scmp.eq.s32.totalorder %s31, 1
      %p80 = por %p78, %p79
      %p82 = scmp.ne.s32.totalorder %s65, %s81
      %p83 = scmp.eq.s32.totalorder %s31, 0
      %p84 = por %p82, %p83
      %s85 = ssub.s32 %s25, %s32
      %p86 = scmp.eq.s32.totalorder %s85, 0
      %s88 = sadd.s32 %s87, 1
      %s89 = scalar_select %p86, %s87, %s88
      %p92 = pneg %p86
      %p93 = scmp.eq.s32.totalorder %s25, 1
      %p94 = por %p92, %p93
      %p95 = scmp.ne.s32.totalorder %s87, %s90
      %p96 = scmp.eq.s32.totalorder %s25, 0
      %p97 = por %p95, %p96
      %p98 = scmp.ne.s32.totalorder %s87, %s90
      %p99 = scmp.eq.s32.totalorder %s30, 1
      %p100 = por %p98, %p99
      %p101 = scmp.ne.s32.totalorder %s90, %s91
      %p102 = scmp.eq.s32.totalorder %s30, 0
      %p103 = por %p101, %p102
      %p104 = scmp.ne.s32.totalorder %s90, %s91
      %p105 = scmp.eq.s32.totalorder %s31, 1
      %p106 = por %p104, %p105
      %p108 = scmp.ne.s32.totalorder %s91, %s107
      %p109 = scmp.eq.s32.totalorder %s31, 0
      %p110 = por %p108, %p109
      %s111 = ssub.s32 %s25, %s32
      %p112 = scmp.eq.s32.totalorder %s111, 0
      %s114 = sadd.s32 %s113, 1
      %s115 = scalar_select %p112, %s113, %s114
      %p118 = pneg %p112
      %p119 = scmp.eq.s32.totalorder %s25, 1
      %p120 = por %p118, %p119
      %p121 = scmp.ne.s32.totalorder %s113, %s116
      %p122 = scmp.eq.s32.totalorder %s25, 0
      %p123 = por %p121, %p122
      %p124 = scmp.ne.s32.totalorder %s113, %s116
      %p125 = scmp.eq.s32.totalorder %s30, 1
      %p126 = por %p124, %p125
      %p127 = scmp.ne.s32.totalorder %s116, %s117
      %p128 = scmp.eq.s32.totalorder %s30, 0
      %p129 = por %p127, %p128
      %p130 = scmp.ne.s32.totalorder %s116, %s117
      %p131 = scmp.eq.s32.totalorder %s31, 1
      %p132 = por %p130, %p131
      %p134 = scmp.ne.s32.totalorder %s117, %s133
      %p135 = scmp.eq.s32.totalorder %s31, 0
      %p136 = por %p134, %p135
      %s138 = sadd.s32 %s137, 1
      %p141 = scmp.eq.s32.totalorder %s25, 1
      %p142 = scmp.ne.s32.totalorder %s137, %s139
      %p143 = scmp.eq.s32.totalorder %s25, 0
      %p144 = por %p142, %p143
      %p145 = scmp.ne.s32.totalorder %s137, %s139
      %p146 = scmp.eq.s32.totalorder %s30, 1
      %p147 = por %p145, %p146
      %p148 = scmp.ne.s32.totalorder %s139, %s140
      %p149 = scmp.eq.s32.totalorder %s30, 0
      %p150 = por %p148, %p149
      %p151 = scmp.ne.s32.totalorder %s139, %s140
      %p152 = scmp.eq.s32.totalorder %s31, 1
      %p153 = por %p151, %p152
      %p155 = scmp.ne.s32.totalorder %s140, %s154
      %p156 = scmp.eq.s32.totalorder %s31, 0
      %p157 = por %p155, %p156
      %s159 = sadd.s32 %s158, 1
      %p162 = scmp.eq.s32.totalorder %s25, 1
      %p163 = scmp.ne.s32.totalorder %s158, %s160
      %p164 = scmp.eq.s32.totalorder %s25, 0
      %p165 = por %p163, %p164
      %p166 = scmp.ne.s32.totalorder %s158, %s160
      %p167 = scmp.eq.s32.totalorder %s30, 1
      %p168 = por %p166, %p167
      %p169 = scmp.ne.s32.totalorder %s160, %s161
      %p170 = scmp.eq.s32.totalorder %s30, 0
      %p171 = por %p169, %p170
      %p172 = scmp.ne.s32.totalorder %s160, %s161
      %p173 = scmp.eq.s32.totalorder %s31, 1
      %p174 = por %p172, %p173
      %p176 = scmp.ne.s32.totalorder %s161, %s175
      %p177 = scmp.eq.s32.totalorder %s31, 0
      %p178 = por %p176, %p177
      %s180 = sadd.s32 %s179, 1
      %p183 = scmp.eq.s32.totalorder %s25, 1
      %p184 = scmp.ne.s32.totalorder %s179, %s181
      %p185 = scmp.eq.s32.totalorder %s25, 0
      %p186 = por %p184, %p185
      %p187 = scmp.ne.s32.totalorder %s179, %s181
      %p188 = scmp.eq.s32.totalorder %s30, 1
      %p189 = por %p187, %p188
      %p190 = scmp.ne.s32.totalorder %s181, %s182
      %p191 = scmp.eq.s32.totalorder %s30, 0
      %p192 = por %p190, %p191
      %p193 = scmp.ne.s32.totalorder %s181, %s182
      %p194 = scmp.eq.s32.totalorder %s31, 1
      %p195 = por %p193, %p194
      %p197 = scmp.ne.s32.totalorder %s182, %s196
      %p198 = scmp.eq.s32.totalorder %s31, 0
      %p199 = por %p197, %p198
      %s201 = sadd.s32 %s200, 1
      %p204 = scmp.eq.s32.totalorder %s25, 1
      %p205 = scmp.ne.s32.totalorder %s200, %s202
      %p206 = scmp.eq.s32.totalorder %s25, 0
      %p207 = por %p205, %p206
      %p208 = scmp.ne.s32.totalorder %s200, %s202
      %p209 = scmp.eq.s32.totalorder %s30, 1
      %p210 = por %p208, %p209
      %p211 = scmp.ne.s32.totalorder %s202, %s203
      %p212 = scmp.eq.s32.totalorder %s30, 0
      %p213 = por %p211, %p212
      %p214 = scmp.ne.s32.totalorder %s202, %s203
      %p215 = scmp.eq.s32.totalorder %s31, 1
      %p216 = por %p214, %p215
      %p218 = scmp.ne.s32.totalorder %s203, %s217
      %p219 = scmp.eq.s32.totalorder %s31, 0
      %p220 = por %p218, %p219
      %s221 = ssub.s32 %s25, %s32
      %p222 = scmp.eq.s32.totalorder %s221, 0
      %s224 = sadd.s32 %s223, 1
      %s225 = scalar_select %p222, %s223, %s224
      %p228 = pneg %p222
      %p229 = scmp.eq.s32.totalorder %s25, 1
      %p230 = por %p228, %p229
      %p231 = scmp.ne.s32.totalorder %s223, %s226
      %p232 = scmp.eq.s32.totalorder %s25, 0
      %p233 = por %p231, %p232
      %p234 = scmp.ne.s32.totalorder %s223, %s226
      %p235 = scmp.eq.s32.totalorder %s30, 1
      %p236 = por %p234, %p235
      %p237 = scmp.ne.s32.totalorder %s226, %s227
      %p238 = scmp.eq.s32.totalorder %s30, 0
      %p239 = por %p237, %p238
      %p240 = scmp.ne.s32.totalorder %s226, %s227
      %p241 = scmp.eq.s32.totalorder %s31, 1
      %p242 = por %p240, %p241
      %p244 = scmp.ne.s32.totalorder %s227, %s243
      %p245 = scmp.eq.s32.totalorder %s31, 0
      %p246 = por %p244, %p245
      %p247 = scmp.le.s32.totalorder 1, %s25
      %p248 = scmp.lt.s32.totalorder %s25, 3
      %p249 = pnand %p247, %p248
      %p250 = pneg %p249
      // Predicated region
      $region9: #{multi_head_attention.1} parent=5 // pred_check
        _
      $region10: #{multi_head_attention.1} parent=5 // pred_check_branch
        %252 = sbr.rel (%p249) target = $region12
      $region11: #{multi_head_attention.1} parent=5 // pred_region
        %s253 = ssub.s32 %s25, 1
        // Predicated region
        $region13: #{multi_head_attention.1} parent=11 // pred_check
          %p254 = pneg %p150
        $region14: #{multi_head_attention.1} parent=11 // pred_check_branch
          %256 = sbr.rel (%p254) target = $region16
        $region15: #{multi_head_attention.1} parent=11 // pred_region
          %s258 = ssub.s32 8192, 8192
          %259 = vsyncadd [#allocation9], %s258
          %s260 = sshll.u32 [#allocation8], 4
          %s261 = int_to_ptr.vmem [resolvable:$true] %s260
          %266 = dma.hbm_to_vmem [thread:$0]  %s4, 8192, %s261, [#allocation9], 256, 256, 16
        $region16: #{multi_head_attention.1} parent=11 // pred_fallthru
          _
        // Predicated region
        $region17: #{multi_head_attention.1} parent=11 // pred_check
          %p267 = pneg %p171
        $region18: #{multi_head_attention.1} parent=11 // pred_check_branch
          %269 = sbr.rel (%p267) target = $region20
        $region19: #{multi_head_attention.1} parent=11 // pred_region
          %s271 = ssub.s32 8192, 8192
          %272 = vsyncadd [#allocation9], %s271
          %s273 = sshll.u32 [#allocation10], 4
          %s274 = int_to_ptr.vmem [resolvable:$true] %s273
          %279 = dma.hbm_to_vmem [thread:$0]  %s5, 8192, %s274, [#allocation9], 256, 256, 16
        $region20: #{multi_head_attention.1} parent=11 // pred_fallthru
          _
        // Predicated region
        $region21: #{multi_head_attention.1} parent=11 // pred_check
          %p280 = pneg %p192
        $region22: #{multi_head_attention.1} parent=11 // pred_check_branch
          %282 = sbr.rel (%p280) target = $region24
        $region23: #{multi_head_attention.1} parent=11 // pred_region
          %s284 = ssub.s32 8192, 8192
          %285 = vsyncadd [#allocation12], %s284
          %s286 = sshll.u32 [#allocation11], 4
          %s287 = int_to_ptr.vmem [resolvable:$true] %s286
          %292 = dma.hbm_to_vmem [thread:$0]  %s6, 8192, %s287, [#allocation12], 256, 256, 16
        $region24: #{multi_head_attention.1} parent=11 // pred_fallthru
          _
        // Predicated region
        $region25: #{multi_head_attention.1} parent=11 // pred_check
          %p293 = pneg %p213
        $region26: #{multi_head_attention.1} parent=11 // pred_check_branch
          %295 = sbr.rel (%p293) target = $region28
        $region27: #{multi_head_attention.1} parent=11 // pred_region
          %s297 = ssub.s32 8192, 8192
          %298 = vsyncadd [#allocation12], %s297
          %s299 = sshll.u32 [#allocation13], 4
          %s300 = int_to_ptr.vmem [resolvable:$true] %s299
          %305 = dma.hbm_to_vmem [thread:$0]  %s7, 8192, %s300, [#allocation12], 128, 128, 8
        $region28: #{multi_head_attention.1} parent=11 // pred_fallthru
          _
      $region12: #{multi_head_attention.1} parent=5 // pred_fallthru
        _
      %p306 = scmp.lt.s32.totalorder %s25, 2
      // Predicated region
      $region29: #{multi_head_attention.1} parent=5 // pred_check
        %p307 = pneg %p306
      $region30: #{multi_head_attention.1} parent=5 // pred_check_branch
        %309 = sbr.rel (%p307) target = $region32
      $region31: #{multi_head_attention.1} parent=5 // pred_region
        // Predicated region
        $region33: #{multi_head_attention.1} parent=31 // pred_check
          %p310 = pneg %p45
        $region34: #{multi_head_attention.1} parent=31 // pred_check_branch
          %312 = sbr.rel (%p310) target = $region36
        $region35: #{multi_head_attention.1} parent=31 // pred_region
          %s313 = smul.u32 2, %s25
          %p314 = scmp.lt.s32.totalorder %s313, 3
          %s315 = scalar_select %p314, %s313, 3
          %s316 = smul.addr %s315, 8
          %s317 = scalar_lea.vmem %s0, %s316
          %s318 = smul.u32 2, %s25
        $region36: #{multi_head_attention.1} parent=31 // pred_fallthru
          _
        // Predicated region
        $region37: #{multi_head_attention.1} parent=31 // pred_check
          %p319 = pneg %p71
        $region38: #{multi_head_attention.1} parent=31 // pred_check_branch
          %321 = sbr.rel (%p319) target = $region40
        $region39: #{multi_head_attention.1} parent=31 // pred_region
          %s322 = sand.u32 %s61, 1
          %s323 = scalar_lea.sflag [#allocation3], %s322
          %s324 = sand.u32 %s61, 1
          %s325 = smul.addr %s324, 32
          %s326 = scalar_lea.vmem [#allocation2], %s325
          %s327 = smul.u32 2, %s25
          %s329 = ssub.s32 512, 512
          %330 = vsyncadd %s323, %s329
          %s331 = smul.addr %s327, 2
          %s332 = smul.addr %s331, 128
          %s333 = scalar_lea.hbm %s1, %s332
          %s334 = sshll.u32 %s326, 4
          %s335 = int_to_ptr.vmem [resolvable:$true] %s334
          %340 = dma.hbm_to_vmem [thread:$0]  %s333, 512, %s335, %s323, 256, 256, 16
        $region40: #{multi_head_attention.1} parent=31 // pred_fallthru
          _
        // Predicated region
        $region41: #{multi_head_attention.1} parent=31 // pred_check
          %p341 = pneg %p97
        $region42: #{multi_head_attention.1} parent=31 // pred_check_branch
          %343 = sbr.rel (%p341) target = $region44
        $region43: #{multi_head_attention.1} parent=31 // pred_region
          %s344 = sand.u32 %s25, 1
          %s345 = scalar_lea.sflag [#allocation6], %s344
          %s346 = sand.u32 %s87, 1
          %s347 = smul.addr %s346, 32
          %s348 = scalar_lea.vmem [#allocation5], %s347
          %s349 = smul.u32 2, %s25
          %s351 = ssub.s32 512, 512
          %352 = vsyncadd %s345, %s351
          %s353 = smul.addr %s349, 2
          %s354 = smul.addr %s353, 128
          %s355 = scalar_lea.hbm %s2, %s354
          %s356 = sshll.u32 %s348, 4
          %s357 = int_to_ptr.vmem [resolvable:$true] %s356
          %362 = dma.hbm_to_vmem [thread:$0]  %s355, 512, %s357, %s345, 256, 256, 16
        $region44: #{multi_head_attention.1} parent=31 // pred_fallthru
          _
        // Predicated region
        $region45: #{multi_head_attention.1} parent=31 // pred_check
          %p363 = pneg %p123
        $region46: #{multi_head_attention.1} parent=31 // pred_check_branch
          %365 = sbr.rel (%p363) target = $region48
        $region47: #{multi_head_attention.1} parent=31 // pred_region
          %s366 = sand.u32 %s25, 1
          %s367 = scalar_lea.sflag [#allocation6], %s366
          %s368 = sand.u32 %s113, 1
          %s369 = smul.addr %s368, 32
          %s370 = scalar_lea.vmem [#allocation7], %s369
          %s371 = smul.u32 2, %s25
          %s373 = ssub.s32 512, 512
          %374 = vsyncadd %s367, %s373
          %s375 = smul.addr %s371, 2
          %s376 = smul.addr %s375, 128
          %s377 = scalar_lea.hbm %s3, %s376
          %s378 = sshll.u32 %s370, 4
          %s379 = int_to_ptr.vmem [resolvable:$true] %s378
          %384 = dma.hbm_to_vmem [thread:$0]  %s377, 512, %s379, %s367, 256, 256, 16
        $region48: #{multi_head_attention.1} parent=31 // pred_fallthru
          _
      $region32: #{multi_head_attention.1} parent=5 // pred_fallthru
        _
      %p385 = scmp.le.s32.totalorder 1, %s25
      %p386 = scmp.lt.s32.totalorder %s25, 3
      %p387 = pnand %p385, %p386
      %p388 = pneg %p387
      // Predicated region
      $region49: #{multi_head_attention.1} parent=5 // pred_check
        _
      $region50: #{multi_head_attention.1} parent=5 // pred_check_branch
        %390 = sbr.rel (%p387) target = $region52
      $region51: #{multi_head_attention.1} parent=5 // pred_region
        %s391 = ssub.s32 %s25, 1
        %s392 = sand.u32 %s64, 1
        %s393 = scalar_lea.sflag [#allocation3], %s392
        %s394 = sand.u32 %s64, 1
        %s395 = smul.addr %s394, 32
        %s396 = scalar_lea.vmem [#allocation2], %s395
        // Predicated region
        $region53: #{multi_head_attention.1} parent=51 // pred_check
          %p397 = pneg %p77
        $region54: #{multi_head_attention.1} parent=51 // pred_check_branch
          %399 = sbr.rel (%p397) target = $region56
        $region55: #{multi_head_attention.1} parent=51 // pred_region
          %400 = dma.done %s393, 512
        $region56: #{multi_head_attention.1} parent=51 // pred_fallthru
          _
        %s401 = sand.u32 %s30, 1
        %s402 = scalar_lea.sflag [#allocation6], %s401
        %s403 = sand.u32 %s90, 1
        %s404 = smul.addr %s403, 32
        %s405 = scalar_lea.vmem [#allocation5], %s404
        // Predicated region
        $region57: #{multi_head_attention.1} parent=51 // pred_check
          %p406 = pneg %p103
        $region58: #{multi_head_attention.1} parent=51 // pred_check_branch
          %408 = sbr.rel (%p406) target = $region60
        $region59: #{multi_head_attention.1} parent=51 // pred_region
          %409 = dma.done %s402, 512
        $region60: #{multi_head_attention.1} parent=51 // pred_fallthru
          _
        %s410 = sand.u32 %s30, 1
        %s411 = scalar_lea.sflag [#allocation6], %s410
        %s412 = sand.u32 %s116, 1
        %s413 = smul.addr %s412, 32
        %s414 = scalar_lea.vmem [#allocation7], %s413
        // Predicated region
        $region61: #{multi_head_attention.1} parent=51 // pred_check
          %p415 = pneg %p129
        $region62: #{multi_head_attention.1} parent=51 // pred_check_branch
          %417 = sbr.rel (%p415) target = $region64
        $region63: #{multi_head_attention.1} parent=51 // pred_region
          %418 = dma.done %s411, 512
        $region64: #{multi_head_attention.1} parent=51 // pred_fallthru
          _
        // Predicated region
        $region65: #{multi_head_attention.1} parent=51 // pred_check
          %p419 = pneg %p150
        $region66: #{multi_head_attention.1} parent=51 // pred_check_branch
          %421 = sbr.rel (%p419) target = $region68
        $region67: #{multi_head_attention.1} parent=51 // pred_region
          %422 = dma.done [#allocation9], 8192
        $region68: #{multi_head_attention.1} parent=51 // pred_fallthru
          _
        // Predicated region
        $region69: #{multi_head_attention.1} parent=51 // pred_check
          %p423 = pneg %p171
        $region70: #{multi_head_attention.1} parent=51 // pred_check_branch
          %425 = sbr.rel (%p423) target = $region72
        $region71: #{multi_head_attention.1} parent=51 // pred_region
          %426 = dma.done [#allocation9], 8192
        $region72: #{multi_head_attention.1} parent=51 // pred_fallthru
          _
        // Predicated region
        $region73: #{multi_head_attention.1} parent=51 // pred_check
          %p427 = pneg %p192
        $region74: #{multi_head_attention.1} parent=51 // pred_check_branch
          %429 = sbr.rel (%p427) target = $region76
        $region75: #{multi_head_attention.1} parent=51 // pred_region
          %430 = dma.done [#allocation12], 8192
        $region76: #{multi_head_attention.1} parent=51 // pred_fallthru
          _
        // Predicated region
        $region77: #{multi_head_attention.1} parent=51 // pred_check
          %p431 = pneg %p213
        $region78: #{multi_head_attention.1} parent=51 // pred_check_branch
          %433 = sbr.rel (%p431) target = $region80
        $region79: #{multi_head_attention.1} parent=51 // pred_region
          %434 = dma.done [#allocation12], 8192
        $region80: #{multi_head_attention.1} parent=51 // pred_fallthru
          _
        %s435 = smul.u32 2, %s30
        %p436 = scmp.lt.s32.totalorder %s435, 3
        %s437 = scalar_select %p436, %s435, 3
        %s438 = smul.addr %s437, 8
        %s439 = scalar_lea.vmem %s0, %s438
        %p440 = pneg %p51
        %p441 = pneg %p48
        %s442 = sand.u32 %s64, 1
        %s443 = scalar_lea.sflag [#allocation3], %s442
        %s444 = sand.u32 %s64, 1
        %s445 = smul.addr %s444, 32
        %s446 = scalar_lea.vmem [#allocation2], %s445
        %p447 = pneg %p77
        %p448 = pneg %p74
        %s449 = sand.u32 %s30, 1
        %s450 = scalar_lea.sflag [#allocation6], %s449
        %s451 = sand.u32 %s90, 1
        %s452 = smul.addr %s451, 32
        %s453 = scalar_lea.vmem [#allocation5], %s452
        %p454 = pneg %p103
        %p455 = pneg %p100
        %s456 = sand.u32 %s30, 1
        %s457 = scalar_lea.sflag [#allocation6], %s456
        %s458 = sand.u32 %s116, 1
        %s459 = smul.addr %s458, 32
        %s460 = scalar_lea.vmem [#allocation7], %s459
        %p461 = pneg %p129
        %p462 = pneg %p126
        %p463 = pneg %p150
        %p464 = pneg %p147
        %p465 = pneg %p171
        %p466 = pneg %p168
        %p467 = pneg %p192
        %p468 = pneg %p189
        %p469 = pneg %p213
        %p470 = pneg %p210
        %p471 = pneg %p239
        %p472 = pneg %p236
        %s473 = sand.u32 %s226, 1
        %s474 = scalar_lea.sflag [#allocation4], %s473
        %s475 = sand.u32 %s226, 1
        %s476 = smul.addr %s475, 32
        %s477 = scalar_lea.vmem [#allocation14], %s476
        %s478 = smul.u32 2, %s30
        %p479 = scmp.lt.s32.totalorder %s478, 3
        %s480 = scalar_select %p479, %s478, 3
        %s481 = smul.addr %s480, 8
        %s482 = scalar_lea.vmem %s0, %s481
        %s483 = smul.u32 2, %s30
        %s484 = smul.u32 2, %s30
        %s485 = smul.u32 2, %s30
        %s486 = smul.u32 2, %s30
        %s487 = smul.u32 2, %s30
        %v489 = vld [vmem:[%s396] sm:$0xff]
        %v490 = vld [vmem:[%s396 + $0x8] sm:$0xff]
        %v491 = vld [vmem:[%s396 + $0x10] sm:$0xff]
        %v492 = vld [vmem:[%s396 + $0x18] sm:$0xff]
        %v493 = vpack.c.bf16 %v491, %v489
        %v494 = vpack.c.bf16 %v492, %v490
        %v495 = vld [vmem:[%s405] sm:$0xff]
        %v496 = vld [vmem:[%s405 + $0x8] sm:$0xff]
        %v497 = vld [vmem:[%s405 + $0x10] sm:$0xff]
        %v498 = vld [vmem:[%s405 + $0x18] sm:$0xff]
        %v499 = vpack.c.bf16 %v497, %v495
        %v500 = vpack.c.bf16 %v498, %v496
        %v501 = vld [vmem:[%s414] sm:$0xff]
        %v502 = vld [vmem:[%s414 + $0x8] sm:$0xff]
        %v503 = vld [vmem:[%s414 + $0x10] sm:$0xff]
        %v504 = vld [vmem:[%s414 + $0x18] sm:$0xff]
        %v505 = vpack.c.bf16 %v503, %v501
        %v506 = vpack.c.bf16 %v504, %v502
        %v507 = vld [vmem:[#allocation8] sm:$0xff]
        %v508 = vld [vmem:[#allocation8 + $0x8] sm:$0xff]
        %v509 = vld [vmem:[#allocation8 + $0x10] sm:$0xff]
        %v510 = vld [vmem:[#allocation8 + $0x18] sm:$0xff]
        %v511 = vld [vmem:[#allocation8 + $0x20] sm:$0xff]
        %v512 = vld [vmem:[#allocation8 + $0x28] sm:$0xff]
        %v513 = vld [vmem:[#allocation8 + $0x30] sm:$0xff]
        %v514 = vld [vmem:[#allocation8 + $0x38] sm:$0xff]
        %v515 = vld [vmem:[#allocation8 + $0x40] sm:$0xff]
        %v516 = vld [vmem:[#allocation8 + $0x48] sm:$0xff]
        %v517 = vld [vmem:[#allocation8 + $0x50] sm:$0xff]
        %v518 = vld [vmem:[#allocation8 + $0x58] sm:$0xff]
        %v519 = vld [vmem:[#allocation8 + $0x60] sm:$0xff]
        %v520 = vld [vmem:[#allocation8 + $0x68] sm:$0xff]
        %v521 = vld [vmem:[#allocation8 + $0x70] sm:$0xff]
        %v522 = vld [vmem:[#allocation8 + $0x78] sm:$0xff]
        %v523 = vld [vmem:[#allocation8 + $0x80] sm:$0xff]
        %v524 = vld [vmem:[#allocation8 + $0x88] sm:$0xff]
        %v525 = vld [vmem:[#allocation8 + $0x90] sm:$0xff]
        %v526 = vld [vmem:[#allocation8 + $0x98] sm:$0xff]
        %v527 = vld [vmem:[#allocation8 + $0xa0] sm:$0xff]
        %v528 = vld [vmem:[#allocation8 + $0xa8] sm:$0xff]
        %v529 = vld [vmem:[#allocation8 + $0xb0] sm:$0xff]
        %v530 = vld [vmem:[#allocation8 + $0xb8] sm:$0xff]
        %v531 = vld [vmem:[#allocation8 + $0xc0] sm:$0xff]
        %v532 = vld [vmem:[#allocation8 + $0xc8] sm:$0xff]
        %v533 = vld [vmem:[#allocation8 + $0xd0] sm:$0xff]
        %v534 = vld [vmem:[#allocation8 + $0xd8] sm:$0xff]
        %v535 = vld [vmem:[#allocation8 + $0xe0] sm:$0xff]
        %v536 = vld [vmem:[#allocation8 + $0xe8] sm:$0xff]
        %v537 = vld [vmem:[#allocation8 + $0xf0] sm:$0xff]
        %v538 = vld [vmem:[#allocation8 + $0xf8] sm:$0xff]
        %v539 = vld [vmem:[#allocation8 + $0x100] sm:$0xff]
        %v540 = vld [vmem:[#allocation8 + $0x108] sm:$0xff]
        %v541 = vld [vmem:[#allocation8 + $0x110] sm:$0xff]
        %v542 = vld [vmem:[#allocation8 + $0x118] sm:$0xff]
        %v543 = vld [vmem:[#allocation8 + $0x120] sm:$0xff]
        %v544 = vld [vmem:[#allocation8 + $0x128] sm:$0xff]
        %v545 = vld [vmem:[#allocation8 + $0x130] sm:$0xff]
        %v546 = vld [vmem:[#allocation8 + $0x138] sm:$0xff]
        %v547 = vld [vmem:[#allocation8 + $0x140] sm:$0xff]
        %v548 = vld [vmem:[#allocation8 + $0x148] sm:$0xff]
        %v549 = vld [vmem:[#allocation8 + $0x150] sm:$0xff]
        %v550 = vld [vmem:[#allocation8 + $0x158] sm:$0xff]
        %v551 = vld [vmem:[#allocation8 + $0x160] sm:$0xff]
        %v552 = vld [vmem:[#allocation8 + $0x168] sm:$0xff]
        %v553 = vld [vmem:[#allocation8 + $0x170] sm:$0xff]
        %v554 = vld [vmem:[#allocation8 + $0x178] sm:$0xff]
        %v555 = vld [vmem:[#allocation8 + $0x180] sm:$0xff]
        %v556 = vld [vmem:[#allocation8 + $0x188] sm:$0xff]
        %v557 = vld [vmem:[#allocation8 + $0x190] sm:$0xff]
        %v558 = vld [vmem:[#allocation8 + $0x198] sm:$0xff]
        %v559 = vld [vmem:[#allocation8 + $0x1a0] sm:$0xff]
        %v560 = vld [vmem:[#allocation8 + $0x1a8] sm:$0xff]
        %v561 = vld [vmem:[#allocation8 + $0x1b0] sm:$0xff]
        %v562 = vld [vmem:[#allocation8 + $0x1b8] sm:$0xff]
        %v563 = vld [vmem:[#allocation8 + $0x1c0] sm:$0xff]
        %v564 = vld [vmem:[#allocation8 + $0x1c8] sm:$0xff]
        %v565 = vld [vmem:[#allocation8 + $0x1d0] sm:$0xff]
        %v566 = vld [vmem:[#allocation8 + $0x1d8] sm:$0xff]
        %v567 = vld [vmem:[#allocation8 + $0x1e0] sm:$0xff]
        %v568 = vld [vmem:[#allocation8 + $0x1e8] sm:$0xff]
        %v569 = vld [vmem:[#allocation8 + $0x1f0] sm:$0xff]
        %v570 = vld [vmem:[#allocation8 + $0x1f8] sm:$0xff]
        %v635 = vunpack.c.l.b16 %v507
        %v636 = vunpack.c.h.b16 %v507
        %v637 = vunpack.c.l.b16 %v508
        %v638 = vunpack.c.h.b16 %v508
        %v639 = vunpack.c.l.b16 %v509
        %v640 = vunpack.c.h.b16 %v509
        %v641 = vunpack.c.l.b16 %v510
        %v642 = vunpack.c.h.b16 %v510
        %v643 = vunpack.c.l.b16 %v511
        %v644 = vunpack.c.h.b16 %v511
        %v645 = vunpack.c.l.b16 %v512
        %v646 = vunpack.c.h.b16 %v512
        %v647 = vunpack.c.l.b16 %v513
        %v648 = vunpack.c.h.b16 %v513
        %v649 = vunpack.c.l.b16 %v514
        %v650 = vunpack.c.h.b16 %v514
        %v651 = vunpack.c.l.b16 %v515
        %v652 = vunpack.c.h.b16 %v515
        %v653 = vunpack.c.l.b16 %v516
        %v654 = vunpack.c.h.b16 %v516
        %v655 = vunpack.c.l.b16 %v517
        %v656 = vunpack.c.h.b16 %v517
        %v657 = vunpack.c.l.b16 %v518
        %v658 = vunpack.c.h.b16 %v518
        %v659 = vunpack.c.l.b16 %v519
        %v660 = vunpack.c.h.b16 %v519
        %v661 = vunpack.c.l.b16 %v520
        %v662 = vunpack.c.h.b16 %v520
        %v663 = vunpack.c.l.b16 %v521
        %v664 = vunpack.c.h.b16 %v521
        %v665 = vunpack.c.l.b16 %v522
        %v666 = vunpack.c.h.b16 %v522
        %v667 = vunpack.c.l.b16 %v523
        %v668 = vunpack.c.h.b16 %v523
        %v669 = vunpack.c.l.b16 %v524
        %v670 = vunpack.c.h.b16 %v524
        %v671 = vunpack.c.l.b16 %v525
        %v672 = vunpack.c.h.b16 %v525
        %v673 = vunpack.c.l.b16 %v526
        %v674 = vunpack.c.h.b16 %v526
        %v675 = vunpack.c.l.b16 %v527
        %v676 = vunpack.c.h.b16 %v527
        %v677 = vunpack.c.l.b16 %v528
        %v678 = vunpack.c.h.b16 %v528
        %v679 = vunpack.c.l.b16 %v529
        %v680 = vunpack.c.h.b16 %v529
        %v681 = vunpack.c.l.b16 %v530
        %v682 = vunpack.c.h.b16 %v530
        %v683 = vunpack.c.l.b16 %v531
        %v684 = vunpack.c.h.b16 %v531
        %v685 = vunpack.c.l.b16 %v532
        %v686 = vunpack.c.h.b16 %v532
        %v687 = vunpack.c.l.b16 %v533
        %v688 = vunpack.c.h.b16 %v533
        %v689 = vunpack.c.l.b16 %v534
        %v690 = vunpack.c.h.b16 %v534
        %v691 = vunpack.c.l.b16 %v535
        %v692 = vunpack.c.h.b16 %v535
        %v693 = vunpack.c.l.b16 %v536
        %v694 = vunpack.c.h.b16 %v536
        %v695 = vunpack.c.l.b16 %v537
        %v696 = vunpack.c.h.b16 %v537
        %v697 = vunpack.c.l.b16 %v538
        %v698 = vunpack.c.h.b16 %v538
        %v699 = vunpack.c.l.b16 %v539
        %v700 = vunpack.c.h.b16 %v539
        %v701 = vunpack.c.l.b16 %v540
        %v702 = vunpack.c.h.b16 %v540
        %v703 = vunpack.c.l.b16 %v541
        %v704 = vunpack.c.h.b16 %v541
        %v705 = vunpack.c.l.b16 %v542
        %v706 = vunpack.c.h.b16 %v542
        %v707 = vunpack.c.l.b16 %v543
        %v708 = vunpack.c.h.b16 %v543
        %v709 = vunpack.c.l.b16 %v544
        %v710 = vunpack.c.h.b16 %v544
        %v711 = vunpack.c.l.b16 %v545
        %v712 = vunpack.c.h.b16 %v545
        %v713 = vunpack.c.l.b16 %v546
        %v714 = vunpack.c.h.b16 %v546
        %v715 = vunpack.c.l.b16 %v547
        %v716 = vunpack.c.h.b16 %v547
        %v717 = vunpack.c.l.b16 %v548
        %v718 = vunpack.c.h.b16 %v548
        %v719 = vunpack.c.l.b16 %v549
        %v720 = vunpack.c.h.b16 %v549
        %v721 = vunpack.c.l.b16 %v550
        %v722 = vunpack.c.h.b16 %v550
        %v723 = vunpack.c.l.b16 %v551
        %v724 = vunpack.c.h.b16 %v551
        %v725 = vunpack.c.l.b16 %v552
        %v726 = vunpack.c.h.b16 %v552
        %v727 = vunpack.c.l.b16 %v553
        %v728 = vunpack.c.h.b16 %v553
        %v729 = vunpack.c.l.b16 %v554
        %v730 = vunpack.c.h.b16 %v554
        %v731 = vunpack.c.l.b16 %v555
        %v732 = vunpack.c.h.b16 %v555
        %v733 = vunpack.c.l.b16 %v556
        %v734 = vunpack.c.h.b16 %v556
        %v735 = vunpack.c.l.b16 %v557
        %v736 = vunpack.c.h.b16 %v557
        %v737 = vunpack.c.l.b16 %v558
        %v738 = vunpack.c.h.b16 %v558
        %v739 = vunpack.c.l.b16 %v559
        %v740 = vunpack.c.h.b16 %v559
        %v741 = vunpack.c.l.b16 %v560
        %v742 = vunpack.c.h.b16 %v560
        %v743 = vunpack.c.l.b16 %v561
        %v744 = vunpack.c.h.b16 %v561
        %v745 = vunpack.c.l.b16 %v562
        %v746 = vunpack.c.h.b16 %v562
        %v747 = vunpack.c.l.b16 %v563
        %v748 = vunpack.c.h.b16 %v563
        %v749 = vunpack.c.l.b16 %v564
        %v750 = vunpack.c.h.b16 %v564
        %v751 = vunpack.c.l.b16 %v565
        %v752 = vunpack.c.h.b16 %v565
        %v753 = vunpack.c.l.b16 %v566
        %v754 = vunpack.c.h.b16 %v566
        %v755 = vunpack.c.l.b16 %v567
        %v756 = vunpack.c.h.b16 %v567
        %v757 = vunpack.c.l.b16 %v568
        %v758 = vunpack.c.h.b16 %v568
        %v759 = vunpack.c.l.b16 %v569
        %v760 = vunpack.c.h.b16 %v569
        %v761 = vunpack.c.l.b16 %v570
        %v762 = vunpack.c.h.b16 %v570
        %v763 = vpack.c.b16 %v639, %v635
        %v764 = vpack.c.b16 %v640, %v636
        %v765 = vpack.c.b16 %v641, %v637
        %v766 = vpack.c.b16 %v642, %v638
        %v767 = vpack.c.b16 %v647, %v643
        %v768 = vpack.c.b16 %v648, %v644
        %v769 = vpack.c.b16 %v649, %v645
        %v770 = vpack.c.b16 %v650, %v646
        %v771 = vpack.c.b16 %v655, %v651
        %v772 = vpack.c.b16 %v656, %v652
        %v773 = vpack.c.b16 %v657, %v653
        %v774 = vpack.c.b16 %v658, %v654
        %v775 = vpack.c.b16 %v663, %v659
        %v776 = vpack.c.b16 %v664, %v660
        %v777 = vpack.c.b16 %v665, %v661
        %v778 = vpack.c.b16 %v666, %v662
        %v779 = vpack.c.b16 %v671, %v667
        %v780 = vpack.c.b16 %v672, %v668
        %v781 = vpack.c.b16 %v673, %v669
        %v782 = vpack.c.b16 %v674, %v670
        %v783 = vpack.c.b16 %v679, %v675
        %v784 = vpack.c.b16 %v680, %v676
        %v785 = vpack.c.b16 %v681, %v677
        %v786 = vpack.c.b16 %v682, %v678
        %v787 = vpack.c.b16 %v687, %v683
        %v788 = vpack.c.b16 %v688, %v684
        %v789 = vpack.c.b16 %v689, %v685
        %v790 = vpack.c.b16 %v690, %v686
        %v791 = vpack.c.b16 %v695, %v691
        %v792 = vpack.c.b16 %v696, %v692
        %v793 = vpack.c.b16 %v697, %v693
        %v794 = vpack.c.b16 %v698, %v694
        %v795 = vpack.c.b16 %v703, %v699
        %v796 = vpack.c.b16 %v704, %v700
        %v797 = vpack.c.b16 %v705, %v701
        %v798 = vpack.c.b16 %v706, %v702
        %v799 = vpack.c.b16 %v711, %v707
        %v800 = vpack.c.b16 %v712, %v708
        %v801 = vpack.c.b16 %v713, %v709
        %v802 = vpack.c.b16 %v714, %v710
        %v803 = vpack.c.b16 %v719, %v715
        %v804 = vpack.c.b16 %v720, %v716
        %v805 = vpack.c.b16 %v721, %v717
        %v806 = vpack.c.b16 %v722, %v718
        %v807 = vpack.c.b16 %v727, %v723
        %v808 = vpack.c.b16 %v728, %v724
        %v809 = vpack.c.b16 %v729, %v725
        %v810 = vpack.c.b16 %v730, %v726
        %v811 = vpack.c.b16 %v735, %v731
        %v812 = vpack.c.b16 %v736, %v732
        %v813 = vpack.c.b16 %v737, %v733
        %v814 = vpack.c.b16 %v738, %v734
        %v815 = vpack.c.b16 %v743, %v739
        %v816 = vpack.c.b16 %v744, %v740
        %v817 = vpack.c.b16 %v745, %v741
        %v818 = vpack.c.b16 %v746, %v742
        %v819 = vpack.c.b16 %v751, %v747
        %v820 = vpack.c.b16 %v752, %v748
        %v821 = vpack.c.b16 %v753, %v749
        %v822 = vpack.c.b16 %v754, %v750
        %v823 = vpack.c.b16 %v759, %v755
        %v824 = vpack.c.b16 %v760, %v756
        %v825 = vpack.c.b16 %v761, %v757
        %v826 = vpack.c.b16 %v762, %v758
        %891 = vmatprep.subr.bf16.mxu0 %v764
        %892 = vmatpush1.bf16.msra.mxu0 %v763
        %893 = vmatprep.subr.bf16.mxu0 %v768
        %894 = vmatpush1.bf16.msra.mxu0 %v767
        %895 = vmatprep.subr.bf16.mxu0 %v772
        %896 = vmatpush1.bf16.msra.mxu0 %v771
        %897 = vmatprep.subr.bf16.mxu0 %v776
        %898 = vmatpush1.bf16.msra.mxu0 %v775
        %899 = vmatprep.subr.bf16.mxu0 %v780
        %900 = vmatpush1.bf16.msra.mxu0 %v779
        %901 = vmatprep.subr.bf16.mxu0 %v784
        %902 = vmatpush1.bf16.msra.mxu0 %v783
        %903 = vmatprep.subr.bf16.mxu0 %v788
        %904 = vmatpush1.bf16.msra.mxu0 %v787
        %905 = vmatprep.subr.bf16.mxu0 %v792
        %906 = vmatpush1.bf16.msra.mxu0 %v791
        %907 = vmatprep.subr.bf16.mxu0 %v796
        %908 = vmatpush1.bf16.msra.mxu0 %v795
        %909 = vmatprep.subr.bf16.mxu0 %v800
        %910 = vmatpush1.bf16.msra.mxu0 %v799
        %911 = vmatprep.subr.bf16.mxu0 %v804
        %912 = vmatpush1.bf16.msra.mxu0 %v803
        %913 = vmatprep.subr.bf16.mxu0 %v808
        %914 = vmatpush1.bf16.msra.mxu0 %v807
        %915 = vmatprep.subr.bf16.mxu0 %v812
        %916 = vmatpush1.bf16.msra.mxu0 %v811
        %917 = vmatprep.subr.bf16.mxu0 %v816
        %918 = vmatpush1.bf16.msra.mxu0 %v815
        %919 = vmatprep.subr.bf16.mxu0 %v820
        %920 = vmatpush1.bf16.msra.mxu0 %v819
        %921 = vmatprep.subr.bf16.mxu0 %v824
        %922 = vmatpush1.bf16.msra.mxu0 %v823
        %923 = vmatprep.mubr.bf16.mxu0 %v494
        %924 = vmatmul.mubr.bf16.gmra.mrb[0].mxu0 %v493
        %v925 = vpop.f32.mrb[0].mxu0
        %v926 = vadd.f32 0.0, %v925
        %v927 = vpop.f32.mrb[0].mxu0
        %v928 = vadd.f32 0.0, %v927
        %v929 = vpop.f32.mrb[0].mxu0
        %v930 = vadd.f32 0.0, %v929
        %v931 = vpop.f32.mrb[0].mxu0
        %v932 = vadd.f32 0.0, %v931
        %933 = vdwg.mxu0
        %934 = vmatprep.subr.bf16.mxu0 %v766
        %935 = vmatpush1.bf16.msra.mxu0 %v765
        %936 = vmatprep.subr.bf16.mxu0 %v770
        %937 = vmatpush1.bf16.msra.mxu0 %v769
        %938 = vmatprep.subr.bf16.mxu0 %v774
        %939 = vmatpush1.bf16.msra.mxu0 %v773
        %940 = vmatprep.subr.bf16.mxu0 %v778
        %941 = vmatpush1.bf16.msra.mxu0 %v777
        %942 = vmatprep.subr.bf16.mxu0 %v782
        %943 = vmatpush1.bf16.msra.mxu0 %v781
        %944 = vmatprep.subr.bf16.mxu0 %v786
        %945 = vmatpush1.bf16.msra.mxu0 %v785
        %946 = vmatprep.subr.bf16.mxu0 %v790
        %947 = vmatpush1.bf16.msra.mxu0 %v789
        %948 = vmatprep.subr.bf16.mxu0 %v794
        %949 = vmatpush1.bf16.msra.mxu0 %v793
        %950 = vmatprep.subr.bf16.mxu0 %v798
        %951 = vmatpush1.bf16.msra.mxu0 %v797
        %952 = vmatprep.subr.bf16.mxu0 %v802
        %953 = vmatpush1.bf16.msra.mxu0 %v801
        %954 = vmatprep.subr.bf16.mxu0 %v806
        %955 = vmatpush1.bf16.msra.mxu0 %v805
        %956 = vmatprep.subr.bf16.mxu0 %v810
        %957 = vmatpush1.bf16.msra.mxu0 %v809
        %958 = vmatprep.subr.bf16.mxu0 %v814
        %959 = vmatpush1.bf16.msra.mxu0 %v813
        %960 = vmatprep.subr.bf16.mxu0 %v818
        %961 = vmatpush1.bf16.msra.mxu0 %v817
        %962 = vmatprep.subr.bf16.mxu0 %v822
        %963 = vmatpush1.bf16.msra.mxu0 %v821
        %964 = vmatprep.subr.bf16.mxu0 %v826
        %965 = vmatpush1.bf16.msra.mxu0 %v825
        %966 = vmatprep.mubr.bf16.mxu0 %v494
        %967 = vmatmul.mubr.bf16.gmra.mrb[0].mxu0 %v493
        %v968 = vpop.f32.mrb[0].mxu0
        %v969 = vadd.f32 0.0, %v968
        %v970 = vpop.f32.mrb[0].mxu0
        %v971 = vadd.f32 0.0, %v970
        %v972 = vpop.f32.mrb[0].mxu0
        %v973 = vadd.f32 0.0, %v972
        %v974 = vpop.f32.mrb[0].mxu0
        %v975 = vadd.f32 0.0, %v974
        %976 = vdwg.mxu0
        %v977 = vld [vmem:[#allocation10] sm:$0xff]
        %v978 = vld [vmem:[#allocation10 + $0x8] sm:$0xff]
        %v979 = vld [vmem:[#allocation10 + $0x10] sm:$0xff]
        %v980 = vld [vmem:[#allocation10 + $0x18] sm:$0xff]
        %v981 = vld [vmem:[#allocation10 + $0x20] sm:$0xff]
        %v982 = vld [vmem:[#allocation10 + $0x28] sm:$0xff]
        %v983 = vld [vmem:[#allocation10 + $0x30] sm:$0xff]
        %v984 = vld [vmem:[#allocation10 + $0x38] sm:$0xff]
        %v985 = vld [vmem:[#allocation10 + $0x40] sm:$0xff]
        %v986 = vld [vmem:[#allocation10 + $0x48] sm:$0xff]
        %v987 = vld [vmem:[#allocation10 + $0x50] sm:$0xff]
        %v988 = vld [vmem:[#allocation10 + $0x58] sm:$0xff]
        %v989 = vld [vmem:[#allocation10 + $0x60] sm:$0xff]
        %v990 = vld [vmem:[#allocation10 + $0x68] sm:$0xff]
        %v991 = vld [vmem:[#allocation10 + $0x70] sm:$0xff]
        %v992 = vld [vmem:[#allocation10 + $0x78] sm:$0xff]
        %v993 = vld [vmem:[#allocation10 + $0x80] sm:$0xff]
        %v994 = vld [vmem:[#allocation10 + $0x88] sm:$0xff]
        %v995 = vld [vmem:[#allocation10 + $0x90] sm:$0xff]
        %v996 = vld [vmem:[#allocation10 + $0x98] sm:$0xff]
        %v997 = vld [vmem:[#allocation10 + $0xa0] sm:$0xff]
        %v998 = vld [vmem:[#allocation10 + $0xa8] sm:$0xff]
        %v999 = vld [vmem:[#allocation10 + $0xb0] sm:$0xff]
        %v1000 = vld [vmem:[#allocation10 + $0xb8] sm:$0xff]
        %v1001 = vld [vmem:[#allocation10 + $0xc0] sm:$0xff]
        %v1002 = vld [vmem:[#allocation10 + $0xc8] sm:$0xff]
        %v1003 = vld [vmem:[#allocation10 + $0xd0] sm:$0xff]
        %v1004 = vld [vmem:[#allocation10 + $0xd8] sm:$0xff]
        %v1005 = vld [vmem:[#allocation10 + $0xe0] sm:$0xff]
        %v1006 = vld [vmem:[#allocation10 + $0xe8] sm:$0xff]
        %v1007 = vld [vmem:[#allocation10 + $0xf0] sm:$0xff]
        %v1008 = vld [vmem:[#allocation10 + $0xf8] sm:$0xff]
        %v1009 = vld [vmem:[#allocation10 + $0x100] sm:$0xff]
        %v1010 = vld [vmem:[#allocation10 + $0x108] sm:$0xff]
        %v1011 = vld [vmem:[#allocation10 + $0x110] sm:$0xff]
        %v1012 = vld [vmem:[#allocation10 + $0x118] sm:$0xff]
        %v1013 = vld [vmem:[#allocation10 + $0x120] sm:$0xff]
        %v1014 = vld [vmem:[#allocation10 + $0x128] sm:$0xff]
        %v1015 = vld [vmem:[#allocation10 + $0x130] sm:$0xff]
        %v1016 = vld [vmem:[#allocation10 + $0x138] sm:$0xff]
        %v1017 = vld [vmem:[#allocation10 + $0x140] sm:$0xff]
        %v1018 = vld [vmem:[#allocation10 + $0x148] sm:$0xff]
        %v1019 = vld [vmem:[#allocation10 + $0x150] sm:$0xff]
        %v1020 = vld [vmem:[#allocation10 + $0x158] sm:$0xff]
        %v1021 = vld [vmem:[#allocation10 + $0x160] sm:$0xff]
        %v1022 = vld [vmem:[#allocation10 + $0x168] sm:$0xff]
        %v1023 = vld [vmem:[#allocation10 + $0x170] sm:$0xff]
        %v1024 = vld [vmem:[#allocation10 + $0x178] sm:$0xff]
        %v1025 = vld [vmem:[#allocation10 + $0x180] sm:$0xff]
        %v1026 = vld [vmem:[#allocation10 + $0x188] sm:$0xff]
        %v1027 = vld [vmem:[#allocation10 + $0x190] sm:$0xff]
        %v1028 = vld [vmem:[#allocation10 + $0x198] sm:$0xff]
        %v1029 = vld [vmem:[#allocation10 + $0x1a0] sm:$0xff]
        %v1030 = vld [vmem:[#allocation10 + $0x1a8] sm:$0xff]
        %v1031 = vld [vmem:[#allocation10 + $0x1b0] sm:$0xff]
        %v1032 = vld [vmem:[#allocation10 + $0x1b8] sm:$0xff]
        %v1033 = vld [vmem:[#allocation10 + $0x1c0] sm:$0xff]
        %v1034 = vld [vmem:[#allocation10 + $0x1c8] sm:$0xff]
        %v1035 = vld [vmem:[#allocation10 + $0x1d0] sm:$0xff]
        %v1036 = vld [vmem:[#allocation10 + $0x1d8] sm:$0xff]
        %v1037 = vld [vmem:[#allocation10 + $0x1e0] sm:$0xff]
        %v1038 = vld [vmem:[#allocation10 + $0x1e8] sm:$0xff]
        %v1039 = vld [vmem:[#allocation10 + $0x1f0] sm:$0xff]
        %v1040 = vld [vmem:[#allocation10 + $0x1f8] sm:$0xff]
        %v1105 = vunpack.c.l.b16 %v977
        %v1106 = vunpack.c.h.b16 %v977
        %v1107 = vunpack.c.l.b16 %v978
        %v1108 = vunpack.c.h.b16 %v978
        %v1109 = vunpack.c.l.b16 %v979
        %v1110 = vunpack.c.h.b16 %v979
        %v1111 = vunpack.c.l.b16 %v980
        %v1112 = vunpack.c.h.b16 %v980
        %v1113 = vunpack.c.l.b16 %v981
        %v1114 = vunpack.c.h.b16 %v981
        %v1115 = vunpack.c.l.b16 %v982
        %v1116 = vunpack.c.h.b16 %v982
        %v1117 = vunpack.c.l.b16 %v983
        %v1118 = vunpack.c.h.b16 %v983
        %v1119 = vunpack.c.l.b16 %v984
        %v1120 = vunpack.c.h.b16 %v984
        %v1121 = vunpack.c.l.b16 %v985
        %v1122 = vunpack.c.h.b16 %v985
        %v1123 = vunpack.c.l.b16 %v986
        %v1124 = vunpack.c.h.b16 %v986
        %v1125 = vunpack.c.l.b16 %v987
        %v1126 = vunpack.c.h.b16 %v987
        %v1127 = vunpack.c.l.b16 %v988
        %v1128 = vunpack.c.h.b16 %v988
        %v1129 = vunpack.c.l.b16 %v989
        %v1130 = vunpack.c.h.b16 %v989
        %v1131 = vunpack.c.l.b16 %v990
        %v1132 = vunpack.c.h.b16 %v990
        %v1133 = vunpack.c.l.b16 %v991
        %v1134 = vunpack.c.h.b16 %v991
        %v1135 = vunpack.c.l.b16 %v992
        %v1136 = vunpack.c.h.b16 %v992
        %v1137 = vunpack.c.l.b16 %v993
        %v1138 = vunpack.c.h.b16 %v993
        %v1139 = vunpack.c.l.b16 %v994
        %v1140 = vunpack.c.h.b16 %v994
        %v1141 = vunpack.c.l.b16 %v995
        %v1142 = vunpack.c.h.b16 %v995
        %v1143 = vunpack.c.l.b16 %v996
        %v1144 = vunpack.c.h.b16 %v996
        %v1145 = vunpack.c.l.b16 %v997
        %v1146 = vunpack.c.h.b16 %v997
        %v1147 = vunpack.c.l.b16 %v998
        %v1148 = vunpack.c.h.b16 %v998
        %v1149 = vunpack.c.l.b16 %v999
        %v1150 = vunpack.c.h.b16 %v999
        %v1151 = vunpack.c.l.b16 %v1000
        %v1152 = vunpack.c.h.b16 %v1000
        %v1153 = vunpack.c.l.b16 %v1001
        %v1154 = vunpack.c.h.b16 %v1001
        %v1155 = vunpack.c.l.b16 %v1002
        %v1156 = vunpack.c.h.b16 %v1002
        %v1157 = vunpack.c.l.b16 %v1003
        %v1158 = vunpack.c.h.b16 %v1003
        %v1159 = vunpack.c.l.b16 %v1004
        %v1160 = vunpack.c.h.b16 %v1004
        %v1161 = vunpack.c.l.b16 %v1005
        %v1162 = vunpack.c.h.b16 %v1005
        %v1163 = vunpack.c.l.b16 %v1006
        %v1164 = vunpack.c.h.b16 %v1006
        %v1165 = vunpack.c.l.b16 %v1007
        %v1166 = vunpack.c.h.b16 %v1007
        %v1167 = vunpack.c.l.b16 %v1008
        %v1168 = vunpack.c.h.b16 %v1008
        %v1169 = vunpack.c.l.b16 %v1009
        %v1170 = vunpack.c.h.b16 %v1009
        %v1171 = vunpack.c.l.b16 %v1010
        %v1172 = vunpack.c.h.b16 %v1010
        %v1173 = vunpack.c.l.b16 %v1011
        %v1174 = vunpack.c.h.b16 %v1011
        %v1175 = vunpack.c.l.b16 %v1012
        %v1176 = vunpack.c.h.b16 %v1012
        %v1177 = vunpack.c.l.b16 %v1013
        %v1178 = vunpack.c.h.b16 %v1013
        %v1179 = vunpack.c.l.b16 %v1014
        %v1180 = vunpack.c.h.b16 %v1014
        %v1181 = vunpack.c.l.b16 %v1015
        %v1182 = vunpack.c.h.b16 %v1015
        %v1183 = vunpack.c.l.b16 %v1016
        %v1184 = vunpack.c.h.b16 %v1016
        %v1185 = vunpack.c.l.b16 %v1017
        %v1186 = vunpack.c.h.b16 %v1017
        %v1187 = vunpack.c.l.b16 %v1018
        %v1188 = vunpack.c.h.b16 %v1018
        %v1189 = vunpack.c.l.b16 %v1019
        %v1190 = vunpack.c.h.b16 %v1019
        %v1191 = vunpack.c.l.b16 %v1020
        %v1192 = vunpack.c.h.b16 %v1020
        %v1193 = vunpack.c.l.b16 %v1021
        %v1194 = vunpack.c.h.b16 %v1021
        %v1195 = vunpack.c.l.b16 %v1022
        %v1196 = vunpack.c.h.b16 %v1022
        %v1197 = vunpack.c.l.b16 %v1023
        %v1198 = vunpack.c.h.b16 %v1023
        %v1199 = vunpack.c.l.b16 %v1024
        %v1200 = vunpack.c.h.b16 %v1024
        %v1201 = vunpack.c.l.b16 %v1025
        %v1202 = vunpack.c.h.b16 %v1025
        %v1203 = vunpack.c.l.b16 %v1026
        %v1204 = vunpack.c.h.b16 %v1026
        %v1205 = vunpack.c.l.b16 %v1027
        %v1206 = vunpack.c.h.b16 %v1027
        %v1207 = vunpack.c.l.b16 %v1028
        %v1208 = vunpack.c.h.b16 %v1028
        %v1209 = vunpack.c.l.b16 %v1029
        %v1210 = vunpack.c.h.b16 %v1029
        %v1211 = vunpack.c.l.b16 %v1030
        %v1212 = vunpack.c.h.b16 %v1030
        %v1213 = vunpack.c.l.b16 %v1031
        %v1214 = vunpack.c.h.b16 %v1031
        %v1215 = vunpack.c.l.b16 %v1032
        %v1216 = vunpack.c.h.b16 %v1032
        %v1217 = vunpack.c.l.b16 %v1033
        %v1218 = vunpack.c.h.b16 %v1033
        %v1219 = vunpack.c.l.b16 %v1034
        %v1220 = vunpack.c.h.b16 %v1034
        %v1221 = vunpack.c.l.b16 %v1035
        %v1222 = vunpack.c.h.b16 %v1035
        %v1223 = vunpack.c.l.b16 %v1036
        %v1224 = vunpack.c.h.b16 %v1036
        %v1225 = vunpack.c.l.b16 %v1037
        %v1226 = vunpack.c.h.b16 %v1037
        %v1227 = vunpack.c.l.b16 %v1038
        %v1228 = vunpack.c.h.b16 %v1038
        %v1229 = vunpack.c.l.b16 %v1039
        %v1230 = vunpack.c.h.b16 %v1039
        %v1231 = vunpack.c.l.b16 %v1040
        %v1232 = vunpack.c.h.b16 %v1040
        %v1233 = vpack.c.b16 %v1109, %v1105
        %v1234 = vpack.c.b16 %v1110, %v1106
        %v1235 = vpack.c.b16 %v1111, %v1107
        %v1236 = vpack.c.b16 %v1112, %v1108
        %v1237 = vpack.c.b16 %v1117, %v1113
        %v1238 = vpack.c.b16 %v1118, %v1114
        %v1239 = vpack.c.b16 %v1119, %v1115
        %v1240 = vpack.c.b16 %v1120, %v1116
        %v1241 = vpack.c.b16 %v1125, %v1121
        %v1242 = vpack.c.b16 %v1126, %v1122
        %v1243 = vpack.c.b16 %v1127, %v1123
        %v1244 = vpack.c.b16 %v1128, %v1124
        %v1245 = vpack.c.b16 %v1133, %v1129
        %v1246 = vpack.c.b16 %v1134, %v1130
        %v1247 = vpack.c.b16 %v1135, %v1131
        %v1248 = vpack.c.b16 %v1136, %v1132
        %v1249 = vpack.c.b16 %v1141, %v1137
        %v1250 = vpack.c.b16 %v1142, %v1138
        %v1251 = vpack.c.b16 %v1143, %v1139
        %v1252 = vpack.c.b16 %v1144, %v1140
        %v1253 = vpack.c.b16 %v1149, %v1145
        %v1254 = vpack.c.b16 %v1150, %v1146
        %v1255 = vpack.c.b16 %v1151, %v1147
        %v1256 = vpack.c.b16 %v1152, %v1148
        %v1257 = vpack.c.b16 %v1157, %v1153
        %v1258 = vpack.c.b16 %v1158, %v1154
        %v1259 = vpack.c.b16 %v1159, %v1155
        %v1260 = vpack.c.b16 %v1160, %v1156
        %v1261 = vpack.c.b16 %v1165, %v1161
        %v1262 = vpack.c.b16 %v1166, %v1162
        %v1263 = vpack.c.b16 %v1167, %v1163
        %v1264 = vpack.c.b16 %v1168, %v1164
        %v1265 = vpack.c.b16 %v1173, %v1169
        %v1266 = vpack.c.b16 %v1174, %v1170
        %v1267 = vpack.c.b16 %v1175, %v1171
        %v1268 = vpack.c.b16 %v1176, %v1172
        %v1269 = vpack.c.b16 %v1181, %v1177
        %v1270 = vpack.c.b16 %v1182, %v1178
        %v1271 = vpack.c.b16 %v1183, %v1179
        %v1272 = vpack.c.b16 %v1184, %v1180
        %v1273 = vpack.c.b16 %v1189, %v1185
        %v1274 = vpack.c.b16 %v1190, %v1186
        %v1275 = vpack.c.b16 %v1191, %v1187
        %v1276 = vpack.c.b16 %v1192, %v1188
        %v1277 = vpack.c.b16 %v1197, %v1193
        %v1278 = vpack.c.b16 %v1198, %v1194
        %v1279 = vpack.c.b16 %v1199, %v1195
        %v1280 = vpack.c.b16 %v1200, %v1196
        %v1281 = vpack.c.b16 %v1205, %v1201
        %v1282 = vpack.c.b16 %v1206, %v1202
        %v1283 = vpack.c.b16 %v1207, %v1203
        %v1284 = vpack.c.b16 %v1208, %v1204
        %v1285 = vpack.c.b16 %v1213, %v1209
        %v1286 = vpack.c.b16 %v1214, %v1210
        %v1287 = vpack.c.b16 %v1215, %v1211
        %v1288 = vpack.c.b16 %v1216, %v1212
        %v1289 = vpack.c.b16 %v1221, %v1217
        %v1290 = vpack.c.b16 %v1222, %v1218
        %v1291 = vpack.c.b16 %v1223, %v1219
        %v1292 = vpack.c.b16 %v1224, %v1220
        %v1293 = vpack.c.b16 %v1229, %v1225
        %v1294 = vpack.c.b16 %v1230, %v1226
        %v1295 = vpack.c.b16 %v1231, %v1227
        %v1296 = vpack.c.b16 %v1232, %v1228
        %1361 = vmatprep.subr.bf16.mxu0 %v1234
        %1362 = vmatpush1.bf16.msra.mxu0 %v1233
        %1363 = vmatprep.subr.bf16.mxu0 %v1238
        %1364 = vmatpush1.bf16.msra.mxu0 %v1237
        %1365 = vmatprep.subr.bf16.mxu0 %v1242
        %1366 = vmatpush1.bf16.msra.mxu0 %v1241
        %1367 = vmatprep.subr.bf16.mxu0 %v1246
        %1368 = vmatpush1.bf16.msra.mxu0 %v1245
        %1369 = vmatprep.subr.bf16.mxu0 %v1250
        %1370 = vmatpush1.bf16.msra.mxu0 %v1249
        %1371 = vmatprep.subr.bf16.mxu0 %v1254
        %1372 = vmatpush1.bf16.msra.mxu0 %v1253
        %1373 = vmatprep.subr.bf16.mxu0 %v1258
        %1374 = vmatpush1.bf16.msra.mxu0 %v1257
        %1375 = vmatprep.subr.bf16.mxu0 %v1262
        %1376 = vmatpush1.bf16.msra.mxu0 %v1261
        %1377 = vmatprep.subr.bf16.mxu0 %v1266
        %1378 = vmatpush1.bf16.msra.mxu0 %v1265
        %1379 = vmatprep.subr.bf16.mxu0 %v1270
        %1380 = vmatpush1.bf16.msra.mxu0 %v1269
        %1381 = vmatprep.subr.bf16.mxu0 %v1274
        %1382 = vmatpush1.bf16.msra.mxu0 %v1273
        %1383 = vmatprep.subr.bf16.mxu0 %v1278
        %1384 = vmatpush1.bf16.msra.mxu0 %v1277
        %1385 = vmatprep.subr.bf16.mxu0 %v1282
        %1386 = vmatpush1.bf16.msra.mxu0 %v1281
        %1387 = vmatprep.subr.bf16.mxu0 %v1286
        %1388 = vmatpush1.bf16.msra.mxu0 %v1285
        %1389 = vmatprep.subr.bf16.mxu0 %v1290
        %1390 = vmatpush1.bf16.msra.mxu0 %v1289
        %1391 = vmatprep.subr.bf16.mxu0 %v1294
        %1392 = vmatpush1.bf16.msra.mxu0 %v1293
        %1393 = vmatprep.mubr.bf16.mxu0 %v500
        %1394 = vmatmul.mubr.bf16.gmra.mrb[0].mxu0 %v499
        %v1395 = vpop.f32.mrb[0].mxu0
        %v1396 = vadd.f32 0.0, %v1395
        %v1397 = vpop.f32.mrb[0].mxu0
        %v1398 = vadd.f32 0.0, %v1397
        %v1399 = vpop.f32.mrb[0].mxu0
        %v1400 = vadd.f32 0.0, %v1399
        %v1401 = vpop.f32.mrb[0].mxu0
        %v1402 = vadd.f32 0.0, %v1401
        %1403 = vdwg.mxu0
        %1404 = vmatprep.subr.bf16.mxu0 %v1236
        %1405 = vmatpush1.bf16.msra.mxu0 %v1235
        %1406 = vmatprep.subr.bf16.mxu0 %v1240
        %1407 = vmatpush1.bf16.msra.mxu0 %v1239
        %1408 = vmatprep.subr.bf16.mxu0 %v1244
        %1409 = vmatpush1.bf16.msra.mxu0 %v1243
        %1410 = vmatprep.subr.bf16.mxu0 %v1248
        %1411 = vmatpush1.bf16.msra.mxu0 %v1247
        %1412 = vmatprep.subr.bf16.mxu0 %v1252
        %1413 = vmatpush1.bf16.msra.mxu0 %v1251
        %1414 = vmatprep.subr.bf16.mxu0 %v1256
        %1415 = vmatpush1.bf16.msra.mxu0 %v1255
        %1416 = vmatprep.subr.bf16.mxu0 %v1260
        %1417 = vmatpush1.bf16.msra.mxu0 %v1259
        %1418 = vmatprep.subr.bf16.mxu0 %v1264
        %1419 = vmatpush1.bf16.msra.mxu0 %v1263
        %1420 = vmatprep.subr.bf16.mxu0 %v1268
        %1421 = vmatpush1.bf16.msra.mxu0 %v1267
        %1422 = vmatprep.subr.bf16.mxu0 %v1272
        %1423 = vmatpush1.bf16.msra.mxu0 %v1271
        %1424 = vmatprep.subr.bf16.mxu0 %v1276
        %1425 = vmatpush1.bf16.msra.mxu0 %v1275
        %1426 = vmatprep.subr.bf16.mxu0 %v1280
        %1427 = vmatpush1.bf16.msra.mxu0 %v1279
        %1428 = vmatprep.subr.bf16.mxu0 %v1284
        %1429 = vmatpush1.bf16.msra.mxu0 %v1283
        %1430 = vmatprep.subr.bf16.mxu0 %v1288
        %1431 = vmatpush1.bf16.msra.mxu0 %v1287
        %1432 = vmatprep.subr.bf16.mxu0 %v1292
        %1433 = vmatpush1.bf16.msra.mxu0 %v1291
        %1434 = vmatprep.subr.bf16.mxu0 %v1296
        %1435 = vmatpush1.bf16.msra.mxu0 %v1295
        %1436 = vmatprep.mubr.bf16.mxu0 %v500
        %1437 = vmatmul.mubr.bf16.gmra.mrb[0].mxu0 %v499
        %v1438 = vpop.f32.mrb[0].mxu0
        %v1439 = vadd.f32 0.0, %v1438
        %v1440 = vpop.f32.mrb[0].mxu0
        %v1441 = vadd.f32 0.0, %v1440
        %v1442 = vpop.f32.mrb[0].mxu0
        %v1443 = vadd.f32 0.0, %v1442
        %v1444 = vpop.f32.mrb[0].mxu0
        %v1445 = vadd.f32 0.0, %v1444
        %1446 = vdwg.mxu0
        %v1447 = vld [vmem:[#allocation11] sm:$0xff]
        %v1448 = vld [vmem:[#allocation11 + $0x8] sm:$0xff]
        %v1449 = vld [vmem:[#allocation11 + $0x10] sm:$0xff]
        %v1450 = vld [vmem:[#allocation11 + $0x18] sm:$0xff]
        %v1451 = vld [vmem:[#allocation11 + $0x20] sm:$0xff]
        %v1452 = vld [vmem:[#allocation11 + $0x28] sm:$0xff]
        %v1453 = vld [vmem:[#allocation11 + $0x30] sm:$0xff]
        %v1454 = vld [vmem:[#allocation11 + $0x38] sm:$0xff]
        %v1455 = vld [vmem:[#allocation11 + $0x40] sm:$0xff]
        %v1456 = vld [vmem:[#allocation11 + $0x48] sm:$0xff]
        %v1457 = vld [vmem:[#allocation11 + $0x50] sm:$0xff]
        %v1458 = vld [vmem:[#allocation11 + $0x58] sm:$0xff]
        %v1459 = vld [vmem:[#allocation11 + $0x60] sm:$0xff]
        %v1460 = vld [vmem:[#allocation11 + $0x68] sm:$0xff]
        %v1461 = vld [vmem:[#allocation11 + $0x70] sm:$0xff]
        %v1462 = vld [vmem:[#allocation11 + $0x78] sm:$0xff]
        %v1463 = vld [vmem:[#allocation11 + $0x80] sm:$0xff]
        %v1464 = vld [vmem:[#allocation11 + $0x88] sm:$0xff]
        %v1465 = vld [vmem:[#allocation11 + $0x90] sm:$0xff]
        %v1466 = vld [vmem:[#allocation11 + $0x98] sm:$0xff]
        %v1467 = vld [vmem:[#allocation11 + $0xa0] sm:$0xff]
        %v1468 = vld [vmem:[#allocation11 + $0xa8] sm:$0xff]
        %v1469 = vld [vmem:[#allocation11 + $0xb0] sm:$0xff]
        %v1470 = vld [vmem:[#allocation11 + $0xb8] sm:$0xff]
        %v1471 = vld [vmem:[#allocation11 + $0xc0] sm:$0xff]
        %v1472 = vld [vmem:[#allocation11 + $0xc8] sm:$0xff]
        %v1473 = vld [vmem:[#allocation11 + $0xd0] sm:$0xff]
        %v1474 = vld [vmem:[#allocation11 + $0xd8] sm:$0xff]
        %v1475 = vld [vmem:[#allocation11 + $0xe0] sm:$0xff]
        %v1476 = vld [vmem:[#allocation11 + $0xe8] sm:$0xff]
        %v1477 = vld [vmem:[#allocation11 + $0xf0] sm:$0xff]
        %v1478 = vld [vmem:[#allocation11 + $0xf8] sm:$0xff]
        %v1479 = vld [vmem:[#allocation11 + $0x100] sm:$0xff]
        %v1480 = vld [vmem:[#allocation11 + $0x108] sm:$0xff]
        %v1481 = vld [vmem:[#allocation11 + $0x110] sm:$0xff]
        %v1482 = vld [vmem:[#allocation11 + $0x118] sm:$0xff]
        %v1483 = vld [vmem:[#allocation11 + $0x120] sm:$0xff]
        %v1484 = vld [vmem:[#allocation11 + $0x128] sm:$0xff]
        %v1485 = vld [vmem:[#allocation11 + $0x130] sm:$0xff]
        %v1486 = vld [vmem:[#allocation11 + $0x138] sm:$0xff]
        %v1487 = vld [vmem:[#allocation11 + $0x140] sm:$0xff]
        %v1488 = vld [vmem:[#allocation11 + $0x148] sm:$0xff]
        %v1489 = vld [vmem:[#allocation11 + $0x150] sm:$0xff]
        %v1490 = vld [vmem:[#allocation11 + $0x158] sm:$0xff]
        %v1491 = vld [vmem:[#allocation11 + $0x160] sm:$0xff]
        %v1492 = vld [vmem:[#allocation11 + $0x168] sm:$0xff]
        %v1493 = vld [vmem:[#allocation11 + $0x170] sm:$0xff]
        %v1494 = vld [vmem:[#allocation11 + $0x178] sm:$0xff]
        %v1495 = vld [vmem:[#allocation11 + $0x180] sm:$0xff]
        %v1496 = vld [vmem:[#allocation11 + $0x188] sm:$0xff]
        %v1497 = vld [vmem:[#allocation11 + $0x190] sm:$0xff]
        %v1498 = vld [vmem:[#allocation11 + $0x198] sm:$0xff]
        %v1499 = vld [vmem:[#allocation11 + $0x1a0] sm:$0xff]
        %v1500 = vld [vmem:[#allocation11 + $0x1a8] sm:$0xff]
        %v1501 = vld [vmem:[#allocation11 + $0x1b0] sm:$0xff]
        %v1502 = vld [vmem:[#allocation11 + $0x1b8] sm:$0xff]
        %v1503 = vld [vmem:[#allocation11 + $0x1c0] sm:$0xff]
        %v1504 = vld [vmem:[#allocation11 + $0x1c8] sm:$0xff]
        %v1505 = vld [vmem:[#allocation11 + $0x1d0] sm:$0xff]
        %v1506 = vld [vmem:[#allocation11 + $0x1d8] sm:$0xff]
        %v1507 = vld [vmem:[#allocation11 + $0x1e0] sm:$0xff]
        %v1508 = vld [vmem:[#allocation11 + $0x1e8] sm:$0xff]
        %v1509 = vld [vmem:[#allocation11 + $0x1f0] sm:$0xff]
        %v1510 = vld [vmem:[#allocation11 + $0x1f8] sm:$0xff]
        %v1575 = vunpack.c.l.b16 %v1447
        %v1576 = vunpack.c.h.b16 %v1447
        %v1577 = vunpack.c.l.b16 %v1448
        %v1578 = vunpack.c.h.b16 %v1448
        %v1579 = vunpack.c.l.b16 %v1449
        %v1580 = vunpack.c.h.b16 %v1449
        %v1581 = vunpack.c.l.b16 %v1450
        %v1582 = vunpack.c.h.b16 %v1450
        %v1583 = vunpack.c.l.b16 %v1451
        %v1584 = vunpack.c.h.b16 %v1451
        %v1585 = vunpack.c.l.b16 %v1452
        %v1586 = vunpack.c.h.b16 %v1452
        %v1587 = vunpack.c.l.b16 %v1453
        %v1588 = vunpack.c.h.b16 %v1453
        %v1589 = vunpack.c.l.b16 %v1454
        %v1590 = vunpack.c.h.b16 %v1454
        %v1591 = vunpack.c.l.b16 %v1455
        %v1592 = vunpack.c.h.b16 %v1455
        %v1593 = vunpack.c.l.b16 %v1456
        %v1594 = vunpack.c.h.b16 %v1456
        %v1595 = vunpack.c.l.b16 %v1457
        %v1596 = vunpack.c.h.b16 %v1457
        %v1597 = vunpack.c.l.b16 %v1458
        %v1598 = vunpack.c.h.b16 %v1458
        %v1599 = vunpack.c.l.b16 %v1459
        %v1600 = vunpack.c.h.b16 %v1459
        %v1601 = vunpack.c.l.b16 %v1460
        %v1602 = vunpack.c.h.b16 %v1460
        %v1603 = vunpack.c.l.b16 %v1461
        %v1604 = vunpack.c.h.b16 %v1461
        %v1605 = vunpack.c.l.b16 %v1462
        %v1606 = vunpack.c.h.b16 %v1462
        %v1607 = vunpack.c.l.b16 %v1463
        %v1608 = vunpack.c.h.b16 %v1463
        %v1609 = vunpack.c.l.b16 %v1464
        %v1610 = vunpack.c.h.b16 %v1464
        %v1611 = vunpack.c.l.b16 %v1465
        %v1612 = vunpack.c.h.b16 %v1465
        %v1613 = vunpack.c.l.b16 %v1466
        %v1614 = vunpack.c.h.b16 %v1466
        %v1615 = vunpack.c.l.b16 %v1467
        %v1616 = vunpack.c.h.b16 %v1467
        %v1617 = vunpack.c.l.b16 %v1468
        %v1618 = vunpack.c.h.b16 %v1468
        %v1619 = vunpack.c.l.b16 %v1469
        %v1620 = vunpack.c.h.b16 %v1469
        %v1621 = vunpack.c.l.b16 %v1470
        %v1622 = vunpack.c.h.b16 %v1470
        %v1623 = vunpack.c.l.b16 %v1471
        %v1624 = vunpack.c.h.b16 %v1471
        %v1625 = vunpack.c.l.b16 %v1472
        %v1626 = vunpack.c.h.b16 %v1472
        %v1627 = vunpack.c.l.b16 %v1473
        %v1628 = vunpack.c.h.b16 %v1473
        %v1629 = vunpack.c.l.b16 %v1474
        %v1630 = vunpack.c.h.b16 %v1474
        %v1631 = vunpack.c.l.b16 %v1475
        %v1632 = vunpack.c.h.b16 %v1475
        %v1633 = vunpack.c.l.b16 %v1476
        %v1634 = vunpack.c.h.b16 %v1476
        %v1635 = vunpack.c.l.b16 %v1477
        %v1636 = vunpack.c.h.b16 %v1477
        %v1637 = vunpack.c.l.b16 %v1478
        %v1638 = vunpack.c.h.b16 %v1478
        %v1639 = vunpack.c.l.b16 %v1479
        %v1640 = vunpack.c.h.b16 %v1479
        %v1641 = vunpack.c.l.b16 %v1480
        %v1642 = vunpack.c.h.b16 %v1480
        %v1643 = vunpack.c.l.b16 %v1481
        %v1644 = vunpack.c.h.b16 %v1481
        %v1645 = vunpack.c.l.b16 %v1482
        %v1646 = vunpack.c.h.b16 %v1482
        %v1647 = vunpack.c.l.b16 %v1483
        %v1648 = vunpack.c.h.b16 %v1483
        %v1649 = vunpack.c.l.b16 %v1484
        %v1650 = vunpack.c.h.b16 %v1484
        %v1651 = vunpack.c.l.b16 %v1485
        %v1652 = vunpack.c.h.b16 %v1485
        %v1653 = vunpack.c.l.b16 %v1486
        %v1654 = vunpack.c.h.b16 %v1486
        %v1655 = vunpack.c.l.b16 %v1487
        %v1656 = vunpack.c.h.b16 %v1487
        %v1657 = vunpack.c.l.b16 %v1488
        %v1658 = vunpack.c.h.b16 %v1488
        %v1659 = vunpack.c.l.b16 %v1489
        %v1660 = vunpack.c.h.b16 %v1489
        %v1661 = vunpack.c.l.b16 %v1490
        %v1662 = vunpack.c.h.b16 %v1490
        %v1663 = vunpack.c.l.b16 %v1491
        %v1664 = vunpack.c.h.b16 %v1491
        %v1665 = vunpack.c.l.b16 %v1492
        %v1666 = vunpack.c.h.b16 %v1492
        %v1667 = vunpack.c.l.b16 %v1493
        %v1668 = vunpack.c.h.b16 %v1493
        %v1669 = vunpack.c.l.b16 %v1494
        %v1670 = vunpack.c.h.b16 %v1494
        %v1671 = vunpack.c.l.b16 %v1495
        %v1672 = vunpack.c.h.b16 %v1495
        %v1673 = vunpack.c.l.b16 %v1496
        %v1674 = vunpack.c.h.b16 %v1496
        %v1675 = vunpack.c.l.b16 %v1497
        %v1676 = vunpack.c.h.b16 %v1497
        %v1677 = vunpack.c.l.b16 %v1498
        %v1678 = vunpack.c.h.b16 %v1498
        %v1679 = vunpack.c.l.b16 %v1499
        %v1680 = vunpack.c.h.b16 %v1499
        %v1681 = vunpack.c.l.b16 %v1500
        %v1682 = vunpack.c.h.b16 %v1500
        %v1683 = vunpack.c.l.b16 %v1501
        %v1684 = vunpack.c.h.b16 %v1501
        %v1685 = vunpack.c.l.b16 %v1502
        %v1686 = vunpack.c.h.b16 %v1502
        %v1687 = vunpack.c.l.b16 %v1503
        %v1688 = vunpack.c.h.b16 %v1503
        %v1689 = vunpack.c.l.b16 %v1504
        %v1690 = vunpack.c.h.b16 %v1504
        %v1691 = vunpack.c.l.b16 %v1505
        %v1692 = vunpack.c.h.b16 %v1505
        %v1693 = vunpack.c.l.b16 %v1506
        %v1694 = vunpack.c.h.b16 %v1506
        %v1695 = vunpack.c.l.b16 %v1507
        %v1696 = vunpack.c.h.b16 %v1507
        %v1697 = vunpack.c.l.b16 %v1508
        %v1698 = vunpack.c.h.b16 %v1508
        %v1699 = vunpack.c.l.b16 %v1509
        %v1700 = vunpack.c.h.b16 %v1509
        %v1701 = vunpack.c.l.b16 %v1510
        %v1702 = vunpack.c.h.b16 %v1510
        %v1703 = vpack.c.b16 %v1579, %v1575
        %v1704 = vpack.c.b16 %v1580, %v1576
        %v1705 = vpack.c.b16 %v1581, %v1577
        %v1706 = vpack.c.b16 %v1582, %v1578
        %v1707 = vpack.c.b16 %v1587, %v1583
        %v1708 = vpack.c.b16 %v1588, %v1584
        %v1709 = vpack.c.b16 %v1589, %v1585
        %v1710 = vpack.c.b16 %v1590, %v1586
        %v1711 = vpack.c.b16 %v1595, %v1591
        %v1712 = vpack.c.b16 %v1596, %v1592
        %v1713 = vpack.c.b16 %v1597, %v1593
        %v1714 = vpack.c.b16 %v1598, %v1594
        %v1715 = vpack.c.b16 %v1603, %v1599
        %v1716 = vpack.c.b16 %v1604, %v1600
        %v1717 = vpack.c.b16 %v1605, %v1601
        %v1718 = vpack.c.b16 %v1606, %v1602
        %v1719 = vpack.c.b16 %v1611, %v1607
        %v1720 = vpack.c.b16 %v1612, %v1608
        %v1721 = vpack.c.b16 %v1613, %v1609
        %v1722 = vpack.c.b16 %v1614, %v1610
        %v1723 = vpack.c.b16 %v1619, %v1615
        %v1724 = vpack.c.b16 %v1620, %v1616
        %v1725 = vpack.c.b16 %v1621, %v1617
        %v1726 = vpack.c.b16 %v1622, %v1618
        %v1727 = vpack.c.b16 %v1627, %v1623
        %v1728 = vpack.c.b16 %v1628, %v1624
        %v1729 = vpack.c.b16 %v1629, %v1625
        %v1730 = vpack.c.b16 %v1630, %v1626
        %v1731 = vpack.c.b16 %v1635, %v1631
        %v1732 = vpack.c.b16 %v1636, %v1632
        %v1733 = vpack.c.b16 %v1637, %v1633
        %v1734 = vpack.c.b16 %v1638, %v1634
        %v1735 = vpack.c.b16 %v1643, %v1639
        %v1736 = vpack.c.b16 %v1644, %v1640
        %v1737 = vpack.c.b16 %v1645, %v1641
        %v1738 = vpack.c.b16 %v1646, %v1642
        %v1739 = vpack.c.b16 %v1651, %v1647
        %v1740 = vpack.c.b16 %v1652, %v1648
        %v1741 = vpack.c.b16 %v1653, %v1649
        %v1742 = vpack.c.b16 %v1654, %v1650
        %v1743 = vpack.c.b16 %v1659, %v1655
        %v1744 = vpack.c.b16 %v1660, %v1656
        %v1745 = vpack.c.b16 %v1661, %v1657
        %v1746 = vpack.c.b16 %v1662, %v1658
        %v1747 = vpack.c.b16 %v1667, %v1663
        %v1748 = vpack.c.b16 %v1668, %v1664
        %v1749 = vpack.c.b16 %v1669, %v1665
        %v1750 = vpack.c.b16 %v1670, %v1666
        %v1751 = vpack.c.b16 %v1675, %v1671
        %v1752 = vpack.c.b16 %v1676, %v1672
        %v1753 = vpack.c.b16 %v1677, %v1673
        %v1754 = vpack.c.b16 %v1678, %v1674
        %v1755 = vpack.c.b16 %v1683, %v1679
        %v1756 = vpack.c.b16 %v1684, %v1680
        %v1757 = vpack.c.b16 %v1685, %v1681
        %v1758 = vpack.c.b16 %v1686, %v1682
        %v1759 = vpack.c.b16 %v1691, %v1687
        %v1760 = vpack.c.b16 %v1692, %v1688
        %v1761 = vpack.c.b16 %v1693, %v1689
        %v1762 = vpack.c.b16 %v1694, %v1690
        %v1763 = vpack.c.b16 %v1699, %v1695
        %v1764 = vpack.c.b16 %v1700, %v1696
        %v1765 = vpack.c.b16 %v1701, %v1697
        %v1766 = vpack.c.b16 %v1702, %v1698
        %1831 = vmatprep.subr.bf16.mxu0 %v1704
        %1832 = vmatpush1.bf16.msra.mxu0 %v1703
        %1833 = vmatprep.subr.bf16.mxu0 %v1708
        %1834 = vmatpush1.bf16.msra.mxu0 %v1707
        %1835 = vmatprep.subr.bf16.mxu0 %v1712
        %1836 = vmatpush1.bf16.msra.mxu0 %v1711
        %1837 = vmatprep.subr.bf16.mxu0 %v1716
        %1838 = vmatpush1.bf16.msra.mxu0 %v1715
        %1839 = vmatprep.subr.bf16.mxu0 %v1720
        %1840 = vmatpush1.bf16.msra.mxu0 %v1719
        %1841 = vmatprep.subr.bf16.mxu0 %v1724
        %1842 = vmatpush1.bf16.msra.mxu0 %v1723
        %1843 = vmatprep.subr.bf16.mxu0 %v1728
        %1844 = vmatpush1.bf16.msra.mxu0 %v1727
        %1845 = vmatprep.subr.bf16.mxu0 %v1732
        %1846 = vmatpush1.bf16.msra.mxu0 %v1731
        %1847 = vmatprep.subr.bf16.mxu0 %v1736
        %1848 = vmatpush1.bf16.msra.mxu0 %v1735
        %1849 = vmatprep.subr.bf16.mxu0 %v1740
        %1850 = vmatpush1.bf16.msra.mxu0 %v1739
        %1851 = vmatprep.subr.bf16.mxu0 %v1744
        %1852 = vmatpush1.bf16.msra.mxu0 %v1743
        %1853 = vmatprep.subr.bf16.mxu0 %v1748
        %1854 = vmatpush1.bf16.msra.mxu0 %v1747
        %1855 = vmatprep.subr.bf16.mxu0 %v1752
        %1856 = vmatpush1.bf16.msra.mxu0 %v1751
        %1857 = vmatprep.subr.bf16.mxu0 %v1756
        %1858 = vmatpush1.bf16.msra.mxu0 %v1755
        %1859 = vmatprep.subr.bf16.mxu0 %v1760
        %1860 = vmatpush1.bf16.msra.mxu0 %v1759
        %1861 = vmatprep.subr.bf16.mxu0 %v1764
        %1862 = vmatpush1.bf16.msra.mxu0 %v1763
        %1863 = vmatprep.mubr.bf16.mxu0 %v506
        %1864 = vmatmul.mubr.bf16.gmra.mrb[0].mxu0 %v505
        %v1865 = vpop.f32.mrb[0].mxu0
        %v1866 = vadd.f32 0.0, %v1865
        %v1867 = vpop.f32.mrb[0].mxu0
        %v1868 = vadd.f32 0.0, %v1867
        %v1869 = vpop.f32.mrb[0].mxu0
        %v1870 = vadd.f32 0.0, %v1869
        %v1871 = vpop.f32.mrb[0].mxu0
        %v1872 = vadd.f32 0.0, %v1871
        %1873 = vdwg.mxu0
        %1874 = vmatprep.subr.bf16.mxu0 %v1706
        %1875 = vmatpush1.bf16.msra.mxu0 %v1705
        %1876 = vmatprep.subr.bf16.mxu0 %v1710
        %1877 = vmatpush1.bf16.msra.mxu0 %v1709
        %1878 = vmatprep.subr.bf16.mxu0 %v1714
        %1879 = vmatpush1.bf16.msra.mxu0 %v1713
        %1880 = vmatprep.subr.bf16.mxu0 %v1718
        %1881 = vmatpush1.bf16.msra.mxu0 %v1717
        %1882 = vmatprep.subr.bf16.mxu0 %v1722
        %1883 = vmatpush1.bf16.msra.mxu0 %v1721
        %1884 = vmatprep.subr.bf16.mxu0 %v1726
        %1885 = vmatpush1.bf16.msra.mxu0 %v1725
        %1886 = vmatprep.subr.bf16.mxu0 %v1730
        %1887 = vmatpush1.bf16.msra.mxu0 %v1729
        %1888 = vmatprep.subr.bf16.mxu0 %v1734
        %1889 = vmatpush1.bf16.msra.mxu0 %v1733
        %1890 = vmatprep.subr.bf16.mxu0 %v1738
        %1891 = vmatpush1.bf16.msra.mxu0 %v1737
        %1892 = vmatprep.subr.bf16.mxu0 %v1742
        %1893 = vmatpush1.bf16.msra.mxu0 %v1741
        %1894 = vmatprep.subr.bf16.mxu0 %v1746
        %1895 = vmatpush1.bf16.msra.mxu0 %v1745
        %1896 = vmatprep.subr.bf16.mxu0 %v1750
        %1897 = vmatpush1.bf16.msra.mxu0 %v1749
        %1898 = vmatprep.subr.bf16.mxu0 %v1754
        %1899 = vmatpush1.bf16.msra.mxu0 %v1753
        %1900 = vmatprep.subr.bf16.mxu0 %v1758
        %1901 = vmatpush1.bf16.msra.mxu0 %v1757
        %1902 = vmatprep.subr.bf16.mxu0 %v1762
        %1903 = vmatpush1.bf16.msra.mxu0 %v1761
        %1904 = vmatprep.subr.bf16.mxu0 %v1766
        %1905 = vmatpush1.bf16.msra.mxu0 %v1765
        %1906 = vmatprep.mubr.bf16.mxu0 %v506
        %1907 = vmatmul.mubr.bf16.gmra.mrb[0].mxu0 %v505
        %v1908 = vpop.f32.mrb[0].mxu0
        %v1909 = vadd.f32 0.0, %v1908
        %v1910 = vpop.f32.mrb[0].mxu0
        %v1911 = vadd.f32 0.0, %v1910
        %v1912 = vpop.f32.mrb[0].mxu0
        %v1913 = vadd.f32 0.0, %v1912
        %v1914 = vpop.f32.mrb[0].mxu0
        %v1915 = vadd.f32 0.0, %v1914
        %1916 = vdwg.mxu0
        %v1917 = vpack.c.bf16 %v930, %v926
        %v1918 = vpack.c.bf16 %v932, %v928
        %v1919 = vpack.c.bf16 %v973, %v969
        %v1920 = vpack.c.bf16 %v975, %v971
        %v1921 = vpack.c.bf16 %v1400, %v1396
        %v1922 = vpack.c.bf16 %v1402, %v1398
        %v1923 = vpack.c.bf16 %v1443, %v1439
        %v1924 = vpack.c.bf16 %v1445, %v1441
        %v1925 = vpack.c.bf16 %v1870, %v1866
        %v1926 = vpack.c.bf16 %v1872, %v1868
        %v1927 = vpack.c.bf16 %v1913, %v1909
        %v1928 = vpack.c.bf16 %v1915, %v1911
        %v1929 = vld [vmem:[%s482] sm:$0xff]
        %vm1930 = vcmp.ne.s32.totalorder %v1929, 0
        %vm1931 = vcmask 523264
        %v1933 = vsel %vm1931, %v1917, 0
        %v1936 = vsel %vm1931, %v1921, 0
        %1938 = vmatprep.subr.bf16.mxu0 0
        %1939 = vmatpush1.bf16.xpose.msra.mxu0 %v1936
        %1940 = vmatprep.subr.bf16.mxu0 0
        %1941 = vmatpush1.bf16.xpose.msra.mxu0 0
        %1942 = vmatprep.subr.bf16.mxu0 0
        %1943 = vmatpush1.bf16.xpose.msra.mxu0 0
        %1944 = vmatprep.subr.bf16.mxu0 0
        %1945 = vmatpush1.bf16.xpose.msra.mxu0 0
        %1946 = vmatprep.subr.bf16.mxu0 0
        %1947 = vmatpush1.bf16.xpose.msra.mxu0 0
        %1948 = vmatprep.subr.bf16.mxu0 0
        %1949 = vmatpush1.bf16.xpose.msra.mxu0 0
        %1950 = vmatprep.subr.bf16.mxu0 0
        %1951 = vmatpush1.bf16.xpose.msra.mxu0 0
        %1952 = vmatprep.subr.bf16.mxu0 0
        %1953 = vmatpush1.bf16.xpose.msra.mxu0 0
        %1954 = vmatprep.subr.bf16.mxu0 0
        %1955 = vmatpush1.bf16.xpose.msra.mxu0 0
        %1956 = vmatprep.subr.bf16.mxu0 0
        %1957 = vmatpush1.bf16.xpose.msra.mxu0 0
        %1958 = vmatprep.subr.bf16.mxu0 0
        %1959 = vmatpush1.bf16.xpose.msra.mxu0 0
        %1960 = vmatprep.subr.bf16.mxu0 0
        %1961 = vmatpush1.bf16.xpose.msra.mxu0 0
        %1962 = vmatprep.subr.bf16.mxu0 0
        %1963 = vmatpush1.bf16.xpose.msra.mxu0 0
        %1964 = vmatprep.subr.bf16.mxu0 0
        %1965 = vmatpush1.bf16.xpose.msra.mxu0 0
        %1966 = vmatprep.subr.bf16.mxu0 0
        %1967 = vmatpush1.bf16.xpose.msra.mxu0 0
        %1968 = vmatprep.subr.bf16.mxu0 0
        %1969 = vmatpush1.bf16.xpose.msra.mxu0 0
        %1970 = vmatprep.mubr.bf16.mxu0 0
        %1971 = vmatmul.mubr.bf16.gmra.mrb[0].mxu0 %v1933
        %v1972 = vpop.f32.mrb[0].mxu0
        %v1973 = vadd.f32 0.0, %v1972
        %v1974 = vpop.f32.mrb[0].mxu0
        %v1975 = vpop.f32.mrb[0].mxu0
        %v1976 = vpop.f32.mrb[0].mxu0
        %1977 = vdwg.mxu0
        %v1978 = vsel %vm1930, -1e+09, %v1973
        %vm1979 = vcmask 64512
        %v1980 = vsel %vm1979, %v1978, -inf
        %1981 = vmax.xlane.f32.xlu0 %v1980
        %v1982 = vpop.xlane.xlu0 %1981
        %v1983 = vsub.f32 %v1978, %v1982
        %v1984 = vmul.f32 %v1983, 1.442695
        %v1985 = vpow.pop %v1984
        %v1986 = vsel %vm1979, %v1985, 0.0
        %1987 = vadd.xlane.f32.xlu0 %v1986
        %v1988 = vpop.xlane.xlu0 %1987
        %v1989 = vrcp.pop %v1988
        %v1990 = vmul.f32 %v1985, %v1989
        %v1991 = vsel %vm1930, 0.0, %v1990
        %v1992 = vpack.c.bf16 %v1991, %v1991
        %v1994 = vsel %vm1979, %v1992, 0
        %vm1996 = vcmask 1043456
        %v1998 = vsel %vm1996, %v1925, 0
        %2000 = vmatprep.subr.bf16.mxu0 0
        %2001 = vmatpush1.bf16.msra.mxu0 %v1998
        %2002 = vmatprep.subr.bf16.mxu0 0
        %2003 = vmatpush1.bf16.msra.mxu0 0
        %2004 = vmatprep.subr.bf16.mxu0 0
        %2005 = vmatpush1.bf16.msra.mxu0 0
        %2006 = vmatprep.subr.bf16.mxu0 0
        %2007 = vmatpush1.bf16.msra.mxu0 0
        %2008 = vmatprep.subr.bf16.mxu0 0
        %2009 = vmatpush1.bf16.msra.mxu0 0
        %2010 = vmatprep.subr.bf16.mxu0 0
        %2011 = vmatpush1.bf16.msra.mxu0 0
        %2012 = vmatprep.subr.bf16.mxu0 0
        %2013 = vmatpush1.bf16.msra.mxu0 0
        %2014 = vmatprep.subr.bf16.mxu0 0
        %2015 = vmatpush1.bf16.msra.mxu0 0
        %2016 = vmatprep.subr.bf16.mxu0 0
        %2017 = vmatpush1.bf16.msra.mxu0 0
        %2018 = vmatprep.subr.bf16.mxu0 0
        %2019 = vmatpush1.bf16.msra.mxu0 0
        %2020 = vmatprep.subr.bf16.mxu0 0
        %2021 = vmatpush1.bf16.msra.mxu0 0
        %2022 = vmatprep.subr.bf16.mxu0 0
        %2023 = vmatpush1.bf16.msra.mxu0 0
        %2024 = vmatprep.subr.bf16.mxu0 0
        %2025 = vmatpush1.bf16.msra.mxu0 0
        %2026 = vmatprep.subr.bf16.mxu0 0
        %2027 = vmatpush1.bf16.msra.mxu0 0
        %2028 = vmatprep.subr.bf16.mxu0 0
        %2029 = vmatpush1.bf16.msra.mxu0 0
        %2030 = vmatprep.subr.bf16.mxu0 0
        %2031 = vmatpush1.bf16.msra.mxu0 0
        %2032 = vmatprep.mubr.bf16.mxu0 0
        %2033 = vmatmul.mubr.bf16.gmra.mrb[0].mxu0 %v1994
        %v2034 = vpop.f32.mrb[0].mxu0
        %v2035 = vadd.f32 0.0, %v2034
        %v2036 = vpop.f32.mrb[0].mxu0
        %v2037 = vpop.f32.mrb[0].mxu0
        %v2038 = vpop.f32.mrb[0].mxu0
        %2039 = vdwg.mxu0
        %2041 = vrot.lane.b32.xlu0 %v1917, 64
        %v2042 = vpop.permute.xlu0 %2041
        %2044 = vrot.lane.b32.xlu0 %v1921, 64
        %v2045 = vpop.permute.xlu0 %2044
        %v2047 = vsel %vm1931, %v2042, 0
        %v2050 = vsel %vm1931, %v2045, 0
        %2052 = vmatprep.subr.bf16.mxu0 0
        %2053 = vmatpush1.bf16.xpose.msra.mxu0 %v2050
        %2054 = vmatprep.subr.bf16.mxu0 0
        %2055 = vmatpush1.bf16.xpose.msra.mxu0 0
        %2056 = vmatprep.subr.bf16.mxu0 0
        %2057 = vmatpush1.bf16.xpose.msra.mxu0 0
        %2058 = vmatprep.subr.bf16.mxu0 0
        %2059 = vmatpush1.bf16.xpose.msra.mxu0 0
        %2060 = vmatprep.subr.bf16.mxu0 0
        %2061 = vmatpush1.bf16.xpose.msra.mxu0 0
        %2062 = vmatprep.subr.bf16.mxu0 0
        %2063 = vmatpush1.bf16.xpose.msra.mxu0 0
        %2064 = vmatprep.subr.bf16.mxu0 0
        %2065 = vmatpush1.bf16.xpose.msra.mxu0 0
        %2066 = vmatprep.subr.bf16.mxu0 0
        %2067 = vmatpush1.bf16.xpose.msra.mxu0 0
        %2068 = vmatprep.subr.bf16.mxu0 0
        %2069 = vmatpush1.bf16.xpose.msra.mxu0 0
        %2070 = vmatprep.subr.bf16.mxu0 0
        %2071 = vmatpush1.bf16.xpose.msra.mxu0 0
        %2072 = vmatprep.subr.bf16.mxu0 0
        %2073 = vmatpush1.bf16.xpose.msra.mxu0 0
        %2074 = vmatprep.subr.bf16.mxu0 0
        %2075 = vmatpush1.bf16.xpose.msra.mxu0 0
        %2076 = vmatprep.subr.bf16.mxu0 0
        %2077 = vmatpush1.bf16.xpose.msra.mxu0 0
        %2078 = vmatprep.subr.bf16.mxu0 0
        %2079 = vmatpush1.bf16.xpose.msra.mxu0 0
        %2080 = vmatprep.subr.bf16.mxu0 0
        %2081 = vmatpush1.bf16.xpose.msra.mxu0 0
        %2082 = vmatprep.subr.bf16.mxu0 0
        %2083 = vmatpush1.bf16.xpose.msra.mxu0 0
        %2084 = vmatprep.mubr.bf16.mxu0 0
        %2085 = vmatmul.mubr.bf16.gmra.mrb[0].mxu0 %v2047
        %v2086 = vpop.f32.mrb[0].mxu0
        %v2087 = vadd.f32 0.0, %v2086
        %v2088 = vpop.f32.mrb[0].mxu0
        %v2089 = vpop.f32.mrb[0].mxu0
        %v2090 = vpop.f32.mrb[0].mxu0
        %2091 = vdwg.mxu0
        %v2092 = vsel %vm1930, -1e+09, %v2087
        %v2093 = vsel %vm1979, %v2092, -inf
        %2094 = vmax.xlane.f32.xlu0 %v2093
        %v2095 = vpop.xlane.xlu0 %2094
        %v2096 = vsub.f32 %v2092, %v2095
        %v2097 = vmul.f32 %v2096, 1.442695
        %v2098 = vpow.pop %v2097
        %v2099 = vsel %vm1979, %v2098, 0.0
        %2100 = vadd.xlane.f32.xlu0 %v2099
        %v2101 = vpop.xlane.xlu0 %2100
        %v2102 = vrcp.pop %v2101
        %v2103 = vmul.f32 %v2098, %v2102
        %v2104 = vsel %vm1930, 0.0, %v2103
        %v2105 = vpack.c.bf16 %v2104, %v2104
        %2107 = vrot.lane.b32.xlu0 %v1925, 64
        %v2108 = vpop.permute.xlu0 %2107
        %v2110 = vsel %vm1979, %v2105, 0
        %v2113 = vsel %vm1996, %v2108, 0
        %2115 = vmatprep.subr.bf16.mxu0 0
        %2116 = vmatpush1.bf16.msra.mxu0 %v2113
        %2117 = vmatprep.subr.bf16.mxu0 0
        %2118 = vmatpush1.bf16.msra.mxu0 0
        %2119 = vmatprep.subr.bf16.mxu0 0
        %2120 = vmatpush1.bf16.msra.mxu0 0
        %2121 = vmatprep.subr.bf16.mxu0 0
        %2122 = vmatpush1.bf16.msra.mxu0 0
        %2123 = vmatprep.subr.bf16.mxu0 0
        %2124 = vmatpush1.bf16.msra.mxu0 0
        %2125 = vmatprep.subr.bf16.mxu0 0
        %2126 = vmatpush1.bf16.msra.mxu0 0
        %2127 = vmatprep.subr.bf16.mxu0 0
        %2128 = vmatpush1.bf16.msra.mxu0 0
        %2129 = vmatprep.subr.bf16.mxu0 0
        %2130 = vmatpush1.bf16.msra.mxu0 0
        %2131 = vmatprep.subr.bf16.mxu0 0
        %2132 = vmatpush1.bf16.msra.mxu0 0
        %2133 = vmatprep.subr.bf16.mxu0 0
        %2134 = vmatpush1.bf16.msra.mxu0 0
        %2135 = vmatprep.subr.bf16.mxu0 0
        %2136 = vmatpush1.bf16.msra.mxu0 0
        %2137 = vmatprep.subr.bf16.mxu0 0
        %2138 = vmatpush1.bf16.msra.mxu0 0
        %2139 = vmatprep.subr.bf16.mxu0 0
        %2140 = vmatpush1.bf16.msra.mxu0 0
        %2141 = vmatprep.subr.bf16.mxu0 0
        %2142 = vmatpush1.bf16.msra.mxu0 0
        %2143 = vmatprep.subr.bf16.mxu0 0
        %2144 = vmatpush1.bf16.msra.mxu0 0
        %2145 = vmatprep.subr.bf16.mxu0 0
        %2146 = vmatpush1.bf16.msra.mxu0 0
        %2147 = vmatprep.mubr.bf16.mxu0 0
        %2148 = vmatmul.mubr.bf16.gmra.mrb[0].mxu0 %v2110
        %v2149 = vpop.f32.mrb[0].mxu0
        %v2150 = vadd.f32 0.0, %v2149
        %v2151 = vpop.f32.mrb[0].mxu0
        %v2152 = vpop.f32.mrb[0].mxu0
        %v2153 = vpop.f32.mrb[0].mxu0
        %2154 = vdwg.mxu0
        %v2156 = vsel %vm1931, %v1918, 0
        %v2159 = vsel %vm1931, %v1922, 0
        %2161 = vmatprep.subr.bf16.mxu0 0
        %2162 = vmatpush1.bf16.xpose.msra.mxu0 %v2159
        %2163 = vmatprep.subr.bf16.mxu0 0
        %2164 = vmatpush1.bf16.xpose.msra.mxu0 0
        %2165 = vmatprep.subr.bf16.mxu0 0
        %2166 = vmatpush1.bf16.xpose.msra.mxu0 0
        %2167 = vmatprep.subr.bf16.mxu0 0
        %2168 = vmatpush1.bf16.xpose.msra.mxu0 0
        %2169 = vmatprep.subr.bf16.mxu0 0
        %2170 = vmatpush1.bf16.xpose.msra.mxu0 0
        %2171 = vmatprep.subr.bf16.mxu0 0
        %2172 = vmatpush1.bf16.xpose.msra.mxu0 0
        %2173 = vmatprep.subr.bf16.mxu0 0
        %2174 = vmatpush1.bf16.xpose.msra.mxu0 0
        %2175 = vmatprep.subr.bf16.mxu0 0
        %2176 = vmatpush1.bf16.xpose.msra.mxu0 0
        %2177 = vmatprep.subr.bf16.mxu0 0
        %2178 = vmatpush1.bf16.xpose.msra.mxu0 0
        %2179 = vmatprep.subr.bf16.mxu0 0
        %2180 = vmatpush1.bf16.xpose.msra.mxu0 0
        %2181 = vmatprep.subr.bf16.mxu0 0
        %2182 = vmatpush1.bf16.xpose.msra.mxu0 0
        %2183 = vmatprep.subr.bf16.mxu0 0
        %2184 = vmatpush1.bf16.xpose.msra.mxu0 0
        %2185 = vmatprep.subr.bf16.mxu0 0
        %2186 = vmatpush1.bf16.xpose.msra.mxu0 0
        %2187 = vmatprep.subr.bf16.mxu0 0
        %2188 = vmatpush1.bf16.xpose.msra.mxu0 0
        %2189 = vmatprep.subr.bf16.mxu0 0
        %2190 = vmatpush1.bf16.xpose.msra.mxu0 0
        %2191 = vmatprep.subr.bf16.mxu0 0
        %2192 = vmatpush1.bf16.xpose.msra.mxu0 0
        %2193 = vmatprep.mubr.bf16.mxu0 0
        %2194 = vmatmul.mubr.bf16.gmra.mrb[0].mxu0 %v2156
        %v2195 = vpop.f32.mrb[0].mxu0
        %v2196 = vadd.f32 0.0, %v2195
        %v2197 = vpop.f32.mrb[0].mxu0
        %v2198 = vpop.f32.mrb[0].mxu0
        %v2199 = vpop.f32.mrb[0].mxu0
        %2200 = vdwg.mxu0
        %v2201 = vsel %vm1930, -1e+09, %v2196
        %v2202 = vsel %vm1979, %v2201, -inf
        %2203 = vmax.xlane.f32.xlu0 %v2202
        %v2204 = vpop.xlane.xlu0 %2203
        %v2205 = vsub.f32 %v2201, %v2204
        %v2206 = vmul.f32 %v2205, 1.442695
        %v2207 = vpow.pop %v2206
        %v2208 = vsel %vm1979, %v2207, 0.0
        %2209 = vadd.xlane.f32.xlu0 %v2208
        %v2210 = vpop.xlane.xlu0 %2209
        %v2211 = vrcp.pop %v2210
        %v2212 = vmul.f32 %v2207, %v2211
        %v2213 = vsel %vm1930, 0.0, %v2212
        %v2214 = vpack.c.bf16 %v2213, %v2213
        %v2216 = vsel %vm1979, %v2214, 0
        %v2219 = vsel %vm1996, %v1926, 0
        %2221 = vmatprep.subr.bf16.mxu0 0
        %2222 = vmatpush1.bf16.msra.mxu0 %v2219
        %2223 = vmatprep.subr.bf16.mxu0 0
        %2224 = vmatpush1.bf16.msra.mxu0 0
        %2225 = vmatprep.subr.bf16.mxu0 0
        %2226 = vmatpush1.bf16.msra.mxu0 0
        %2227 = vmatprep.subr.bf16.mxu0 0
        %2228 = vmatpush1.bf16.msra.mxu0 0
        %2229 = vmatprep.subr.bf16.mxu0 0
        %2230 = vmatpush1.bf16.msra.mxu0 0
        %2231 = vmatprep.subr.bf16.mxu0 0
        %2232 = vmatpush1.bf16.msra.mxu0 0
        %2233 = vmatprep.subr.bf16.mxu0 0
        %2234 = vmatpush1.bf16.msra.mxu0 0
        %2235 = vmatprep.subr.bf16.mxu0 0
        %2236 = vmatpush1.bf16.msra.mxu0 0
        %2237 = vmatprep.subr.bf16.mxu0 0
        %2238 = vmatpush1.bf16.msra.mxu0 0
        %2239 = vmatprep.subr.bf16.mxu0 0
        %2240 = vmatpush1.bf16.msra.mxu0 0
        %2241 = vmatprep.subr.bf16.mxu0 0
        %2242 = vmatpush1.bf16.msra.mxu0 0
        %2243 = vmatprep.subr.bf16.mxu0 0
        %2244 = vmatpush1.bf16.msra.mxu0 0
        %2245 = vmatprep.subr.bf16.mxu0 0
        %2246 = vmatpush1.bf16.msra.mxu0 0
        %2247 = vmatprep.subr.bf16.mxu0 0
        %2248 = vmatpush1.bf16.msra.mxu0 0
        %2249 = vmatprep.subr.bf16.mxu0 0
        %2250 = vmatpush1.bf16.msra.mxu0 0
        %2251 = vmatprep.subr.bf16.mxu0 0
        %2252 = vmatpush1.bf16.msra.mxu0 0
        %2253 = vmatprep.mubr.bf16.mxu0 0
        %2254 = vmatmul.mubr.bf16.gmra.mrb[0].mxu0 %v2216
        %v2255 = vpop.f32.mrb[0].mxu0
        %v2256 = vadd.f32 0.0, %v2255
        %v2257 = vpop.f32.mrb[0].mxu0
        %v2258 = vpop.f32.mrb[0].mxu0
        %v2259 = vpop.f32.mrb[0].mxu0
        %2260 = vdwg.mxu0
        %2262 = vrot.lane.b32.xlu0 %v1918, 64
        %v2263 = vpop.permute.xlu0 %2262
        %2265 = vrot.lane.b32.xlu0 %v1922, 64
        %v2266 = vpop.permute.xlu0 %2265
        %v2268 = vsel %vm1931, %v2263, 0
        %v2271 = vsel %vm1931, %v2266, 0
        %2273 = vmatprep.subr.bf16.mxu0 0
        %2274 = vmatpush1.bf16.xpose.msra.mxu0 %v2271
        %2275 = vmatprep.subr.bf16.mxu0 0
        %2276 = vmatpush1.bf16.xpose.msra.mxu0 0
        %2277 = vmatprep.subr.bf16.mxu0 0
        %2278 = vmatpush1.bf16.xpose.msra.mxu0 0
        %2279 = vmatprep.subr.bf16.mxu0 0
        %2280 = vmatpush1.bf16.xpose.msra.mxu0 0
        %2281 = vmatprep.subr.bf16.mxu0 0
        %2282 = vmatpush1.bf16.xpose.msra.mxu0 0
        %2283 = vmatprep.subr.bf16.mxu0 0
        %2284 = vmatpush1.bf16.xpose.msra.mxu0 0
        %2285 = vmatprep.subr.bf16.mxu0 0
        %2286 = vmatpush1.bf16.xpose.msra.mxu0 0
        %2287 = vmatprep.subr.bf16.mxu0 0
        %2288 = vmatpush1.bf16.xpose.msra.mxu0 0
        %2289 = vmatprep.subr.bf16.mxu0 0
        %2290 = vmatpush1.bf16.xpose.msra.mxu0 0
        %2291 = vmatprep.subr.bf16.mxu0 0
        %2292 = vmatpush1.bf16.xpose.msra.mxu0 0
        %2293 = vmatprep.subr.bf16.mxu0 0
        %2294 = vmatpush1.bf16.xpose.msra.mxu0 0
        %2295 = vmatprep.subr.bf16.mxu0 0
        %2296 = vmatpush1.bf16.xpose.msra.mxu0 0
        %2297 = vmatprep.subr.bf16.mxu0 0
        %2298 = vmatpush1.bf16.xpose.msra.mxu0 0
        %2299 = vmatprep.subr.bf16.mxu0 0
        %2300 = vmatpush1.bf16.xpose.msra.mxu0 0
        %2301 = vmatprep.subr.bf16.mxu0 0
        %2302 = vmatpush1.bf16.xpose.msra.mxu0 0
        %2303 = vmatprep.subr.bf16.mxu0 0
        %2304 = vmatpush1.bf16.xpose.msra.mxu0 0
        %2305 = vmatprep.mubr.bf16.mxu0 0
        %2306 = vmatmul.mubr.bf16.gmra.mrb[0].mxu0 %v2268
        %v2307 = vpop.f32.mrb[0].mxu0
        %v2308 = vadd.f32 0.0, %v2307
        %v2309 = vpop.f32.mrb[0].mxu0
        %v2310 = vpop.f32.mrb[0].mxu0
        %v2311 = vpop.f32.mrb[0].mxu0
        %2312 = vdwg.mxu0
        %v2313 = vsel %vm1930, -1e+09, %v2308
        %v2314 = vsel %vm1979, %v2313, -inf
        %2315 = vmax.xlane.f32.xlu0 %v2314
        %v2316 = vpop.xlane.xlu0 %2315
        %v2317 = vsub.f32 %v2313, %v2316
        %v2318 = vmul.f32 %v2317, 1.442695
        %v2319 = vpow.pop %v2318
        %v2320 = vsel %vm1979, %v2319, 0.0
        %2321 = vadd.xlane.f32.xlu0 %v2320
        %v2322 = vpop.xlane.xlu0 %2321
        %v2323 = vrcp.pop %v2322
        %v2324 = vmul.f32 %v2319, %v2323
        %v2325 = vsel %vm1930, 0.0, %v2324
        %v2326 = vpack.c.bf16 %v2325, %v2325
        %2328 = vrot.lane.b32.xlu0 %v1926, 64
        %v2329 = vpop.permute.xlu0 %2328
        %v2331 = vsel %vm1979, %v2326, 0
        %v2334 = vsel %vm1996, %v2329, 0
        %2336 = vmatprep.subr.bf16.mxu0 0
        %2337 = vmatpush1.bf16.msra.mxu0 %v2334
        %2338 = vmatprep.subr.bf16.mxu0 0
        %2339 = vmatpush1.bf16.msra.mxu0 0
        %2340 = vmatprep.subr.bf16.mxu0 0
        %2341 = vmatpush1.bf16.msra.mxu0 0
        %2342 = vmatprep.subr.bf16.mxu0 0
        %2343 = vmatpush1.bf16.msra.mxu0 0
        %2344 = vmatprep.subr.bf16.mxu0 0
        %2345 = vmatpush1.bf16.msra.mxu0 0
        %2346 = vmatprep.subr.bf16.mxu0 0
        %2347 = vmatpush1.bf16.msra.mxu0 0
        %2348 = vmatprep.subr.bf16.mxu0 0
        %2349 = vmatpush1.bf16.msra.mxu0 0
        %2350 = vmatprep.subr.bf16.mxu0 0
        %2351 = vmatpush1.bf16.msra.mxu0 0
        %2352 = vmatprep.subr.bf16.mxu0 0
        %2353 = vmatpush1.bf16.msra.mxu0 0
        %2354 = vmatprep.subr.bf16.mxu0 0
        %2355 = vmatpush1.bf16.msra.mxu0 0
        %2356 = vmatprep.subr.bf16.mxu0 0
        %2357 = vmatpush1.bf16.msra.mxu0 0
        %2358 = vmatprep.subr.bf16.mxu0 0
        %2359 = vmatpush1.bf16.msra.mxu0 0
        %2360 = vmatprep.subr.bf16.mxu0 0
        %2361 = vmatpush1.bf16.msra.mxu0 0
        %2362 = vmatprep.subr.bf16.mxu0 0
        %2363 = vmatpush1.bf16.msra.mxu0 0
        %2364 = vmatprep.subr.bf16.mxu0 0
        %2365 = vmatpush1.bf16.msra.mxu0 0
        %2366 = vmatprep.subr.bf16.mxu0 0
        %2367 = vmatpush1.bf16.msra.mxu0 0
        %2368 = vmatprep.mubr.bf16.mxu0 0
        %2369 = vmatmul.mubr.bf16.gmra.mrb[0].mxu0 %v2331
        %v2370 = vpop.f32.mrb[0].mxu0
        %v2371 = vadd.f32 0.0, %v2370
        %v2372 = vpop.f32.mrb[0].mxu0
        %v2373 = vpop.f32.mrb[0].mxu0
        %v2374 = vpop.f32.mrb[0].mxu0
        %2375 = vdwg.mxu0
        %v2377 = vsel %vm1931, %v1919, 0
        %v2380 = vsel %vm1931, %v1923, 0
        %2382 = vmatprep.subr.bf16.mxu0 0
        %2383 = vmatpush1.bf16.xpose.msra.mxu0 %v2380
        %2384 = vmatprep.subr.bf16.mxu0 0
        %2385 = vmatpush1.bf16.xpose.msra.mxu0 0
        %2386 = vmatprep.subr.bf16.mxu0 0
        %2387 = vmatpush1.bf16.xpose.msra.mxu0 0
        %2388 = vmatprep.subr.bf16.mxu0 0
        %2389 = vmatpush1.bf16.xpose.msra.mxu0 0
        %2390 = vmatprep.subr.bf16.mxu0 0
        %2391 = vmatpush1.bf16.xpose.msra.mxu0 0
        %2392 = vmatprep.subr.bf16.mxu0 0
        %2393 = vmatpush1.bf16.xpose.msra.mxu0 0
        %2394 = vmatprep.subr.bf16.mxu0 0
        %2395 = vmatpush1.bf16.xpose.msra.mxu0 0
        %2396 = vmatprep.subr.bf16.mxu0 0
        %2397 = vmatpush1.bf16.xpose.msra.mxu0 0
        %2398 = vmatprep.subr.bf16.mxu0 0
        %2399 = vmatpush1.bf16.xpose.msra.mxu0 0
        %2400 = vmatprep.subr.bf16.mxu0 0
        %2401 = vmatpush1.bf16.xpose.msra.mxu0 0
        %2402 = vmatprep.subr.bf16.mxu0 0
        %2403 = vmatpush1.bf16.xpose.msra.mxu0 0
        %2404 = vmatprep.subr.bf16.mxu0 0
        %2405 = vmatpush1.bf16.xpose.msra.mxu0 0
        %2406 = vmatprep.subr.bf16.mxu0 0
        %2407 = vmatpush1.bf16.xpose.msra.mxu0 0
        %2408 = vmatprep.subr.bf16.mxu0 0
        %2409 = vmatpush1.bf16.xpose.msra.mxu0 0
        %2410 = vmatprep.subr.bf16.mxu0 0
        %2411 = vmatpush1.bf16.xpose.msra.mxu0 0
        %2412 = vmatprep.subr.bf16.mxu0 0
        %2413 = vmatpush1.bf16.xpose.msra.mxu0 0
        %2414 = vmatprep.mubr.bf16.mxu0 0
        %2415 = vmatmul.mubr.bf16.gmra.mrb[0].mxu0 %v2377
        %v2416 = vpop.f32.mrb[0].mxu0
        %v2417 = vadd.f32 0.0, %v2416
        %v2418 = vpop.f32.mrb[0].mxu0
        %v2419 = vpop.f32.mrb[0].mxu0
        %v2420 = vpop.f32.mrb[0].mxu0
        %2421 = vdwg.mxu0
        %v2422 = vsel %vm1930, -1e+09, %v2417
        %v2423 = vsel %vm1979, %v2422, -inf
        %2424 = vmax.xlane.f32.xlu0 %v2423
        %v2425 = vpop.xlane.xlu0 %2424
        %v2426 = vsub.f32 %v2422, %v2425
        %v2427 = vmul.f32 %v2426, 1.442695
        %v2428 = vpow.pop %v2427
        %v2429 = vsel %vm1979, %v2428, 0.0
        %2430 = vadd.xlane.f32.xlu0 %v2429
        %v2431 = vpop.xlane.xlu0 %2430
        %v2432 = vrcp.pop %v2431
        %v2433 = vmul.f32 %v2428, %v2432
        %v2434 = vsel %vm1930, 0.0, %v2433
        %v2435 = vpack.c.bf16 %v2434, %v2434
        %v2437 = vsel %vm1979, %v2435, 0
        %v2440 = vsel %vm1996, %v1927, 0
        %2442 = vmatprep.subr.bf16.mxu0 0
        %2443 = vmatpush1.bf16.msra.mxu0 %v2440
        %2444 = vmatprep.subr.bf16.mxu0 0
        %2445 = vmatpush1.bf16.msra.mxu0 0
        %2446 = vmatprep.subr.bf16.mxu0 0
        %2447 = vmatpush1.bf16.msra.mxu0 0
        %2448 = vmatprep.subr.bf16.mxu0 0
        %2449 = vmatpush1.bf16.msra.mxu0 0
        %2450 = vmatprep.subr.bf16.mxu0 0
        %2451 = vmatpush1.bf16.msra.mxu0 0
        %2452 = vmatprep.subr.bf16.mxu0 0
        %2453 = vmatpush1.bf16.msra.mxu0 0
        %2454 = vmatprep.subr.bf16.mxu0 0
        %2455 = vmatpush1.bf16.msra.mxu0 0
        %2456 = vmatprep.subr.bf16.mxu0 0
        %2457 = vmatpush1.bf16.msra.mxu0 0
        %2458 = vmatprep.subr.bf16.mxu0 0
        %2459 = vmatpush1.bf16.msra.mxu0 0
        %2460 = vmatprep.subr.bf16.mxu0 0
        %2461 = vmatpush1.bf16.msra.mxu0 0
        %2462 = vmatprep.subr.bf16.mxu0 0
        %2463 = vmatpush1.bf16.msra.mxu0 0
        %2464 = vmatprep.subr.bf16.mxu0 0
        %2465 = vmatpush1.bf16.msra.mxu0 0
        %2466 = vmatprep.subr.bf16.mxu0 0
        %2467 = vmatpush1.bf16.msra.mxu0 0
        %2468 = vmatprep.subr.bf16.mxu0 0
        %2469 = vmatpush1.bf16.msra.mxu0 0
        %2470 = vmatprep.subr.bf16.mxu0 0
        %2471 = vmatpush1.bf16.msra.mxu0 0
        %2472 = vmatprep.subr.bf16.mxu0 0
        %2473 = vmatpush1.bf16.msra.mxu0 0
        %2474 = vmatprep.mubr.bf16.mxu0 0
        %2475 = vmatmul.mubr.bf16.gmra.mrb[0].mxu0 %v2437
        %v2476 = vpop.f32.mrb[0].mxu0
        %v2477 = vadd.f32 0.0, %v2476
        %v2478 = vpop.f32.mrb[0].mxu0
        %v2479 = vpop.f32.mrb[0].mxu0
        %v2480 = vpop.f32.mrb[0].mxu0
        %2481 = vdwg.mxu0
        %2483 = vrot.lane.b32.xlu0 %v1919, 64
        %v2484 = vpop.permute.xlu0 %2483
        %2486 = vrot.lane.b32.xlu0 %v1923, 64
        %v2487 = vpop.permute.xlu0 %2486
        %v2489 = vsel %vm1931, %v2484, 0
        %v2492 = vsel %vm1931, %v2487, 0
        %2494 = vmatprep.subr.bf16.mxu0 0
        %2495 = vmatpush1.bf16.xpose.msra.mxu0 %v2492
        %2496 = vmatprep.subr.bf16.mxu0 0
        %2497 = vmatpush1.bf16.xpose.msra.mxu0 0
        %2498 = vmatprep.subr.bf16.mxu0 0
        %2499 = vmatpush1.bf16.xpose.msra.mxu0 0
        %2500 = vmatprep.subr.bf16.mxu0 0
        %2501 = vmatpush1.bf16.xpose.msra.mxu0 0
        %2502 = vmatprep.subr.bf16.mxu0 0
        %2503 = vmatpush1.bf16.xpose.msra.mxu0 0
        %2504 = vmatprep.subr.bf16.mxu0 0
        %2505 = vmatpush1.bf16.xpose.msra.mxu0 0
        %2506 = vmatprep.subr.bf16.mxu0 0
        %2507 = vmatpush1.bf16.xpose.msra.mxu0 0
        %2508 = vmatprep.subr.bf16.mxu0 0
        %2509 = vmatpush1.bf16.xpose.msra.mxu0 0
        %2510 = vmatprep.subr.bf16.mxu0 0
        %2511 = vmatpush1.bf16.xpose.msra.mxu0 0
        %2512 = vmatprep.subr.bf16.mxu0 0
        %2513 = vmatpush1.bf16.xpose.msra.mxu0 0
        %2514 = vmatprep.subr.bf16.mxu0 0
        %2515 = vmatpush1.bf16.xpose.msra.mxu0 0
        %2516 = vmatprep.subr.bf16.mxu0 0
        %2517 = vmatpush1.bf16.xpose.msra.mxu0 0
        %2518 = vmatprep.subr.bf16.mxu0 0
        %2519 = vmatpush1.bf16.xpose.msra.mxu0 0
        %2520 = vmatprep.subr.bf16.mxu0 0
        %2521 = vmatpush1.bf16.xpose.msra.mxu0 0
        %2522 = vmatprep.subr.bf16.mxu0 0
        %2523 = vmatpush1.bf16.xpose.msra.mxu0 0
        %2524 = vmatprep.subr.bf16.mxu0 0
        %2525 = vmatpush1.bf16.xpose.msra.mxu0 0
        %2526 = vmatprep.mubr.bf16.mxu0 0
        %2527 = vmatmul.mubr.bf16.gmra.mrb[0].mxu0 %v2489
        %v2528 = vpop.f32.mrb[0].mxu0
        %v2529 = vadd.f32 0.0, %v2528
        %v2530 = vpop.f32.mrb[0].mxu0
        %v2531 = vpop.f32.mrb[0].mxu0
        %v2532 = vpop.f32.mrb[0].mxu0
        %2533 = vdwg.mxu0
        %v2534 = vsel %vm1930, -1e+09, %v2529
        %v2535 = vsel %vm1979, %v2534, -inf
        %2536 = vmax.xlane.f32.xlu0 %v2535
        %v2537 = vpop.xlane.xlu0 %2536
        %v2538 = vsub.f32 %v2534, %v2537
        %v2539 = vmul.f32 %v2538, 1.442695
        %v2540 = vpow.pop %v2539
        %v2541 = vsel %vm1979, %v2540, 0.0
        %2542 = vadd.xlane.f32.xlu0 %v2541
        %v2543 = vpop.xlane.xlu0 %2542
        %v2544 = vrcp.pop %v2543
        %v2545 = vmul.f32 %v2540, %v2544
        %v2546 = vsel %vm1930, 0.0, %v2545
        %v2547 = vpack.c.bf16 %v2546, %v2546
        %2549 = vrot.lane.b32.xlu0 %v1927, 64
        %v2550 = vpop.permute.xlu0 %2549
        %v2552 = vsel %vm1979, %v2547, 0
        %v2555 = vsel %vm1996, %v2550, 0
        %2557 = vmatprep.subr.bf16.mxu0 0
        %2558 = vmatpush1.bf16.msra.mxu0 %v2555
        %2559 = vmatprep.subr.bf16.mxu0 0
        %2560 = vmatpush1.bf16.msra.mxu0 0
        %2561 = vmatprep.subr.bf16.mxu0 0
        %2562 = vmatpush1.bf16.msra.mxu0 0
        %2563 = vmatprep.subr.bf16.mxu0 0
        %2564 = vmatpush1.bf16.msra.mxu0 0
        %2565 = vmatprep.subr.bf16.mxu0 0
        %2566 = vmatpush1.bf16.msra.mxu0 0
        %2567 = vmatprep.subr.bf16.mxu0 0
        %2568 = vmatpush1.bf16.msra.mxu0 0
        %2569 = vmatprep.subr.bf16.mxu0 0
        %2570 = vmatpush1.bf16.msra.mxu0 0
        %2571 = vmatprep.subr.bf16.mxu0 0
        %2572 = vmatpush1.bf16.msra.mxu0 0
        %2573 = vmatprep.subr.bf16.mxu0 0
        %2574 = vmatpush1.bf16.msra.mxu0 0
        %2575 = vmatprep.subr.bf16.mxu0 0
        %2576 = vmatpush1.bf16.msra.mxu0 0
        %2577 = vmatprep.subr.bf16.mxu0 0
        %2578 = vmatpush1.bf16.msra.mxu0 0
        %2579 = vmatprep.subr.bf16.mxu0 0
        %2580 = vmatpush1.bf16.msra.mxu0 0
        %2581 = vmatprep.subr.bf16.mxu0 0
        %2582 = vmatpush1.bf16.msra.mxu0 0
        %2583 = vmatprep.subr.bf16.mxu0 0
        %2584 = vmatpush1.bf16.msra.mxu0 0
        %2585 = vmatprep.subr.bf16.mxu0 0
        %2586 = vmatpush1.bf16.msra.mxu0 0
        %2587 = vmatprep.subr.bf16.mxu0 0
        %2588 = vmatpush1.bf16.msra.mxu0 0
        %2589 = vmatprep.mubr.bf16.mxu0 0
        %2590 = vmatmul.mubr.bf16.gmra.mrb[0].mxu0 %v2552
        %v2591 = vpop.f32.mrb[0].mxu0
        %v2592 = vadd.f32 0.0, %v2591
        %v2593 = vpop.f32.mrb[0].mxu0
        %v2594 = vpop.f32.mrb[0].mxu0
        %v2595 = vpop.f32.mrb[0].mxu0
        %2596 = vdwg.mxu0
        %v2598 = vsel %vm1931, %v1920, 0
        %v2601 = vsel %vm1931, %v1924, 0
        %2603 = vmatprep.subr.bf16.mxu0 0
        %2604 = vmatpush1.bf16.xpose.msra.mxu0 %v2601
        %2605 = vmatprep.subr.bf16.mxu0 0
        %2606 = vmatpush1.bf16.xpose.msra.mxu0 0
        %2607 = vmatprep.subr.bf16.mxu0 0
        %2608 = vmatpush1.bf16.xpose.msra.mxu0 0
        %2609 = vmatprep.subr.bf16.mxu0 0
        %2610 = vmatpush1.bf16.xpose.msra.mxu0 0
        %2611 = vmatprep.subr.bf16.mxu0 0
        %2612 = vmatpush1.bf16.xpose.msra.mxu0 0
        %2613 = vmatprep.subr.bf16.mxu0 0
        %2614 = vmatpush1.bf16.xpose.msra.mxu0 0
        %2615 = vmatprep.subr.bf16.mxu0 0
        %2616 = vmatpush1.bf16.xpose.msra.mxu0 0
        %2617 = vmatprep.subr.bf16.mxu0 0
        %2618 = vmatpush1.bf16.xpose.msra.mxu0 0
        %2619 = vmatprep.subr.bf16.mxu0 0
        %2620 = vmatpush1.bf16.xpose.msra.mxu0 0
        %2621 = vmatprep.subr.bf16.mxu0 0
        %2622 = vmatpush1.bf16.xpose.msra.mxu0 0
        %2623 = vmatprep.subr.bf16.mxu0 0
        %2624 = vmatpush1.bf16.xpose.msra.mxu0 0
        %2625 = vmatprep.subr.bf16.mxu0 0
        %2626 = vmatpush1.bf16.xpose.msra.mxu0 0
        %2627 = vmatprep.subr.bf16.mxu0 0
        %2628 = vmatpush1.bf16.xpose.msra.mxu0 0
        %2629 = vmatprep.subr.bf16.mxu0 0
        %2630 = vmatpush1.bf16.xpose.msra.mxu0 0
        %2631 = vmatprep.subr.bf16.mxu0 0
        %2632 = vmatpush1.bf16.xpose.msra.mxu0 0
        %2633 = vmatprep.subr.bf16.mxu0 0
        %2634 = vmatpush1.bf16.xpose.msra.mxu0 0
        %2635 = vmatprep.mubr.bf16.mxu0 0
        %2636 = vmatmul.mubr.bf16.gmra.mrb[0].mxu0 %v2598
        %v2637 = vpop.f32.mrb[0].mxu0
        %v2638 = vadd.f32 0.0, %v2637
        %v2639 = vpop.f32.mrb[0].mxu0
        %v2640 = vpop.f32.mrb[0].mxu0
        %v2641 = vpop.f32.mrb[0].mxu0
        %2642 = vdwg.mxu0
        %v2643 = vsel %vm1930, -1e+09, %v2638
        %v2644 = vsel %vm1979, %v2643, -inf
        %2645 = vmax.xlane.f32.xlu0 %v2644
        %v2646 = vpop.xlane.xlu0 %2645
        %v2647 = vsub.f32 %v2643, %v2646
        %v2648 = vmul.f32 %v2647, 1.442695
        %v2649 = vpow.pop %v2648
        %v2650 = vsel %vm1979, %v2649, 0.0
        %2651 = vadd.xlane.f32.xlu0 %v2650
        %v2652 = vpop.xlane.xlu0 %2651
        %v2653 = vrcp.pop %v2652
        %v2654 = vmul.f32 %v2649, %v2653
        %v2655 = vsel %vm1930, 0.0, %v2654
        %v2656 = vpack.c.bf16 %v2655, %v2655
        %v2658 = vsel %vm1979, %v2656, 0
        %v2661 = vsel %vm1996, %v1928, 0
        %2663 = vmatprep.subr.bf16.mxu0 0
        %2664 = vmatpush1.bf16.msra.mxu0 %v2661
        %2665 = vmatprep.subr.bf16.mxu0 0
        %2666 = vmatpush1.bf16.msra.mxu0 0
        %2667 = vmatprep.subr.bf16.mxu0 0
        %2668 = vmatpush1.bf16.msra.mxu0 0
        %2669 = vmatprep.subr.bf16.mxu0 0
        %2670 = vmatpush1.bf16.msra.mxu0 0
        %2671 = vmatprep.subr.bf16.mxu0 0
        %2672 = vmatpush1.bf16.msra.mxu0 0
        %2673 = vmatprep.subr.bf16.mxu0 0
        %2674 = vmatpush1.bf16.msra.mxu0 0
        %2675 = vmatprep.subr.bf16.mxu0 0
        %2676 = vmatpush1.bf16.msra.mxu0 0
        %2677 = vmatprep.subr.bf16.mxu0 0
        %2678 = vmatpush1.bf16.msra.mxu0 0
        %2679 = vmatprep.subr.bf16.mxu0 0
        %2680 = vmatpush1.bf16.msra.mxu0 0
        %2681 = vmatprep.subr.bf16.mxu0 0
        %2682 = vmatpush1.bf16.msra.mxu0 0
        %2683 = vmatprep.subr.bf16.mxu0 0
        %2684 = vmatpush1.bf16.msra.mxu0 0
        %2685 = vmatprep.subr.bf16.mxu0 0
        %2686 = vmatpush1.bf16.msra.mxu0 0
        %2687 = vmatprep.subr.bf16.mxu0 0
        %2688 = vmatpush1.bf16.msra.mxu0 0
        %2689 = vmatprep.subr.bf16.mxu0 0
        %2690 = vmatpush1.bf16.msra.mxu0 0
        %2691 = vmatprep.subr.bf16.mxu0 0
        %2692 = vmatpush1.bf16.msra.mxu0 0
        %2693 = vmatprep.subr.bf16.mxu0 0
        %2694 = vmatpush1.bf16.msra.mxu0 0
        %2695 = vmatprep.mubr.bf16.mxu0 0
        %2696 = vmatmul.mubr.bf16.gmra.mrb[0].mxu0 %v2658
        %v2697 = vpop.f32.mrb[0].mxu0
        %v2698 = vadd.f32 0.0, %v2697
        %v2699 = vpop.f32.mrb[0].mxu0
        %v2700 = vpop.f32.mrb[0].mxu0
        %v2701 = vpop.f32.mrb[0].mxu0
        %2702 = vdwg.mxu0
        %2704 = vrot.lane.b32.xlu0 %v1920, 64
        %v2705 = vpop.permute.xlu0 %2704
        %2707 = vrot.lane.b32.xlu0 %v1924, 64
        %v2708 = vpop.permute.xlu0 %2707
        %v2710 = vsel %vm1931, %v2705, 0
        %v2713 = vsel %vm1931, %v2708, 0
        %2715 = vmatprep.subr.bf16.mxu0 0
        %2716 = vmatpush1.bf16.xpose.msra.mxu0 %v2713
        %2717 = vmatprep.subr.bf16.mxu0 0
        %2718 = vmatpush1.bf16.xpose.msra.mxu0 0
        %2719 = vmatprep.subr.bf16.mxu0 0
        %2720 = vmatpush1.bf16.xpose.msra.mxu0 0
        %2721 = vmatprep.subr.bf16.mxu0 0
        %2722 = vmatpush1.bf16.xpose.msra.mxu0 0
        %2723 = vmatprep.subr.bf16.mxu0 0
        %2724 = vmatpush1.bf16.xpose.msra.mxu0 0
        %2725 = vmatprep.subr.bf16.mxu0 0
        %2726 = vmatpush1.bf16.xpose.msra.mxu0 0
        %2727 = vmatprep.subr.bf16.mxu0 0
        %2728 = vmatpush1.bf16.xpose.msra.mxu0 0
        %2729 = vmatprep.subr.bf16.mxu0 0
        %2730 = vmatpush1.bf16.xpose.msra.mxu0 0
        %2731 = vmatprep.subr.bf16.mxu0 0
        %2732 = vmatpush1.bf16.xpose.msra.mxu0 0
        %2733 = vmatprep.subr.bf16.mxu0 0
        %2734 = vmatpush1.bf16.xpose.msra.mxu0 0
        %2735 = vmatprep.subr.bf16.mxu0 0
        %2736 = vmatpush1.bf16.xpose.msra.mxu0 0
        %2737 = vmatprep.subr.bf16.mxu0 0
        %2738 = vmatpush1.bf16.xpose.msra.mxu0 0
        %2739 = vmatprep.subr.bf16.mxu0 0
        %2740 = vmatpush1.bf16.xpose.msra.mxu0 0
        %2741 = vmatprep.subr.bf16.mxu0 0
        %2742 = vmatpush1.bf16.xpose.msra.mxu0 0
        %2743 = vmatprep.subr.bf16.mxu0 0
        %2744 = vmatpush1.bf16.xpose.msra.mxu0 0
        %2745 = vmatprep.subr.bf16.mxu0 0
        %2746 = vmatpush1.bf16.xpose.msra.mxu0 0
        %2747 = vmatprep.mubr.bf16.mxu0 0
        %2748 = vmatmul.mubr.bf16.gmra.mrb[0].mxu0 %v2710
        %v2749 = vpop.f32.mrb[0].mxu0
        %v2750 = vadd.f32 0.0, %v2749
        %v2751 = vpop.f32.mrb[0].mxu0
        %v2752 = vpop.f32.mrb[0].mxu0
        %v2753 = vpop.f32.mrb[0].mxu0
        %2754 = vdwg.mxu0
        %v2755 = vsel %vm1930, -1e+09, %v2750
        %v2756 = vsel %vm1979, %v2755, -inf
        %2757 = vmax.xlane.f32.xlu0 %v2756
        %v2758 = vpop.xlane.xlu0 %2757
        %v2759 = vsub.f32 %v2755, %v2758
        %v2760 = vmul.f32 %v2759, 1.442695
        %v2761 = vpow.pop %v2760
        %v2762 = vsel %vm1979, %v2761, 0.0
        %2763 = vadd.xlane.f32.xlu0 %v2762
        %v2764 = vpop.xlane.xlu0 %2763
        %v2765 = vrcp.pop %v2764
        %v2766 = vmul.f32 %v2761, %v2765
        %v2767 = vsel %vm1930, 0.0, %v2766
        %v2768 = vpack.c.bf16 %v2767, %v2767
        %2770 = vrot.lane.b32.xlu0 %v1928, 64
        %v2771 = vpop.permute.xlu0 %2770
        %v2773 = vsel %vm1979, %v2768, 0
        %v2776 = vsel %vm1996, %v2771, 0
        %2778 = vmatprep.subr.bf16.mxu0 0
        %2779 = vmatpush1.bf16.msra.mxu0 %v2776
        %2780 = vmatprep.subr.bf16.mxu0 0
        %2781 = vmatpush1.bf16.msra.mxu0 0
        %2782 = vmatprep.subr.bf16.mxu0 0
        %2783 = vmatpush1.bf16.msra.mxu0 0
        %2784 = vmatprep.subr.bf16.mxu0 0
        %2785 = vmatpush1.bf16.msra.mxu0 0
        %2786 = vmatprep.subr.bf16.mxu0 0
        %2787 = vmatpush1.bf16.msra.mxu0 0
        %2788 = vmatprep.subr.bf16.mxu0 0
        %2789 = vmatpush1.bf16.msra.mxu0 0
        %2790 = vmatprep.subr.bf16.mxu0 0
        %2791 = vmatpush1.bf16.msra.mxu0 0
        %2792 = vmatprep.subr.bf16.mxu0 0
        %2793 = vmatpush1.bf16.msra.mxu0 0
        %2794 = vmatprep.subr.bf16.mxu0 0
        %2795 = vmatpush1.bf16.msra.mxu0 0
        %2796 = vmatprep.subr.bf16.mxu0 0
        %2797 = vmatpush1.bf16.msra.mxu0 0
        %2798 = vmatprep.subr.bf16.mxu0 0
        %2799 = vmatpush1.bf16.msra.mxu0 0
        %2800 = vmatprep.subr.bf16.mxu0 0
        %2801 = vmatpush1.bf16.msra.mxu0 0
        %2802 = vmatprep.subr.bf16.mxu0 0
        %2803 = vmatpush1.bf16.msra.mxu0 0
        %2804 = vmatprep.subr.bf16.mxu0 0
        %2805 = vmatpush1.bf16.msra.mxu0 0
        %2806 = vmatprep.subr.bf16.mxu0 0
        %2807 = vmatpush1.bf16.msra.mxu0 0
        %2808 = vmatprep.subr.bf16.mxu0 0
        %2809 = vmatpush1.bf16.msra.mxu0 0
        %2810 = vmatprep.mubr.bf16.mxu0 0
        %2811 = vmatmul.mubr.bf16.gmra.mrb[0].mxu0 %v2773
        %v2812 = vpop.f32.mrb[0].mxu0
        %v2813 = vadd.f32 0.0, %v2812
        %v2814 = vpop.f32.mrb[0].mxu0
        %v2815 = vpop.f32.mrb[0].mxu0
        %v2816 = vpop.f32.mrb[0].mxu0
        %2817 = vdwg.mxu0
        %2819 = vrot.lane.b32.xlu0 %v2150, 64
        %v2820 = vpop.permute.xlu0 %2819
        %2823 = vrot.lane.b32.xlu0 %v2371, 64
        %v2824 = vpop.permute.xlu0 %2823
        %2827 = vrot.lane.b32.xlu0 %v2592, 64
        %v2828 = vpop.permute.xlu0 %2827
        %2831 = vrot.lane.b32.xlu0 %v2813, 64
        %v2832 = vpop.permute.xlu0 %2831
        %v2834 = vsel %vm1931, %v2035, %v2820
        %v2835 = vsel %vm1931, %v2256, %v2824
        %v2836 = vsel %vm1931, %v2477, %v2828
        %v2837 = vsel %vm1931, %v2698, %v2832
        %s2838 = scalar_lea.vmem %s482, 8
        %v2839 = vld [vmem:[%s2838] sm:$0xff]
        %vm2840 = vcmp.ne.s32.totalorder %v2839, 0
        %v2841 = vrot.slane %v1917, 4
        %v2842 = vrot.slane %v1921, 4
        %v2844 = vsel %vm1931, %v2841, 0
        %v2847 = vsel %vm1931, %v2842, 0
        %2849 = vmatprep.subr.bf16.mxu0 0
        %2850 = vmatpush1.bf16.xpose.msra.mxu0 %v2847
        %2851 = vmatprep.subr.bf16.mxu0 0
        %2852 = vmatpush1.bf16.xpose.msra.mxu0 0
        %2853 = vmatprep.subr.bf16.mxu0 0
        %2854 = vmatpush1.bf16.xpose.msra.mxu0 0
        %2855 = vmatprep.subr.bf16.mxu0 0
        %2856 = vmatpush1.bf16.xpose.msra.mxu0 0
        %2857 = vmatprep.subr.bf16.mxu0 0
        %2858 = vmatpush1.bf16.xpose.msra.mxu0 0
        %2859 = vmatprep.subr.bf16.mxu0 0
        %2860 = vmatpush1.bf16.xpose.msra.mxu0 0
        %2861 = vmatprep.subr.bf16.mxu0 0
        %2862 = vmatpush1.bf16.xpose.msra.mxu0 0
        %2863 = vmatprep.subr.bf16.mxu0 0
        %2864 = vmatpush1.bf16.xpose.msra.mxu0 0
        %2865 = vmatprep.subr.bf16.mxu0 0
        %2866 = vmatpush1.bf16.xpose.msra.mxu0 0
        %2867 = vmatprep.subr.bf16.mxu0 0
        %2868 = vmatpush1.bf16.xpose.msra.mxu0 0
        %2869 = vmatprep.subr.bf16.mxu0 0
        %2870 = vmatpush1.bf16.xpose.msra.mxu0 0
        %2871 = vmatprep.subr.bf16.mxu0 0
        %2872 = vmatpush1.bf16.xpose.msra.mxu0 0
        %2873 = vmatprep.subr.bf16.mxu0 0
        %2874 = vmatpush1.bf16.xpose.msra.mxu0 0
        %2875 = vmatprep.subr.bf16.mxu0 0
        %2876 = vmatpush1.bf16.xpose.msra.mxu0 0
        %2877 = vmatprep.subr.bf16.mxu0 0
        %2878 = vmatpush1.bf16.xpose.msra.mxu0 0
        %2879 = vmatprep.subr.bf16.mxu0 0
        %2880 = vmatpush1.bf16.xpose.msra.mxu0 0
        %2881 = vmatprep.mubr.bf16.mxu0 0
        %2882 = vmatmul.mubr.bf16.gmra.mrb[0].mxu0 %v2844
        %v2883 = vpop.f32.mrb[0].mxu0
        %v2884 = vadd.f32 0.0, %v2883
        %v2885 = vpop.f32.mrb[0].mxu0
        %v2886 = vpop.f32.mrb[0].mxu0
        %v2887 = vpop.f32.mrb[0].mxu0
        %2888 = vdwg.mxu0
        %v2889 = vsel %vm2840, -1e+09, %v2884
        %v2890 = vsel %vm1979, %v2889, -inf
        %2891 = vmax.xlane.f32.xlu0 %v2890
        %v2892 = vpop.xlane.xlu0 %2891
        %v2893 = vsub.f32 %v2889, %v2892
        %v2894 = vmul.f32 %v2893, 1.442695
        %v2895 = vpow.pop %v2894
        %v2896 = vsel %vm1979, %v2895, 0.0
        %2897 = vadd.xlane.f32.xlu0 %v2896
        %v2898 = vpop.xlane.xlu0 %2897
        %v2899 = vrcp.pop %v2898
        %v2900 = vmul.f32 %v2895, %v2899
        %v2901 = vsel %vm2840, 0.0, %v2900
        %v2902 = vpack.c.bf16 %v2901, %v2901
        %v2903 = vrot.slane %v1925, 4
        %v2905 = vsel %vm1979, %v2902, 0
        %v2908 = vsel %vm1996, %v2903, 0
        %2910 = vmatprep.subr.bf16.mxu0 0
        %2911 = vmatpush1.bf16.msra.mxu0 %v2908
        %2912 = vmatprep.subr.bf16.mxu0 0
        %2913 = vmatpush1.bf16.msra.mxu0 0
        %2914 = vmatprep.subr.bf16.mxu0 0
        %2915 = vmatpush1.bf16.msra.mxu0 0
        %2916 = vmatprep.subr.bf16.mxu0 0
        %2917 = vmatpush1.bf16.msra.mxu0 0
        %2918 = vmatprep.subr.bf16.mxu0 0
        %2919 = vmatpush1.bf16.msra.mxu0 0
        %2920 = vmatprep.subr.bf16.mxu0 0
        %2921 = vmatpush1.bf16.msra.mxu0 0
        %2922 = vmatprep.subr.bf16.mxu0 0
        %2923 = vmatpush1.bf16.msra.mxu0 0
        %2924 = vmatprep.subr.bf16.mxu0 0
        %2925 = vmatpush1.bf16.msra.mxu0 0
        %2926 = vmatprep.subr.bf16.mxu0 0
        %2927 = vmatpush1.bf16.msra.mxu0 0
        %2928 = vmatprep.subr.bf16.mxu0 0
        %2929 = vmatpush1.bf16.msra.mxu0 0
        %2930 = vmatprep.subr.bf16.mxu0 0
        %2931 = vmatpush1.bf16.msra.mxu0 0
        %2932 = vmatprep.subr.bf16.mxu0 0
        %2933 = vmatpush1.bf16.msra.mxu0 0
        %2934 = vmatprep.subr.bf16.mxu0 0
        %2935 = vmatpush1.bf16.msra.mxu0 0
        %2936 = vmatprep.subr.bf16.mxu0 0
        %2937 = vmatpush1.bf16.msra.mxu0 0
        %2938 = vmatprep.subr.bf16.mxu0 0
        %2939 = vmatpush1.bf16.msra.mxu0 0
        %2940 = vmatprep.subr.bf16.mxu0 0
        %2941 = vmatpush1.bf16.msra.mxu0 0
        %2942 = vmatprep.mubr.bf16.mxu0 0
        %2943 = vmatmul.mubr.bf16.gmra.mrb[0].mxu0 %v2905
        %v2944 = vpop.f32.mrb[0].mxu0
        %v2945 = vadd.f32 0.0, %v2944
        %v2946 = vpop.f32.mrb[0].mxu0
        %v2947 = vpop.f32.mrb[0].mxu0
        %v2948 = vpop.f32.mrb[0].mxu0
        %2949 = vdwg.mxu0
        %2950 = vrot.lane.b32.xlu0 %v2841, 64
        %v2951 = vpop.permute.xlu0 %2950
        %2952 = vrot.lane.b32.xlu0 %v2842, 64
        %v2953 = vpop.permute.xlu0 %2952
        %v2955 = vsel %vm1931, %v2951, 0
        %v2958 = vsel %vm1931, %v2953, 0
        %2960 = vmatprep.subr.bf16.mxu0 0
        %2961 = vmatpush1.bf16.xpose.msra.mxu0 %v2958
        %2962 = vmatprep.subr.bf16.mxu0 0
        %2963 = vmatpush1.bf16.xpose.msra.mxu0 0
        %2964 = vmatprep.subr.bf16.mxu0 0
        %2965 = vmatpush1.bf16.xpose.msra.mxu0 0
        %2966 = vmatprep.subr.bf16.mxu0 0
        %2967 = vmatpush1.bf16.xpose.msra.mxu0 0
        %2968 = vmatprep.subr.bf16.mxu0 0
        %2969 = vmatpush1.bf16.xpose.msra.mxu0 0
        %2970 = vmatprep.subr.bf16.mxu0 0
        %2971 = vmatpush1.bf16.xpose.msra.mxu0 0
        %2972 = vmatprep.subr.bf16.mxu0 0
        %2973 = vmatpush1.bf16.xpose.msra.mxu0 0
        %2974 = vmatprep.subr.bf16.mxu0 0
        %2975 = vmatpush1.bf16.xpose.msra.mxu0 0
        %2976 = vmatprep.subr.bf16.mxu0 0
        %2977 = vmatpush1.bf16.xpose.msra.mxu0 0
        %2978 = vmatprep.subr.bf16.mxu0 0
        %2979 = vmatpush1.bf16.xpose.msra.mxu0 0
        %2980 = vmatprep.subr.bf16.mxu0 0
        %2981 = vmatpush1.bf16.xpose.msra.mxu0 0
        %2982 = vmatprep.subr.bf16.mxu0 0
        %2983 = vmatpush1.bf16.xpose.msra.mxu0 0
        %2984 = vmatprep.subr.bf16.mxu0 0
        %2985 = vmatpush1.bf16.xpose.msra.mxu0 0
        %2986 = vmatprep.subr.bf16.mxu0 0
        %2987 = vmatpush1.bf16.xpose.msra.mxu0 0
        %2988 = vmatprep.subr.bf16.mxu0 0
        %2989 = vmatpush1.bf16.xpose.msra.mxu0 0
        %2990 = vmatprep.subr.bf16.mxu0 0
        %2991 = vmatpush1.bf16.xpose.msra.mxu0 0
        %2992 = vmatprep.mubr.bf16.mxu0 0
        %2993 = vmatmul.mubr.bf16.gmra.mrb[0].mxu0 %v2955
        %v2994 = vpop.f32.mrb[0].mxu0
        %v2995 = vadd.f32 0.0, %v2994
        %v2996 = vpop.f32.mrb[0].mxu0
        %v2997 = vpop.f32.mrb[0].mxu0
        %v2998 = vpop.f32.mrb[0].mxu0
        %2999 = vdwg.mxu0
        %v3000 = vsel %vm2840, -1e+09, %v2995
        %v3001 = vsel %vm1979, %v3000, -inf
        %3002 = vmax.xlane.f32.xlu0 %v3001
        %v3003 = vpop.xlane.xlu0 %3002
        %v3004 = vsub.f32 %v3000, %v3003
        %v3005 = vmul.f32 %v3004, 1.442695
        %v3006 = vpow.pop %v3005
        %v3007 = vsel %vm1979, %v3006, 0.0
        %3008 = vadd.xlane.f32.xlu0 %v3007
        %v3009 = vpop.xlane.xlu0 %3008
        %v3010 = vrcp.pop %v3009
        %v3011 = vmul.f32 %v3006, %v3010
        %v3012 = vsel %vm2840, 0.0, %v3011
        %v3013 = vpack.c.bf16 %v3012, %v3012
        %3014 = vrot.lane.b32.xlu0 %v2903, 64
        %v3015 = vpop.permute.xlu0 %3014
        %v3017 = vsel %vm1979, %v3013, 0
        %v3020 = vsel %vm1996, %v3015, 0
        %3022 = vmatprep.subr.bf16.mxu0 0
        %3023 = vmatpush1.bf16.msra.mxu0 %v3020
        %3024 = vmatprep.subr.bf16.mxu0 0
        %3025 = vmatpush1.bf16.msra.mxu0 0
        %3026 = vmatprep.subr.bf16.mxu0 0
        %3027 = vmatpush1.bf16.msra.mxu0 0
        %3028 = vmatprep.subr.bf16.mxu0 0
        %3029 = vmatpush1.bf16.msra.mxu0 0
        %3030 = vmatprep.subr.bf16.mxu0 0
        %3031 = vmatpush1.bf16.msra.mxu0 0
        %3032 = vmatprep.subr.bf16.mxu0 0
        %3033 = vmatpush1.bf16.msra.mxu0 0
        %3034 = vmatprep.subr.bf16.mxu0 0
        %3035 = vmatpush1.bf16.msra.mxu0 0
        %3036 = vmatprep.subr.bf16.mxu0 0
        %3037 = vmatpush1.bf16.msra.mxu0 0
        %3038 = vmatprep.subr.bf16.mxu0 0
        %3039 = vmatpush1.bf16.msra.mxu0 0
        %3040 = vmatprep.subr.bf16.mxu0 0
        %3041 = vmatpush1.bf16.msra.mxu0 0
        %3042 = vmatprep.subr.bf16.mxu0 0
        %3043 = vmatpush1.bf16.msra.mxu0 0
        %3044 = vmatprep.subr.bf16.mxu0 0
        %3045 = vmatpush1.bf16.msra.mxu0 0
        %3046 = vmatprep.subr.bf16.mxu0 0
        %3047 = vmatpush1.bf16.msra.mxu0 0
        %3048 = vmatprep.subr.bf16.mxu0 0
        %3049 = vmatpush1.bf16.msra.mxu0 0
        %3050 = vmatprep.subr.bf16.mxu0 0
        %3051 = vmatpush1.bf16.msra.mxu0 0
        %3052 = vmatprep.subr.bf16.mxu0 0
        %3053 = vmatpush1.bf16.msra.mxu0 0
        %3054 = vmatprep.mubr.bf16.mxu0 0
        %3055 = vmatmul.mubr.bf16.gmra.mrb[0].mxu0 %v3017
        %v3056 = vpop.f32.mrb[0].mxu0
        %v3057 = vadd.f32 0.0, %v3056
        %v3058 = vpop.f32.mrb[0].mxu0
        %v3059 = vpop.f32.mrb[0].mxu0
        %v3060 = vpop.f32.mrb[0].mxu0
        %3061 = vdwg.mxu0
        %v3062 = vrot.slane %v1918, 4
        %v3063 = vrot.slane %v1922, 4
        %v3065 = vsel %vm1931, %v3062, 0
        %v3068 = vsel %vm1931, %v3063, 0
        %3070 = vmatprep.subr.bf16.mxu0 0
        %3071 = vmatpush1.bf16.xpose.msra.mxu0 %v3068
        %3072 = vmatprep.subr.bf16.mxu0 0
        %3073 = vmatpush1.bf16.xpose.msra.mxu0 0
        %3074 = vmatprep.subr.bf16.mxu0 0
        %3075 = vmatpush1.bf16.xpose.msra.mxu0 0
        %3076 = vmatprep.subr.bf16.mxu0 0
        %3077 = vmatpush1.bf16.xpose.msra.mxu0 0
        %3078 = vmatprep.subr.bf16.mxu0 0
        %3079 = vmatpush1.bf16.xpose.msra.mxu0 0
        %3080 = vmatprep.subr.bf16.mxu0 0
        %3081 = vmatpush1.bf16.xpose.msra.mxu0 0
        %3082 = vmatprep.subr.bf16.mxu0 0
        %3083 = vmatpush1.bf16.xpose.msra.mxu0 0
        %3084 = vmatprep.subr.bf16.mxu0 0
        %3085 = vmatpush1.bf16.xpose.msra.mxu0 0
        %3086 = vmatprep.subr.bf16.mxu0 0
        %3087 = vmatpush1.bf16.xpose.msra.mxu0 0
        %3088 = vmatprep.subr.bf16.mxu0 0
        %3089 = vmatpush1.bf16.xpose.msra.mxu0 0
        %3090 = vmatprep.subr.bf16.mxu0 0
        %3091 = vmatpush1.bf16.xpose.msra.mxu0 0
        %3092 = vmatprep.subr.bf16.mxu0 0
        %3093 = vmatpush1.bf16.xpose.msra.mxu0 0
        %3094 = vmatprep.subr.bf16.mxu0 0
        %3095 = vmatpush1.bf16.xpose.msra.mxu0 0
        %3096 = vmatprep.subr.bf16.mxu0 0
        %3097 = vmatpush1.bf16.xpose.msra.mxu0 0
        %3098 = vmatprep.subr.bf16.mxu0 0
        %3099 = vmatpush1.bf16.xpose.msra.mxu0 0
        %3100 = vmatprep.subr.bf16.mxu0 0
        %3101 = vmatpush1.bf16.xpose.msra.mxu0 0
        %3102 = vmatprep.mubr.bf16.mxu0 0
        %3103 = vmatmul.mubr.bf16.gmra.mrb[0].mxu0 %v3065
        %v3104 = vpop.f32.mrb[0].mxu0
        %v3105 = vadd.f32 0.0, %v3104
        %v3106 = vpop.f32.mrb[0].mxu0
        %v3107 = vpop.f32.mrb[0].mxu0
        %v3108 = vpop.f32.mrb[0].mxu0
        %3109 = vdwg.mxu0
        %v3110 = vsel %vm2840, -1e+09, %v3105
        %v3111 = vsel %vm1979, %v3110, -inf
        %3112 = vmax.xlane.f32.xlu0 %v3111
        %v3113 = vpop.xlane.xlu0 %3112
        %v3114 = vsub.f32 %v3110, %v3113
        %v3115 = vmul.f32 %v3114, 1.442695
        %v3116 = vpow.pop %v3115
        %v3117 = vsel %vm1979, %v3116, 0.0
        %3118 = vadd.xlane.f32.xlu0 %v3117
        %v3119 = vpop.xlane.xlu0 %3118
        %v3120 = vrcp.pop %v3119
        %v3121 = vmul.f32 %v3116, %v3120
        %v3122 = vsel %vm2840, 0.0, %v3121
        %v3123 = vpack.c.bf16 %v3122, %v3122
        %v3124 = vrot.slane %v1926, 4
        %v3126 = vsel %vm1979, %v3123, 0
        %v3129 = vsel %vm1996, %v3124, 0
        %3131 = vmatprep.subr.bf16.mxu0 0
        %3132 = vmatpush1.bf16.msra.mxu0 %v3129
        %3133 = vmatprep.subr.bf16.mxu0 0
        %3134 = vmatpush1.bf16.msra.mxu0 0
        %3135 = vmatprep.subr.bf16.mxu0 0
        %3136 = vmatpush1.bf16.msra.mxu0 0
        %3137 = vmatprep.subr.bf16.mxu0 0
        %3138 = vmatpush1.bf16.msra.mxu0 0
        %3139 = vmatprep.subr.bf16.mxu0 0
        %3140 = vmatpush1.bf16.msra.mxu0 0
        %3141 = vmatprep.subr.bf16.mxu0 0
        %3142 = vmatpush1.bf16.msra.mxu0 0
        %3143 = vmatprep.subr.bf16.mxu0 0
        %3144 = vmatpush1.bf16.msra.mxu0 0
        %3145 = vmatprep.subr.bf16.mxu0 0
        %3146 = vmatpush1.bf16.msra.mxu0 0
        %3147 = vmatprep.subr.bf16.mxu0 0
        %3148 = vmatpush1.bf16.msra.mxu0 0
        %3149 = vmatprep.subr.bf16.mxu0 0
        %3150 = vmatpush1.bf16.msra.mxu0 0
        %3151 = vmatprep.subr.bf16.mxu0 0
        %3152 = vmatpush1.bf16.msra.mxu0 0
        %3153 = vmatprep.subr.bf16.mxu0 0
        %3154 = vmatpush1.bf16.msra.mxu0 0
        %3155 = vmatprep.subr.bf16.mxu0 0
        %3156 = vmatpush1.bf16.msra.mxu0 0
        %3157 = vmatprep.subr.bf16.mxu0 0
        %3158 = vmatpush1.bf16.msra.mxu0 0
        %3159 = vmatprep.subr.bf16.mxu0 0
        %3160 = vmatpush1.bf16.msra.mxu0 0
        %3161 = vmatprep.subr.bf16.mxu0 0
        %3162 = vmatpush1.bf16.msra.mxu0 0
        %3163 = vmatprep.mubr.bf16.mxu0 0
        %3164 = vmatmul.mubr.bf16.gmra.mrb[0].mxu0 %v3126
        %v3165 = vpop.f32.mrb[0].mxu0
        %v3166 = vadd.f32 0.0, %v3165
        %v3167 = vpop.f32.mrb[0].mxu0
        %v3168 = vpop.f32.mrb[0].mxu0
        %v3169 = vpop.f32.mrb[0].mxu0
        %3170 = vdwg.mxu0
        %3171 = vrot.lane.b32.xlu0 %v3062, 64
        %v3172 = vpop.permute.xlu0 %3171
        %3173 = vrot.lane.b32.xlu0 %v3063, 64
        %v3174 = vpop.permute.xlu0 %3173
        %v3176 = vsel %vm1931, %v3172, 0
        %v3179 = vsel %vm1931, %v3174, 0
        %3181 = vmatprep.subr.bf16.mxu0 0
        %3182 = vmatpush1.bf16.xpose.msra.mxu0 %v3179
        %3183 = vmatprep.subr.bf16.mxu0 0
        %3184 = vmatpush1.bf16.xpose.msra.mxu0 0
        %3185 = vmatprep.subr.bf16.mxu0 0
        %3186 = vmatpush1.bf16.xpose.msra.mxu0 0
        %3187 = vmatprep.subr.bf16.mxu0 0
        %3188 = vmatpush1.bf16.xpose.msra.mxu0 0
        %3189 = vmatprep.subr.bf16.mxu0 0
        %3190 = vmatpush1.bf16.xpose.msra.mxu0 0
        %3191 = vmatprep.subr.bf16.mxu0 0
        %3192 = vmatpush1.bf16.xpose.msra.mxu0 0
        %3193 = vmatprep.subr.bf16.mxu0 0
        %3194 = vmatpush1.bf16.xpose.msra.mxu0 0
        %3195 = vmatprep.subr.bf16.mxu0 0
        %3196 = vmatpush1.bf16.xpose.msra.mxu0 0
        %3197 = vmatprep.subr.bf16.mxu0 0
        %3198 = vmatpush1.bf16.xpose.msra.mxu0 0
        %3199 = vmatprep.subr.bf16.mxu0 0
        %3200 = vmatpush1.bf16.xpose.msra.mxu0 0
        %3201 = vmatprep.subr.bf16.mxu0 0
        %3202 = vmatpush1.bf16.xpose.msra.mxu0 0
        %3203 = vmatprep.subr.bf16.mxu0 0
        %3204 = vmatpush1.bf16.xpose.msra.mxu0 0
        %3205 = vmatprep.subr.bf16.mxu0 0
        %3206 = vmatpush1.bf16.xpose.msra.mxu0 0
        %3207 = vmatprep.subr.bf16.mxu0 0
        %3208 = vmatpush1.bf16.xpose.msra.mxu0 0
        %3209 = vmatprep.subr.bf16.mxu0 0
        %3210 = vmatpush1.bf16.xpose.msra.mxu0 0
        %3211 = vmatprep.subr.bf16.mxu0 0
        %3212 = vmatpush1.bf16.xpose.msra.mxu0 0
        %3213 = vmatprep.mubr.bf16.mxu0 0
        %3214 = vmatmul.mubr.bf16.gmra.mrb[0].mxu0 %v3176
        %v3215 = vpop.f32.mrb[0].mxu0
        %v3216 = vadd.f32 0.0, %v3215
        %v3217 = vpop.f32.mrb[0].mxu0
        %v3218 = vpop.f32.mrb[0].mxu0
        %v3219 = vpop.f32.mrb[0].mxu0
        %3220 = vdwg.mxu0
        %v3221 = vsel %vm2840, -1e+09, %v3216
        %v3222 = vsel %vm1979, %v3221, -inf
        %3223 = vmax.xlane.f32.xlu0 %v3222
        %v3224 = vpop.xlane.xlu0 %3223
        %v3225 = vsub.f32 %v3221, %v3224
        %v3226 = vmul.f32 %v3225, 1.442695
        %v3227 = vpow.pop %v3226
        %v3228 = vsel %vm1979, %v3227, 0.0
        %3229 = vadd.xlane.f32.xlu0 %v3228
        %v3230 = vpop.xlane.xlu0 %3229
        %v3231 = vrcp.pop %v3230
        %v3232 = vmul.f32 %v3227, %v3231
        %v3233 = vsel %vm2840, 0.0, %v3232
        %v3234 = vpack.c.bf16 %v3233, %v3233
        %3235 = vrot.lane.b32.xlu0 %v3124, 64
        %v3236 = vpop.permute.xlu0 %3235
        %v3238 = vsel %vm1979, %v3234, 0
        %v3241 = vsel %vm1996, %v3236, 0
        %3243 = vmatprep.subr.bf16.mxu0 0
        %3244 = vmatpush1.bf16.msra.mxu0 %v3241
        %3245 = vmatprep.subr.bf16.mxu0 0
        %3246 = vmatpush1.bf16.msra.mxu0 0
        %3247 = vmatprep.subr.bf16.mxu0 0
        %3248 = vmatpush1.bf16.msra.mxu0 0
        %3249 = vmatprep.subr.bf16.mxu0 0
        %3250 = vmatpush1.bf16.msra.mxu0 0
        %3251 = vmatprep.subr.bf16.mxu0 0
        %3252 = vmatpush1.bf16.msra.mxu0 0
        %3253 = vmatprep.subr.bf16.mxu0 0
        %3254 = vmatpush1.bf16.msra.mxu0 0
        %3255 = vmatprep.subr.bf16.mxu0 0
        %3256 = vmatpush1.bf16.msra.mxu0 0
        %3257 = vmatprep.subr.bf16.mxu0 0
        %3258 = vmatpush1.bf16.msra.mxu0 0
        %3259 = vmatprep.subr.bf16.mxu0 0
        %3260 = vmatpush1.bf16.msra.mxu0 0
        %3261 = vmatprep.subr.bf16.mxu0 0
        %3262 = vmatpush1.bf16.msra.mxu0 0
        %3263 = vmatprep.subr.bf16.mxu0 0
        %3264 = vmatpush1.bf16.msra.mxu0 0
        %3265 = vmatprep.subr.bf16.mxu0 0
        %3266 = vmatpush1.bf16.msra.mxu0 0
        %3267 = vmatprep.subr.bf16.mxu0 0
        %3268 = vmatpush1.bf16.msra.mxu0 0
        %3269 = vmatprep.subr.bf16.mxu0 0
        %3270 = vmatpush1.bf16.msra.mxu0 0
        %3271 = vmatprep.subr.bf16.mxu0 0
        %3272 = vmatpush1.bf16.msra.mxu0 0
        %3273 = vmatprep.subr.bf16.mxu0 0
        %3274 = vmatpush1.bf16.msra.mxu0 0
        %3275 = vmatprep.mubr.bf16.mxu0 0
        %3276 = vmatmul.mubr.bf16.gmra.mrb[0].mxu0 %v3238
        %v3277 = vpop.f32.mrb[0].mxu0
        %v3278 = vadd.f32 0.0, %v3277
        %v3279 = vpop.f32.mrb[0].mxu0
        %v3280 = vpop.f32.mrb[0].mxu0
        %v3281 = vpop.f32.mrb[0].mxu0
        %3282 = vdwg.mxu0
        %v3283 = vrot.slane %v1919, 4
        %v3284 = vrot.slane %v1923, 4
        %v3286 = vsel %vm1931, %v3283, 0
        %v3289 = vsel %vm1931, %v3284, 0
        %3291 = vmatprep.subr.bf16.mxu0 0
        %3292 = vmatpush1.bf16.xpose.msra.mxu0 %v3289
        %3293 = vmatprep.subr.bf16.mxu0 0
        %3294 = vmatpush1.bf16.xpose.msra.mxu0 0
        %3295 = vmatprep.subr.bf16.mxu0 0
        %3296 = vmatpush1.bf16.xpose.msra.mxu0 0
        %3297 = vmatprep.subr.bf16.mxu0 0
        %3298 = vmatpush1.bf16.xpose.msra.mxu0 0
        %3299 = vmatprep.subr.bf16.mxu0 0
        %3300 = vmatpush1.bf16.xpose.msra.mxu0 0
        %3301 = vmatprep.subr.bf16.mxu0 0
        %3302 = vmatpush1.bf16.xpose.msra.mxu0 0
        %3303 = vmatprep.subr.bf16.mxu0 0
        %3304 = vmatpush1.bf16.xpose.msra.mxu0 0
        %3305 = vmatprep.subr.bf16.mxu0 0
        %3306 = vmatpush1.bf16.xpose.msra.mxu0 0
        %3307 = vmatprep.subr.bf16.mxu0 0
        %3308 = vmatpush1.bf16.xpose.msra.mxu0 0
        %3309 = vmatprep.subr.bf16.mxu0 0
        %3310 = vmatpush1.bf16.xpose.msra.mxu0 0
        %3311 = vmatprep.subr.bf16.mxu0 0
        %3312 = vmatpush1.bf16.xpose.msra.mxu0 0
        %3313 = vmatprep.subr.bf16.mxu0 0
        %3314 = vmatpush1.bf16.xpose.msra.mxu0 0
        %3315 = vmatprep.subr.bf16.mxu0 0
        %3316 = vmatpush1.bf16.xpose.msra.mxu0 0
        %3317 = vmatprep.subr.bf16.mxu0 0
        %3318 = vmatpush1.bf16.xpose.msra.mxu0 0
        %3319 = vmatprep.subr.bf16.mxu0 0
        %3320 = vmatpush1.bf16.xpose.msra.mxu0 0
        %3321 = vmatprep.subr.bf16.mxu0 0
        %3322 = vmatpush1.bf16.xpose.msra.mxu0 0
        %3323 = vmatprep.mubr.bf16.mxu0 0
        %3324 = vmatmul.mubr.bf16.gmra.mrb[0].mxu0 %v3286
        %v3325 = vpop.f32.mrb[0].mxu0
        %v3326 = vadd.f32 0.0, %v3325
        %v3327 = vpop.f32.mrb[0].mxu0
        %v3328 = vpop.f32.mrb[0].mxu0
        %v3329 = vpop.f32.mrb[0].mxu0
        %3330 = vdwg.mxu0
        %v3331 = vsel %vm2840, -1e+09, %v3326
        %v3332 = vsel %vm1979, %v3331, -inf
        %3333 = vmax.xlane.f32.xlu0 %v3332
        %v3334 = vpop.xlane.xlu0 %3333
        %v3335 = vsub.f32 %v3331, %v3334
        %v3336 = vmul.f32 %v3335, 1.442695
        %v3337 = vpow.pop %v3336
        %v3338 = vsel %vm1979, %v3337, 0.0
        %3339 = vadd.xlane.f32.xlu0 %v3338
        %v3340 = vpop.xlane.xlu0 %3339
        %v3341 = vrcp.pop %v3340
        %v3342 = vmul.f32 %v3337, %v3341
        %v3343 = vsel %vm2840, 0.0, %v3342
        %v3344 = vpack.c.bf16 %v3343, %v3343
        %v3345 = vrot.slane %v1927, 4
        %v3347 = vsel %vm1979, %v3344, 0
        %v3350 = vsel %vm1996, %v3345, 0
        %3352 = vmatprep.subr.bf16.mxu0 0
        %3353 = vmatpush1.bf16.msra.mxu0 %v3350
        %3354 = vmatprep.subr.bf16.mxu0 0
        %3355 = vmatpush1.bf16.msra.mxu0 0
        %3356 = vmatprep.subr.bf16.mxu0 0
        %3357 = vmatpush1.bf16.msra.mxu0 0
        %3358 = vmatprep.subr.bf16.mxu0 0
        %3359 = vmatpush1.bf16.msra.mxu0 0
        %3360 = vmatprep.subr.bf16.mxu0 0
        %3361 = vmatpush1.bf16.msra.mxu0 0
        %3362 = vmatprep.subr.bf16.mxu0 0
        %3363 = vmatpush1.bf16.msra.mxu0 0
        %3364 = vmatprep.subr.bf16.mxu0 0
        %3365 = vmatpush1.bf16.msra.mxu0 0
        %3366 = vmatprep.subr.bf16.mxu0 0
        %3367 = vmatpush1.bf16.msra.mxu0 0
        %3368 = vmatprep.subr.bf16.mxu0 0
        %3369 = vmatpush1.bf16.msra.mxu0 0
        %3370 = vmatprep.subr.bf16.mxu0 0
        %3371 = vmatpush1.bf16.msra.mxu0 0
        %3372 = vmatprep.subr.bf16.mxu0 0
        %3373 = vmatpush1.bf16.msra.mxu0 0
        %3374 = vmatprep.subr.bf16.mxu0 0
        %3375 = vmatpush1.bf16.msra.mxu0 0
        %3376 = vmatprep.subr.bf16.mxu0 0
        %3377 = vmatpush1.bf16.msra.mxu0 0
        %3378 = vmatprep.subr.bf16.mxu0 0
        %3379 = vmatpush1.bf16.msra.mxu0 0
        %3380 = vmatprep.subr.bf16.mxu0 0
        %3381 = vmatpush1.bf16.msra.mxu0 0
        %3382 = vmatprep.subr.bf16.mxu0 0
        %3383 = vmatpush1.bf16.msra.mxu0 0
        %3384 = vmatprep.mubr.bf16.mxu0 0
        %3385 = vmatmul.mubr.bf16.gmra.mrb[0].mxu0 %v3347
        %v3386 = vpop.f32.mrb[0].mxu0
        %v3387 = vadd.f32 0.0, %v3386
        %v3388 = vpop.f32.mrb[0].mxu0
        %v3389 = vpop.f32.mrb[0].mxu0
        %v3390 = vpop.f32.mrb[0].mxu0
        %3391 = vdwg.mxu0
        %3392 = vrot.lane.b32.xlu0 %v3283, 64
        %v3393 = vpop.permute.xlu0 %3392
        %3394 = vrot.lane.b32.xlu0 %v3284, 64
        %v3395 = vpop.permute.xlu0 %3394
        %v3397 = vsel %vm1931, %v3393, 0
        %v3400 = vsel %vm1931, %v3395, 0
        %3402 = vmatprep.subr.bf16.mxu0 0
        %3403 = vmatpush1.bf16.xpose.msra.mxu0 %v3400
        %3404 = vmatprep.subr.bf16.mxu0 0
        %3405 = vmatpush1.bf16.xpose.msra.mxu0 0
        %3406 = vmatprep.subr.bf16.mxu0 0
        %3407 = vmatpush1.bf16.xpose.msra.mxu0 0
        %3408 = vmatprep.subr.bf16.mxu0 0
        %3409 = vmatpush1.bf16.xpose.msra.mxu0 0
        %3410 = vmatprep.subr.bf16.mxu0 0
        %3411 = vmatpush1.bf16.xpose.msra.mxu0 0
        %3412 = vmatprep.subr.bf16.mxu0 0
        %3413 = vmatpush1.bf16.xpose.msra.mxu0 0
        %3414 = vmatprep.subr.bf16.mxu0 0
        %3415 = vmatpush1.bf16.xpose.msra.mxu0 0
        %3416 = vmatprep.subr.bf16.mxu0 0
        %3417 = vmatpush1.bf16.xpose.msra.mxu0 0
        %3418 = vmatprep.subr.bf16.mxu0 0
        %3419 = vmatpush1.bf16.xpose.msra.mxu0 0
        %3420 = vmatprep.subr.bf16.mxu0 0
        %3421 = vmatpush1.bf16.xpose.msra.mxu0 0
        %3422 = vmatprep.subr.bf16.mxu0 0
        %3423 = vmatpush1.bf16.xpose.msra.mxu0 0
        %3424 = vmatprep.subr.bf16.mxu0 0
        %3425 = vmatpush1.bf16.xpose.msra.mxu0 0
        %3426 = vmatprep.subr.bf16.mxu0 0
        %3427 = vmatpush1.bf16.xpose.msra.mxu0 0
        %3428 = vmatprep.subr.bf16.mxu0 0
        %3429 = vmatpush1.bf16.xpose.msra.mxu0 0
        %3430 = vmatprep.subr.bf16.mxu0 0
        %3431 = vmatpush1.bf16.xpose.msra.mxu0 0
        %3432 = vmatprep.subr.bf16.mxu0 0
        %3433 = vmatpush1.bf16.xpose.msra.mxu0 0
        %3434 = vmatprep.mubr.bf16.mxu0 0
        %3435 = vmatmul.mubr.bf16.gmra.mrb[0].mxu0 %v3397
        %v3436 = vpop.f32.mrb[0].mxu0
        %v3437 = vadd.f32 0.0, %v3436
        %v3438 = vpop.f32.mrb[0].mxu0
        %v3439 = vpop.f32.mrb[0].mxu0
        %v3440 = vpop.f32.mrb[0].mxu0
        %3441 = vdwg.mxu0
        %v3442 = vsel %vm2840, -1e+09, %v3437
        %v3443 = vsel %vm1979, %v3442, -inf
        %3444 = vmax.xlane.f32.xlu0 %v3443
        %v3445 = vpop.xlane.xlu0 %3444
        %v3446 = vsub.f32 %v3442, %v3445
        %v3447 = vmul.f32 %v3446, 1.442695
        %v3448 = vpow.pop %v3447
        %v3449 = vsel %vm1979, %v3448, 0.0
        %3450 = vadd.xlane.f32.xlu0 %v3449
        %v3451 = vpop.xlane.xlu0 %3450
        %v3452 = vrcp.pop %v3451
        %v3453 = vmul.f32 %v3448, %v3452
        %v3454 = vsel %vm2840, 0.0, %v3453
        %v3455 = vpack.c.bf16 %v3454, %v3454
        %3456 = vrot.lane.b32.xlu0 %v3345, 64
        %v3457 = vpop.permute.xlu0 %3456
        %v3459 = vsel %vm1979, %v3455, 0
        %v3462 = vsel %vm1996, %v3457, 0
        %3464 = vmatprep.subr.bf16.mxu0 0
        %3465 = vmatpush1.bf16.msra.mxu0 %v3462
        %3466 = vmatprep.subr.bf16.mxu0 0
        %3467 = vmatpush1.bf16.msra.mxu0 0
        %3468 = vmatprep.subr.bf16.mxu0 0
        %3469 = vmatpush1.bf16.msra.mxu0 0
        %3470 = vmatprep.subr.bf16.mxu0 0
        %3471 = vmatpush1.bf16.msra.mxu0 0
        %3472 = vmatprep.subr.bf16.mxu0 0
        %3473 = vmatpush1.bf16.msra.mxu0 0
        %3474 = vmatprep.subr.bf16.mxu0 0
        %3475 = vmatpush1.bf16.msra.mxu0 0
        %3476 = vmatprep.subr.bf16.mxu0 0
        %3477 = vmatpush1.bf16.msra.mxu0 0
        %3478 = vmatprep.subr.bf16.mxu0 0
        %3479 = vmatpush1.bf16.msra.mxu0 0
        %3480 = vmatprep.subr.bf16.mxu0 0
        %3481 = vmatpush1.bf16.msra.mxu0 0
        %3482 = vmatprep.subr.bf16.mxu0 0
        %3483 = vmatpush1.bf16.msra.mxu0 0
        %3484 = vmatprep.subr.bf16.mxu0 0
        %3485 = vmatpush1.bf16.msra.mxu0 0
        %3486 = vmatprep.subr.bf16.mxu0 0
        %3487 = vmatpush1.bf16.msra.mxu0 0
        %3488 = vmatprep.subr.bf16.mxu0 0
        %3489 = vmatpush1.bf16.msra.mxu0 0
        %3490 = vmatprep.subr.bf16.mxu0 0
        %3491 = vmatpush1.bf16.msra.mxu0 0
        %3492 = vmatprep.subr.bf16.mxu0 0
        %3493 = vmatpush1.bf16.msra.mxu0 0
        %3494 = vmatprep.subr.bf16.mxu0 0
        %3495 = vmatpush1.bf16.msra.mxu0 0
        %3496 = vmatprep.mubr.bf16.mxu0 0
        %3497 = vmatmul.mubr.bf16.gmra.mrb[0].mxu0 %v3459
        %v3498 = vpop.f32.mrb[0].mxu0
        %v3499 = vadd.f32 0.0, %v3498
        %v3500 = vpop.f32.mrb[0].mxu0
        %v3501 = vpop.f32.mrb[0].mxu0
        %v3502 = vpop.f32.mrb[0].mxu0
        %3503 = vdwg.mxu0
        %v3504 = vrot.slane %v1920, 4
        %v3505 = vrot.slane %v1924, 4
        %v3507 = vsel %vm1931, %v3504, 0
        %v3510 = vsel %vm1931, %v3505, 0
        %3512 = vmatprep.subr.bf16.mxu0 0
        %3513 = vmatpush1.bf16.xpose.msra.mxu0 %v3510
        %3514 = vmatprep.subr.bf16.mxu0 0
        %3515 = vmatpush1.bf16.xpose.msra.mxu0 0
        %3516 = vmatprep.subr.bf16.mxu0 0
        %3517 = vmatpush1.bf16.xpose.msra.mxu0 0
        %3518 = vmatprep.subr.bf16.mxu0 0
        %3519 = vmatpush1.bf16.xpose.msra.mxu0 0
        %3520 = vmatprep.subr.bf16.mxu0 0
        %3521 = vmatpush1.bf16.xpose.msra.mxu0 0
        %3522 = vmatprep.subr.bf16.mxu0 0
        %3523 = vmatpush1.bf16.xpose.msra.mxu0 0
        %3524 = vmatprep.subr.bf16.mxu0 0
        %3525 = vmatpush1.bf16.xpose.msra.mxu0 0
        %3526 = vmatprep.subr.bf16.mxu0 0
        %3527 = vmatpush1.bf16.xpose.msra.mxu0 0
        %3528 = vmatprep.subr.bf16.mxu0 0
        %3529 = vmatpush1.bf16.xpose.msra.mxu0 0
        %3530 = vmatprep.subr.bf16.mxu0 0
        %3531 = vmatpush1.bf16.xpose.msra.mxu0 0
        %3532 = vmatprep.subr.bf16.mxu0 0
        %3533 = vmatpush1.bf16.xpose.msra.mxu0 0
        %3534 = vmatprep.subr.bf16.mxu0 0
        %3535 = vmatpush1.bf16.xpose.msra.mxu0 0
        %3536 = vmatprep.subr.bf16.mxu0 0
        %3537 = vmatpush1.bf16.xpose.msra.mxu0 0
        %3538 = vmatprep.subr.bf16.mxu0 0
        %3539 = vmatpush1.bf16.xpose.msra.mxu0 0
        %3540 = vmatprep.subr.bf16.mxu0 0
        %3541 = vmatpush1.bf16.xpose.msra.mxu0 0
        %3542 = vmatprep.subr.bf16.mxu0 0
        %3543 = vmatpush1.bf16.xpose.msra.mxu0 0
        %3544 = vmatprep.mubr.bf16.mxu0 0
        %3545 = vmatmul.mubr.bf16.gmra.mrb[0].mxu0 %v3507
        %v3546 = vpop.f32.mrb[0].mxu0
        %v3547 = vadd.f32 0.0, %v3546
        %v3548 = vpop.f32.mrb[0].mxu0
        %v3549 = vpop.f32.mrb[0].mxu0
        %v3550 = vpop.f32.mrb[0].mxu0
        %3551 = vdwg.mxu0
        %v3552 = vsel %vm2840, -1e+09, %v3547
        %v3553 = vsel %vm1979, %v3552, -inf
        %3554 = vmax.xlane.f32.xlu0 %v3553
        %v3555 = vpop.xlane.xlu0 %3554
        %v3556 = vsub.f32 %v3552, %v3555
        %v3557 = vmul.f32 %v3556, 1.442695
        %v3558 = vpow.pop %v3557
        %v3559 = vsel %vm1979, %v3558, 0.0
        %3560 = vadd.xlane.f32.xlu0 %v3559
        %v3561 = vpop.xlane.xlu0 %3560
        %v3562 = vrcp.pop %v3561
        %v3563 = vmul.f32 %v3558, %v3562
        %v3564 = vsel %vm2840, 0.0, %v3563
        %v3565 = vpack.c.bf16 %v3564, %v3564
        %v3566 = vrot.slane %v1928, 4
        %v3568 = vsel %vm1979, %v3565, 0
        %v3571 = vsel %vm1996, %v3566, 0
        %3573 = vmatprep.subr.bf16.mxu0 0
        %3574 = vmatpush1.bf16.msra.mxu0 %v3571
        %3575 = vmatprep.subr.bf16.mxu0 0
        %3576 = vmatpush1.bf16.msra.mxu0 0
        %3577 = vmatprep.subr.bf16.mxu0 0
        %3578 = vmatpush1.bf16.msra.mxu0 0
        %3579 = vmatprep.subr.bf16.mxu0 0
        %3580 = vmatpush1.bf16.msra.mxu0 0
        %3581 = vmatprep.subr.bf16.mxu0 0
        %3582 = vmatpush1.bf16.msra.mxu0 0
        %3583 = vmatprep.subr.bf16.mxu0 0
        %3584 = vmatpush1.bf16.msra.mxu0 0
        %3585 = vmatprep.subr.bf16.mxu0 0
        %3586 = vmatpush1.bf16.msra.mxu0 0
        %3587 = vmatprep.subr.bf16.mxu0 0
        %3588 = vmatpush1.bf16.msra.mxu0 0
        %3589 = vmatprep.subr.bf16.mxu0 0
        %3590 = vmatpush1.bf16.msra.mxu0 0
        %3591 = vmatprep.subr.bf16.mxu0 0
        %3592 = vmatpush1.bf16.msra.mxu0 0
        %3593 = vmatprep.subr.bf16.mxu0 0
        %3594 = vmatpush1.bf16.msra.mxu0 0
        %3595 = vmatprep.subr.bf16.mxu0 0
        %3596 = vmatpush1.bf16.msra.mxu0 0
        %3597 = vmatprep.subr.bf16.mxu0 0
        %3598 = vmatpush1.bf16.msra.mxu0 0
        %3599 = vmatprep.subr.bf16.mxu0 0
        %3600 = vmatpush1.bf16.msra.mxu0 0
        %3601 = vmatprep.subr.bf16.mxu0 0
        %3602 = vmatpush1.bf16.msra.mxu0 0
        %3603 = vmatprep.subr.bf16.mxu0 0
        %3604 = vmatpush1.bf16.msra.mxu0 0
        %3605 = vmatprep.mubr.bf16.mxu0 0
        %3606 = vmatmul.mubr.bf16.gmra.mrb[0].mxu0 %v3568
        %v3607 = vpop.f32.mrb[0].mxu0
        %v3608 = vadd.f32 0.0, %v3607
        %v3609 = vpop.f32.mrb[0].mxu0
        %v3610 = vpop.f32.mrb[0].mxu0
        %v3611 = vpop.f32.mrb[0].mxu0
        %3612 = vdwg.mxu0
        %3613 = vrot.lane.b32.xlu0 %v3504, 64
        %v3614 = vpop.permute.xlu0 %3613
        %3615 = vrot.lane.b32.xlu0 %v3505, 64
        %v3616 = vpop.permute.xlu0 %3615
        %v3618 = vsel %vm1931, %v3614, 0
        %v3621 = vsel %vm1931, %v3616, 0
        %3623 = vmatprep.subr.bf16.mxu0 0
        %3624 = vmatpush1.bf16.xpose.msra.mxu0 %v3621
        %3625 = vmatprep.subr.bf16.mxu0 0
        %3626 = vmatpush1.bf16.xpose.msra.mxu0 0
        %3627 = vmatprep.subr.bf16.mxu0 0
        %3628 = vmatpush1.bf16.xpose.msra.mxu0 0
        %3629 = vmatprep.subr.bf16.mxu0 0
        %3630 = vmatpush1.bf16.xpose.msra.mxu0 0
        %3631 = vmatprep.subr.bf16.mxu0 0
        %3632 = vmatpush1.bf16.xpose.msra.mxu0 0
        %3633 = vmatprep.subr.bf16.mxu0 0
        %3634 = vmatpush1.bf16.xpose.msra.mxu0 0
        %3635 = vmatprep.subr.bf16.mxu0 0
        %3636 = vmatpush1.bf16.xpose.msra.mxu0 0
        %3637 = vmatprep.subr.bf16.mxu0 0
        %3638 = vmatpush1.bf16.xpose.msra.mxu0 0
        %3639 = vmatprep.subr.bf16.mxu0 0
        %3640 = vmatpush1.bf16.xpose.msra.mxu0 0
        %3641 = vmatprep.subr.bf16.mxu0 0
        %3642 = vmatpush1.bf16.xpose.msra.mxu0 0
        %3643 = vmatprep.subr.bf16.mxu0 0
        %3644 = vmatpush1.bf16.xpose.msra.mxu0 0
        %3645 = vmatprep.subr.bf16.mxu0 0
        %3646 = vmatpush1.bf16.xpose.msra.mxu0 0
        %3647 = vmatprep.subr.bf16.mxu0 0
        %3648 = vmatpush1.bf16.xpose.msra.mxu0 0
        %3649 = vmatprep.subr.bf16.mxu0 0
        %3650 = vmatpush1.bf16.xpose.msra.mxu0 0
        %3651 = vmatprep.subr.bf16.mxu0 0
        %3652 = vmatpush1.bf16.xpose.msra.mxu0 0
        %3653 = vmatprep.subr.bf16.mxu0 0
        %3654 = vmatpush1.bf16.xpose.msra.mxu0 0
        %3655 = vmatprep.mubr.bf16.mxu0 0
        %3656 = vmatmul.mubr.bf16.gmra.mrb[0].mxu0 %v3618
        %v3657 = vpop.f32.mrb[0].mxu0
        %v3658 = vadd.f32 0.0, %v3657
        %v3659 = vpop.f32.mrb[0].mxu0
        %v3660 = vpop.f32.mrb[0].mxu0
        %v3661 = vpop.f32.mrb[0].mxu0
        %3662 = vdwg.mxu0
        %v3663 = vsel %vm2840, -1e+09, %v3658
        %v3664 = vsel %vm1979, %v3663, -inf
        %3665 = vmax.xlane.f32.xlu0 %v3664
        %v3666 = vpop.xlane.xlu0 %3665
        %v3667 = vsub.f32 %v3663, %v3666
        %v3668 = vmul.f32 %v3667, 1.442695
        %v3669 = vpow.pop %v3668
        %v3670 = vsel %vm1979, %v3669, 0.0
        %3671 = vadd.xlane.f32.xlu0 %v3670
        %v3672 = vpop.xlane.xlu0 %3671
        %v3673 = vrcp.pop %v3672
        %v3674 = vmul.f32 %v3669, %v3673
        %v3675 = vsel %vm2840, 0.0, %v3674
        %v3676 = vpack.c.bf16 %v3675, %v3675
        %3677 = vrot.lane.b32.xlu0 %v3566, 64
        %v3678 = vpop.permute.xlu0 %3677
        %v3680 = vsel %vm1979, %v3676, 0
        %v3683 = vsel %vm1996, %v3678, 0
        %3685 = vmatprep.subr.bf16.mxu0 0
        %3686 = vmatpush1.bf16.msra.mxu0 %v3683
        %3687 = vmatprep.subr.bf16.mxu0 0
        %3688 = vmatpush1.bf16.msra.mxu0 0
        %3689 = vmatprep.subr.bf16.mxu0 0
        %3690 = vmatpush1.bf16.msra.mxu0 0
        %3691 = vmatprep.subr.bf16.mxu0 0
        %3692 = vmatpush1.bf16.msra.mxu0 0
        %3693 = vmatprep.subr.bf16.mxu0 0
        %3694 = vmatpush1.bf16.msra.mxu0 0
        %3695 = vmatprep.subr.bf16.mxu0 0
        %3696 = vmatpush1.bf16.msra.mxu0 0
        %3697 = vmatprep.subr.bf16.mxu0 0
        %3698 = vmatpush1.bf16.msra.mxu0 0
        %3699 = vmatprep.subr.bf16.mxu0 0
        %3700 = vmatpush1.bf16.msra.mxu0 0
        %3701 = vmatprep.subr.bf16.mxu0 0
        %3702 = vmatpush1.bf16.msra.mxu0 0
        %3703 = vmatprep.subr.bf16.mxu0 0
        %3704 = vmatpush1.bf16.msra.mxu0 0
        %3705 = vmatprep.subr.bf16.mxu0 0
        %3706 = vmatpush1.bf16.msra.mxu0 0
        %3707 = vmatprep.subr.bf16.mxu0 0
        %3708 = vmatpush1.bf16.msra.mxu0 0
        %3709 = vmatprep.subr.bf16.mxu0 0
        %3710 = vmatpush1.bf16.msra.mxu0 0
        %3711 = vmatprep.subr.bf16.mxu0 0
        %3712 = vmatpush1.bf16.msra.mxu0 0
        %3713 = vmatprep.subr.bf16.mxu0 0
        %3714 = vmatpush1.bf16.msra.mxu0 0
        %3715 = vmatprep.subr.bf16.mxu0 0
        %3716 = vmatpush1.bf16.msra.mxu0 0
        %3717 = vmatprep.mubr.bf16.mxu0 0
        %3718 = vmatmul.mubr.bf16.gmra.mrb[0].mxu0 %v3680
        %v3719 = vpop.f32.mrb[0].mxu0
        %v3720 = vadd.f32 0.0, %v3719
        %v3721 = vpop.f32.mrb[0].mxu0
        %v3722 = vpop.f32.mrb[0].mxu0
        %v3723 = vpop.f32.mrb[0].mxu0
        %3724 = vdwg.mxu0
        %3726 = vrot.lane.b32.xlu0 %v3057, 64
        %v3727 = vpop.permute.xlu0 %3726
        %3730 = vrot.lane.b32.xlu0 %v3278, 64
        %v3731 = vpop.permute.xlu0 %3730
        %3734 = vrot.lane.b32.xlu0 %v3499, 64
        %v3735 = vpop.permute.xlu0 %3734
        %3738 = vrot.lane.b32.xlu0 %v3720, 64
        %v3739 = vpop.permute.xlu0 %3738
        %v3741 = vsel %vm1931, %v2945, %v3727
        %v3742 = vsel %vm1931, %v3166, %v3731
        %v3743 = vsel %vm1931, %v3387, %v3735
        %v3744 = vsel %vm1931, %v3608, %v3739
        %v3745 = vpack.c.bf16 %v3741, %v2834
        %v3746 = vpack.c.bf16 %v3742, %v2835
        %v3747 = vpack.c.bf16 %v3743, %v2836
        %v3748 = vpack.c.bf16 %v3744, %v2837
        %v3749 = vld [vmem:[#allocation13] sm:$0xff]
        %v3750 = vld [vmem:[#allocation13 + $0x8] sm:$0xff]
        %v3751 = vld [vmem:[#allocation13 + $0x10] sm:$0xff]
        %v3752 = vld [vmem:[#allocation13 + $0x18] sm:$0xff]
        %v3753 = vld [vmem:[#allocation13 + $0x20] sm:$0xff]
        %v3754 = vld [vmem:[#allocation13 + $0x28] sm:$0xff]
        %v3755 = vld [vmem:[#allocation13 + $0x30] sm:$0xff]
        %v3756 = vld [vmem:[#allocation13 + $0x38] sm:$0xff]
        %v3757 = vld [vmem:[#allocation13 + $0x40] sm:$0xff]
        %v3758 = vld [vmem:[#allocation13 + $0x48] sm:$0xff]
        %v3759 = vld [vmem:[#allocation13 + $0x50] sm:$0xff]
        %v3760 = vld [vmem:[#allocation13 + $0x58] sm:$0xff]
        %v3761 = vld [vmem:[#allocation13 + $0x60] sm:$0xff]
        %v3762 = vld [vmem:[#allocation13 + $0x68] sm:$0xff]
        %v3763 = vld [vmem:[#allocation13 + $0x70] sm:$0xff]
        %v3764 = vld [vmem:[#allocation13 + $0x78] sm:$0xff]
        %v3765 = vld [vmem:[#allocation13 + $0x80] sm:$0xff]
        %v3766 = vld [vmem:[#allocation13 + $0x88] sm:$0xff]
        %v3767 = vld [vmem:[#allocation13 + $0x90] sm:$0xff]
        %v3768 = vld [vmem:[#allocation13 + $0x98] sm:$0xff]
        %v3769 = vld [vmem:[#allocation13 + $0xa0] sm:$0xff]
        %v3770 = vld [vmem:[#allocation13 + $0xa8] sm:$0xff]
        %v3771 = vld [vmem:[#allocation13 + $0xb0] sm:$0xff]
        %v3772 = vld [vmem:[#allocation13 + $0xb8] sm:$0xff]
        %v3773 = vld [vmem:[#allocation13 + $0xc0] sm:$0xff]
        %v3774 = vld [vmem:[#allocation13 + $0xc8] sm:$0xff]
        %v3775 = vld [vmem:[#allocation13 + $0xd0] sm:$0xff]
        %v3776 = vld [vmem:[#allocation13 + $0xd8] sm:$0xff]
        %v3777 = vld [vmem:[#allocation13 + $0xe0] sm:$0xff]
        %v3778 = vld [vmem:[#allocation13 + $0xe8] sm:$0xff]
        %v3779 = vld [vmem:[#allocation13 + $0xf0] sm:$0xff]
        %v3780 = vld [vmem:[#allocation13 + $0xf8] sm:$0xff]
        %v3781 = vld [vmem:[#allocation13 + $0x100] sm:$0xff]
        %v3782 = vld [vmem:[#allocation13 + $0x108] sm:$0xff]
        %v3783 = vld [vmem:[#allocation13 + $0x110] sm:$0xff]
        %v3784 = vld [vmem:[#allocation13 + $0x118] sm:$0xff]
        %v3785 = vld [vmem:[#allocation13 + $0x120] sm:$0xff]
        %v3786 = vld [vmem:[#allocation13 + $0x128] sm:$0xff]
        %v3787 = vld [vmem:[#allocation13 + $0x130] sm:$0xff]
        %v3788 = vld [vmem:[#allocation13 + $0x138] sm:$0xff]
        %v3789 = vld [vmem:[#allocation13 + $0x140] sm:$0xff]
        %v3790 = vld [vmem:[#allocation13 + $0x148] sm:$0xff]
        %v3791 = vld [vmem:[#allocation13 + $0x150] sm:$0xff]
        %v3792 = vld [vmem:[#allocation13 + $0x158] sm:$0xff]
        %v3793 = vld [vmem:[#allocation13 + $0x160] sm:$0xff]
        %v3794 = vld [vmem:[#allocation13 + $0x168] sm:$0xff]
        %v3795 = vld [vmem:[#allocation13 + $0x170] sm:$0xff]
        %v3796 = vld [vmem:[#allocation13 + $0x178] sm:$0xff]
        %v3797 = vld [vmem:[#allocation13 + $0x180] sm:$0xff]
        %v3798 = vld [vmem:[#allocation13 + $0x188] sm:$0xff]
        %v3799 = vld [vmem:[#allocation13 + $0x190] sm:$0xff]
        %v3800 = vld [vmem:[#allocation13 + $0x198] sm:$0xff]
        %v3801 = vld [vmem:[#allocation13 + $0x1a0] sm:$0xff]
        %v3802 = vld [vmem:[#allocation13 + $0x1a8] sm:$0xff]
        %v3803 = vld [vmem:[#allocation13 + $0x1b0] sm:$0xff]
        %v3804 = vld [vmem:[#allocation13 + $0x1b8] sm:$0xff]
        %v3805 = vld [vmem:[#allocation13 + $0x1c0] sm:$0xff]
        %v3806 = vld [vmem:[#allocation13 + $0x1c8] sm:$0xff]
        %v3807 = vld [vmem:[#allocation13 + $0x1d0] sm:$0xff]
        %v3808 = vld [vmem:[#allocation13 + $0x1d8] sm:$0xff]
        %v3809 = vld [vmem:[#allocation13 + $0x1e0] sm:$0xff]
        %v3810 = vld [vmem:[#allocation13 + $0x1e8] sm:$0xff]
        %v3811 = vld [vmem:[#allocation13 + $0x1f0] sm:$0xff]
        %v3812 = vld [vmem:[#allocation13 + $0x1f8] sm:$0xff]
        %v3877 = vunpack.c.l.b16 %v3749
        %v3878 = vunpack.c.h.b16 %v3749
        %v3879 = vunpack.c.l.b16 %v3750
        %v3880 = vunpack.c.h.b16 %v3750
        %v3881 = vunpack.c.l.b16 %v3751
        %v3882 = vunpack.c.h.b16 %v3751
        %v3883 = vunpack.c.l.b16 %v3752
        %v3884 = vunpack.c.h.b16 %v3752
        %v3885 = vunpack.c.l.b16 %v3753
        %v3886 = vunpack.c.h.b16 %v3753
        %v3887 = vunpack.c.l.b16 %v3754
        %v3888 = vunpack.c.h.b16 %v3754
        %v3889 = vunpack.c.l.b16 %v3755
        %v3890 = vunpack.c.h.b16 %v3755
        %v3891 = vunpack.c.l.b16 %v3756
        %v3892 = vunpack.c.h.b16 %v3756
        %v3893 = vunpack.c.l.b16 %v3757
        %v3894 = vunpack.c.h.b16 %v3757
        %v3895 = vunpack.c.l.b16 %v3758
        %v3896 = vunpack.c.h.b16 %v3758
        %v3897 = vunpack.c.l.b16 %v3759
        %v3898 = vunpack.c.h.b16 %v3759
        %v3899 = vunpack.c.l.b16 %v3760
        %v3900 = vunpack.c.h.b16 %v3760
        %v3901 = vunpack.c.l.b16 %v3761
        %v3902 = vunpack.c.h.b16 %v3761
        %v3903 = vunpack.c.l.b16 %v3762
        %v3904 = vunpack.c.h.b16 %v3762
        %v3905 = vunpack.c.l.b16 %v3763
        %v3906 = vunpack.c.h.b16 %v3763
        %v3907 = vunpack.c.l.b16 %v3764
        %v3908 = vunpack.c.h.b16 %v3764
        %v3909 = vunpack.c.l.b16 %v3765
        %v3910 = vunpack.c.h.b16 %v3765
        %v3911 = vunpack.c.l.b16 %v3766
        %v3912 = vunpack.c.h.b16 %v3766
        %v3913 = vunpack.c.l.b16 %v3767
        %v3914 = vunpack.c.h.b16 %v3767
        %v3915 = vunpack.c.l.b16 %v3768
        %v3916 = vunpack.c.h.b16 %v3768
        %v3917 = vunpack.c.l.b16 %v3769
        %v3918 = vunpack.c.h.b16 %v3769
        %v3919 = vunpack.c.l.b16 %v3770
        %v3920 = vunpack.c.h.b16 %v3770
        %v3921 = vunpack.c.l.b16 %v3771
        %v3922 = vunpack.c.h.b16 %v3771
        %v3923 = vunpack.c.l.b16 %v3772
        %v3924 = vunpack.c.h.b16 %v3772
        %v3925 = vunpack.c.l.b16 %v3773
        %v3926 = vunpack.c.h.b16 %v3773
        %v3927 = vunpack.c.l.b16 %v3774
        %v3928 = vunpack.c.h.b16 %v3774
        %v3929 = vunpack.c.l.b16 %v3775
        %v3930 = vunpack.c.h.b16 %v3775
        %v3931 = vunpack.c.l.b16 %v3776
        %v3932 = vunpack.c.h.b16 %v3776
        %v3933 = vunpack.c.l.b16 %v3777
        %v3934 = vunpack.c.h.b16 %v3777
        %v3935 = vunpack.c.l.b16 %v3778
        %v3936 = vunpack.c.h.b16 %v3778
        %v3937 = vunpack.c.l.b16 %v3779
        %v3938 = vunpack.c.h.b16 %v3779
        %v3939 = vunpack.c.l.b16 %v3780
        %v3940 = vunpack.c.h.b16 %v3780
        %v3941 = vunpack.c.l.b16 %v3781
        %v3942 = vunpack.c.h.b16 %v3781
        %v3943 = vunpack.c.l.b16 %v3782
        %v3944 = vunpack.c.h.b16 %v3782
        %v3945 = vunpack.c.l.b16 %v3783
        %v3946 = vunpack.c.h.b16 %v3783
        %v3947 = vunpack.c.l.b16 %v3784
        %v3948 = vunpack.c.h.b16 %v3784
        %v3949 = vunpack.c.l.b16 %v3785
        %v3950 = vunpack.c.h.b16 %v3785
        %v3951 = vunpack.c.l.b16 %v3786
        %v3952 = vunpack.c.h.b16 %v3786
        %v3953 = vunpack.c.l.b16 %v3787
        %v3954 = vunpack.c.h.b16 %v3787
        %v3955 = vunpack.c.l.b16 %v3788
        %v3956 = vunpack.c.h.b16 %v3788
        %v3957 = vunpack.c.l.b16 %v3789
        %v3958 = vunpack.c.h.b16 %v3789
        %v3959 = vunpack.c.l.b16 %v3790
        %v3960 = vunpack.c.h.b16 %v3790
        %v3961 = vunpack.c.l.b16 %v3791
        %v3962 = vunpack.c.h.b16 %v3791
        %v3963 = vunpack.c.l.b16 %v3792
        %v3964 = vunpack.c.h.b16 %v3792
        %v3965 = vunpack.c.l.b16 %v3793
        %v3966 = vunpack.c.h.b16 %v3793
        %v3967 = vunpack.c.l.b16 %v3794
        %v3968 = vunpack.c.h.b16 %v3794
        %v3969 = vunpack.c.l.b16 %v3795
        %v3970 = vunpack.c.h.b16 %v3795
        %v3971 = vunpack.c.l.b16 %v3796
        %v3972 = vunpack.c.h.b16 %v3796
        %v3973 = vunpack.c.l.b16 %v3797
        %v3974 = vunpack.c.h.b16 %v3797
        %v3975 = vunpack.c.l.b16 %v3798
        %v3976 = vunpack.c.h.b16 %v3798
        %v3977 = vunpack.c.l.b16 %v3799
        %v3978 = vunpack.c.h.b16 %v3799
        %v3979 = vunpack.c.l.b16 %v3800
        %v3980 = vunpack.c.h.b16 %v3800
        %v3981 = vunpack.c.l.b16 %v3801
        %v3982 = vunpack.c.h.b16 %v3801
        %v3983 = vunpack.c.l.b16 %v3802
        %v3984 = vunpack.c.h.b16 %v3802
        %v3985 = vunpack.c.l.b16 %v3803
        %v3986 = vunpack.c.h.b16 %v3803
        %v3987 = vunpack.c.l.b16 %v3804
        %v3988 = vunpack.c.h.b16 %v3804
        %v3989 = vunpack.c.l.b16 %v3805
        %v3990 = vunpack.c.h.b16 %v3805
        %v3991 = vunpack.c.l.b16 %v3806
        %v3992 = vunpack.c.h.b16 %v3806
        %v3993 = vunpack.c.l.b16 %v3807
        %v3994 = vunpack.c.h.b16 %v3807
        %v3995 = vunpack.c.l.b16 %v3808
        %v3996 = vunpack.c.h.b16 %v3808
        %v3997 = vunpack.c.l.b16 %v3809
        %v3998 = vunpack.c.h.b16 %v3809
        %v3999 = vunpack.c.l.b16 %v3810
        %v4000 = vunpack.c.h.b16 %v3810
        %v4001 = vunpack.c.l.b16 %v3811
        %v4002 = vunpack.c.h.b16 %v3811
        %v4003 = vunpack.c.l.b16 %v3812
        %v4004 = vunpack.c.h.b16 %v3812
        %v4005 = vpack.c.b16 %v3879, %v3877
        %v4006 = vpack.c.b16 %v3880, %v3878
        %v4007 = vpack.c.b16 %v3883, %v3881
        %v4008 = vpack.c.b16 %v3884, %v3882
        %v4009 = vpack.c.b16 %v3887, %v3885
        %v4010 = vpack.c.b16 %v3888, %v3886
        %v4011 = vpack.c.b16 %v3891, %v3889
        %v4012 = vpack.c.b16 %v3892, %v3890
        %v4013 = vpack.c.b16 %v3895, %v3893
        %v4014 = vpack.c.b16 %v3896, %v3894
        %v4015 = vpack.c.b16 %v3899, %v3897
        %v4016 = vpack.c.b16 %v3900, %v3898
        %v4017 = vpack.c.b16 %v3903, %v3901
        %v4018 = vpack.c.b16 %v3904, %v3902
        %v4019 = vpack.c.b16 %v3907, %v3905
        %v4020 = vpack.c.b16 %v3908, %v3906
        %v4021 = vpack.c.b16 %v3911, %v3909
        %v4022 = vpack.c.b16 %v3912, %v3910
        %v4023 = vpack.c.b16 %v3915, %v3913
        %v4024 = vpack.c.b16 %v3916, %v3914
        %v4025 = vpack.c.b16 %v3919, %v3917
        %v4026 = vpack.c.b16 %v3920, %v3918
        %v4027 = vpack.c.b16 %v3923, %v3921
        %v4028 = vpack.c.b16 %v3924, %v3922
        %v4029 = vpack.c.b16 %v3927, %v3925
        %v4030 = vpack.c.b16 %v3928, %v3926
        %v4031 = vpack.c.b16 %v3931, %v3929
        %v4032 = vpack.c.b16 %v3932, %v3930
        %v4033 = vpack.c.b16 %v3935, %v3933
        %v4034 = vpack.c.b16 %v3936, %v3934
        %v4035 = vpack.c.b16 %v3939, %v3937
        %v4036 = vpack.c.b16 %v3940, %v3938
        %v4037 = vpack.c.b16 %v3943, %v3941
        %v4038 = vpack.c.b16 %v3944, %v3942
        %v4039 = vpack.c.b16 %v3947, %v3945
        %v4040 = vpack.c.b16 %v3948, %v3946
        %v4041 = vpack.c.b16 %v3951, %v3949
        %v4042 = vpack.c.b16 %v3952, %v3950
        %v4043 = vpack.c.b16 %v3955, %v3953
        %v4044 = vpack.c.b16 %v3956, %v3954
        %v4045 = vpack.c.b16 %v3959, %v3957
        %v4046 = vpack.c.b16 %v3960, %v3958
        %v4047 = vpack.c.b16 %v3963, %v3961
        %v4048 = vpack.c.b16 %v3964, %v3962
        %v4049 = vpack.c.b16 %v3967, %v3965
        %v4050 = vpack.c.b16 %v3968, %v3966
        %v4051 = vpack.c.b16 %v3971, %v3969
        %v4052 = vpack.c.b16 %v3972, %v3970
        %v4053 = vpack.c.b16 %v3975, %v3973
        %v4054 = vpack.c.b16 %v3976, %v3974
        %v4055 = vpack.c.b16 %v3979, %v3977
        %v4056 = vpack.c.b16 %v3980, %v3978
        %v4057 = vpack.c.b16 %v3983, %v3981
        %v4058 = vpack.c.b16 %v3984, %v3982
        %v4059 = vpack.c.b16 %v3987, %v3985
        %v4060 = vpack.c.b16 %v3988, %v3986
        %v4061 = vpack.c.b16 %v3991, %v3989
        %v4062 = vpack.c.b16 %v3992, %v3990
        %v4063 = vpack.c.b16 %v3995, %v3993
        %v4064 = vpack.c.b16 %v3996, %v3994
        %v4065 = vpack.c.b16 %v3999, %v3997
        %v4066 = vpack.c.b16 %v4000, %v3998
        %v4067 = vpack.c.b16 %v4003, %v4001
        %v4068 = vpack.c.b16 %v4004, %v4002
        %4133 = vmatprep.subr.bf16.mxu0 %v4006
        %4134 = vmatpush1.bf16.msra.mxu0 %v4005
        %4135 = vmatprep.subr.bf16.mxu0 %v4008
        %4136 = vmatpush1.bf16.msra.mxu0 %v4007
        %4137 = vmatprep.subr.bf16.mxu0 %v4010
        %4138 = vmatpush1.bf16.msra.mxu0 %v4009
        %4139 = vmatprep.subr.bf16.mxu0 %v4012
        %4140 = vmatpush1.bf16.msra.mxu0 %v4011
        %4141 = vmatprep.subr.bf16.mxu0 %v4014
        %4142 = vmatpush1.bf16.msra.mxu0 %v4013
        %4143 = vmatprep.subr.bf16.mxu0 %v4016
        %4144 = vmatpush1.bf16.msra.mxu0 %v4015
        %4145 = vmatprep.subr.bf16.mxu0 %v4018
        %4146 = vmatpush1.bf16.msra.mxu0 %v4017
        %4147 = vmatprep.subr.bf16.mxu0 %v4020
        %4148 = vmatpush1.bf16.msra.mxu0 %v4019
        %4149 = vmatprep.subr.bf16.mxu0 %v4022
        %4150 = vmatpush1.bf16.msra.mxu0 %v4021
        %4151 = vmatprep.subr.bf16.mxu0 %v4024
        %4152 = vmatpush1.bf16.msra.mxu0 %v4023
        %4153 = vmatprep.subr.bf16.mxu0 %v4026
        %4154 = vmatpush1.bf16.msra.mxu0 %v4025
        %4155 = vmatprep.subr.bf16.mxu0 %v4028
        %4156 = vmatpush1.bf16.msra.mxu0 %v4027
        %4157 = vmatprep.subr.bf16.mxu0 %v4030
        %4158 = vmatpush1.bf16.msra.mxu0 %v4029
        %4159 = vmatprep.subr.bf16.mxu0 %v4032
        %4160 = vmatpush1.bf16.msra.mxu0 %v4031
        %4161 = vmatprep.subr.bf16.mxu0 %v4034
        %4162 = vmatpush1.bf16.msra.mxu0 %v4033
        %4163 = vmatprep.subr.bf16.mxu0 %v4036
        %4164 = vmatpush1.bf16.msra.mxu0 %v4035
        %4165 = vmatprep.mubr.bf16.mxu0 %v3746
        %4166 = vmatmul.mubr.bf16.gmra.mrb[0].mxu0 %v3745
        %v4167 = vpop.f32.mrb[0].mxu0
        %v4168 = vadd.f32 %v489, %v4167
        %v4169 = vpop.f32.mrb[0].mxu0
        %v4170 = vadd.f32 %v490, %v4169
        %v4171 = vpop.f32.mrb[0].mxu0
        %v4172 = vadd.f32 %v491, %v4171
        %v4173 = vpop.f32.mrb[0].mxu0
        %v4174 = vadd.f32 %v492, %v4173
        %4175 = vdwg.mxu0
        %4176 = vmatprep.subr.bf16.mxu0 %v4038
        %4177 = vmatpush1.bf16.msra.mxu0 %v4037
        %4178 = vmatprep.subr.bf16.mxu0 %v4040
        %4179 = vmatpush1.bf16.msra.mxu0 %v4039
        %4180 = vmatprep.subr.bf16.mxu0 %v4042
        %4181 = vmatpush1.bf16.msra.mxu0 %v4041
        %4182 = vmatprep.subr.bf16.mxu0 %v4044
        %4183 = vmatpush1.bf16.msra.mxu0 %v4043
        %4184 = vmatprep.subr.bf16.mxu0 %v4046
        %4185 = vmatpush1.bf16.msra.mxu0 %v4045
        %4186 = vmatprep.subr.bf16.mxu0 %v4048
        %4187 = vmatpush1.bf16.msra.mxu0 %v4047
        %4188 = vmatprep.subr.bf16.mxu0 %v4050
        %4189 = vmatpush1.bf16.msra.mxu0 %v4049
        %4190 = vmatprep.subr.bf16.mxu0 %v4052
        %4191 = vmatpush1.bf16.msra.mxu0 %v4051
        %4192 = vmatprep.subr.bf16.mxu0 %v4054
        %4193 = vmatpush1.bf16.msra.mxu0 %v4053
        %4194 = vmatprep.subr.bf16.mxu0 %v4056
        %4195 = vmatpush1.bf16.msra.mxu0 %v4055
        %4196 = vmatprep.subr.bf16.mxu0 %v4058
        %4197 = vmatpush1.bf16.msra.mxu0 %v4057
        %4198 = vmatprep.subr.bf16.mxu0 %v4060
        %4199 = vmatpush1.bf16.msra.mxu0 %v4059
        %4200 = vmatprep.subr.bf16.mxu0 %v4062
        %4201 = vmatpush1.bf16.msra.mxu0 %v4061
        %4202 = vmatprep.subr.bf16.mxu0 %v4064
        %4203 = vmatpush1.bf16.msra.mxu0 %v4063
        %4204 = vmatprep.subr.bf16.mxu0 %v4066
        %4205 = vmatpush1.bf16.msra.mxu0 %v4065
        %4206 = vmatprep.subr.bf16.mxu0 %v4068
        %4207 = vmatpush1.bf16.msra.mxu0 %v4067
        %4208 = vmatprep.mubr.bf16.mxu0 %v3748
        %4209 = vmatmul.mubr.bf16.gmra.mrb[0].mxu0 %v3747
        %v4210 = vpop.f32.mrb[0].mxu0
        %v4211 = vadd.f32 %v4168, %v4210
        %v4212 = vpop.f32.mrb[0].mxu0
        %v4213 = vadd.f32 %v4170, %v4212
        %v4214 = vpop.f32.mrb[0].mxu0
        %v4215 = vadd.f32 %v4172, %v4214
        %v4216 = vpop.f32.mrb[0].mxu0
        %v4217 = vadd.f32 %v4174, %v4216
        %4218 = vdwg.mxu0
        %v4219 = vadd.f32 %v4211, %v4213
        %4220 = vadd.xlane.f32.xlu0 %v4219
        %v4221 = vpop.xlane.xlu0 %4220
        %v4222 = vadd.f32 %v4215, %v4217
        %4223 = vadd.xlane.f32.xlu0 %v4222
        %v4224 = vpop.xlane.xlu0 %4223
        %v4225 = vrcp.pop 256.0
        %v4226 = vmul.f32 %v4221, %v4225
        %v4227 = vmul.f32 %v4224, %v4225
        %v4228 = vsub.f32 %v4211, %v4226
        %v4229 = vsub.f32 %v4213, %v4226
        %v4230 = vsub.f32 %v4215, %v4227
        %v4231 = vsub.f32 %v4217, %v4227
        %v4232 = vmul.f32 %v4228, %v4228
        %v4233 = vmul.f32 %v4229, %v4229
        %v4234 = vmul.f32 %v4230, %v4230
        %v4235 = vmul.f32 %v4231, %v4231
        %v4236 = vadd.f32 %v4232, %v4233
        %4237 = vadd.xlane.f32.xlu0 %v4236
        %v4238 = vpop.xlane.xlu0 %4237
        %v4239 = vadd.f32 %v4234, %v4235
        %4240 = vadd.xlane.f32.xlu0 %v4239
        %v4241 = vpop.xlane.xlu0 %4240
        %v4242 = vmul.f32 %v4238, %v4225
        %v4243 = vmul.f32 %v4241, %v4225
        %v4244 = vadd.f32 %v4242, 1e-05
        %v4245 = vadd.f32 %v4243, 1e-05
        %v4246 = vrsqrt.pop %v4244
        %v4247 = vrsqrt.pop %v4245
        %v4248 = vmul.f32 %v4228, %v4246
        %v4249 = vmul.f32 %v4229, %v4246
        %v4250 = vmul.f32 %v4230, %v4247
        %v4251 = vmul.f32 %v4231, %v4247
        %4252 = vst [vmem:[%s477] sm:$0xff] %v4248
        %4253 = vst [vmem:[%s477 + $0x8] sm:$0xff] %v4249
        %4254 = vst [vmem:[%s477 + $0x10] sm:$0xff] %v4250
        %4255 = vst [vmem:[%s477 + $0x18] sm:$0xff] %v4251
        %s4256 = sand.u32 %s226, 1
        %s4257 = scalar_lea.sflag [#allocation4], %s4256
        %s4258 = sand.u32 %s226, 1
        %s4259 = smul.addr %s4258, 32
        %s4260 = scalar_lea.vmem [#allocation14], %s4259
        // Predicated region
        $region81: #{multi_head_attention.1} parent=51 // pred_check
          %p4261 = pneg %p236
        $region82: #{multi_head_attention.1} parent=51 // pred_check_branch
          %4263 = sbr.rel (%p4261) target = $region84
        $region83: #{multi_head_attention.1} parent=51 // pred_region
          %s4264 = smul.u32 2, %s30
          %s4266 = ssub.s32 512, 512
          %4267 = vsyncadd %s4257, %s4266
          %s4268 = smul.addr %s4264, 2
          %s4269 = smul.addr %s4268, 128
          %s4270 = scalar_lea.hbm %s8, %s4269
          %s4271 = sshll.u32 %s4260, 4
          %s4272 = int_to_ptr.vmem [resolvable:$true] %s4271
          %4277 = dma.vmem_to_hbm [thread:$0]  %s4272, 512, %s4270, %s4257, 256, 256, 16
        $region84: #{multi_head_attention.1} parent=51 // pred_fallthru
          _
      $region52: #{multi_head_attention.1} parent=5 // pred_fallthru
        _
      %p4278 = scmp.le.s32.totalorder 2, %s25
      // Predicated region
      $region85: #{multi_head_attention.1} parent=5 // pred_check
        %p4279 = pneg %p4278
      $region86: #{multi_head_attention.1} parent=5 // pred_check_branch
        %4281 = sbr.rel (%p4279) target = $region88
      $region87: #{multi_head_attention.1} parent=5 // pred_region
        %s4282 = ssub.s32 %s25, 2
        // Predicated region
        $region89: #{multi_head_attention.1} parent=87 // pred_check
          %p4283 = pneg %p242
        $region90: #{multi_head_attention.1} parent=87 // pred_check_branch
          %4285 = sbr.rel (%p4283) target = $region92
        $region91: #{multi_head_attention.1} parent=87 // pred_region
          %s4286 = sand.u32 %s227, 1
          %s4287 = scalar_lea.sflag [#allocation4], %s4286
          %s4288 = sand.u32 %s227, 1
          %s4289 = smul.addr %s4288, 32
          %s4290 = scalar_lea.vmem [#allocation14], %s4289
          %4291 = dma.done %s4287, 512
        $region92: #{multi_head_attention.1} parent=87 // pred_fallthru
          _
      $region88: #{multi_head_attention.1} parent=5 // pred_fallthru
        _
    $region6: #{multi_head_attention.1} parent=1 // loop_footer
      %s29 = sadd.s32 1, %s25
    $region7: #{multi_head_attention.1} parent=1 // loop_footer_branch
      %24 = sbr.rel target = $region3
    $region8: #{multi_head_attention.1} parent=1 // loop_exit
      _
    %4292 = vsyncpa [#allocation3], 1
    %s4293 = scalar_lea.sflag [#allocation3], 1
    %4294 = vsyncpa %s4293, 1
    %4295 = vsyncpa [#allocation6], 1
    %s4296 = scalar_lea.sflag [#allocation6], 1
    %4297 = vsyncpa %s4296, 1
    %4298 = vsyncpa [#allocation9], 1
    %4299 = vsyncpa [#allocation12], 1
    %4300 = vsyncpa [#allocation4], 1
    %s4301 = scalar_lea.sflag [#allocation4], 1
    %4302 = vsyncpa %s4301, 1

</llo_original>
